<compile_context>
chip_gen: v5e
topology: v5e:2x2
jax: 0.10.0
libtpu: 0.0.40
codegen_flags: <defaults>
</compile_context>

<pallas_src>
import functools
import math

import jax
import jax.numpy as jnp
from jax.experimental import pallas as pl
from jax.experimental.pallas import tpu as pltpu

INPUT_SIZE = 512
HIDDEN_SIZE = 32
NUM_LAYERS = 3


def _lstm3_kernel(x_ref,
                  wih0_ref, whh0_ref, b0_ref,
                  wih1_ref, whh1_ref, b1_ref,
                  wih2_ref, whh2_ref, b2_ref,
                  y_ref, seq0_scr, seq1_scr, *, seq_len, batch):
    """Fused 3-layer LSTM over the full sequence.

    x_ref    : (T*B, 512)  time-major rows (row = t*B + b)          VMEM
    wihX_ref : (D_in, 4H)  input-projection weights, cols [i|f|g|o] VMEM
    whhX_ref : (4, H, H)   recurrent weights, pre-split per gate    VMEM
    bX_ref   : (1, 4H)     b_ih + b_hh combined                     VMEM
    y_ref    : (T*B, H)    last-layer hidden states                 VMEM
    seq*_scr : (T*B, H)    inter-layer sequence buffers             VMEM scratch
    """
    H = y_ref.shape[-1]

    def run_layer(x_seq, wih_ref, whh_ref, b_ref, out_ref):
        # ---- hoisted input projection: ONE MXU matmul for all timesteps ----
        gx = jnp.dot(x_seq, wih_ref[...],
                     preferred_element_type=jnp.float32) + b_ref[...]
        # Per-gate split done once per layer, outside the recurrence.
        gxi = gx[:, 0 * H:1 * H]
        gxf = gx[:, 1 * H:2 * H]
        gxg = gx[:, 2 * H:3 * H]
        gxo = gx[:, 3 * H:4 * H]
        # Per-gate recurrent weights: leading-dim ref index, lane-aligned.
        whi = whh_ref[0]
        whf = whh_ref[1]
        whg = whh_ref[2]
        who = whh_ref[3]

        h = jnp.zeros((batch, H), jnp.float32)
        c = jnp.zeros((batch, H), jnp.float32)
        # Fully-unrolled serial recurrence; h/c live in vregs.
        for t in range(seq_len):
            lo = t * batch
            i_g = jax.nn.sigmoid(
                gxi[lo:lo + batch]
                + jnp.dot(h, whi, preferred_element_type=jnp.float32))
            f_g = jax.nn.sigmoid(
                gxf[lo:lo + batch]
                + jnp.dot(h, whf, preferred_element_type=jnp.float32))
            g_g = jnp.tanh(
                gxg[lo:lo + batch]
                + jnp.dot(h, whg, preferred_element_type=jnp.float32))
            o_g = jax.nn.sigmoid(
                gxo[lo:lo + batch]
                + jnp.dot(h, who, preferred_element_type=jnp.float32))
            c = f_g * c + i_g * g_g
            h = o_g * jnp.tanh(c)
            out_ref[lo:lo + batch, :] = h.astype(out_ref.dtype)

    x0 = x_ref[...].astype(jnp.float32)
    run_layer(x0, wih0_ref, whh0_ref, b0_ref, seq0_scr)
    run_layer(seq0_scr[...], wih1_ref, whh1_ref, b1_ref, seq1_scr)
    run_layer(seq1_scr[...], wih2_ref, whh2_ref, b2_ref, y_ref)


def lstm_block(x_btd, kernel_params):
    """Equivalent of LSTMBlock.forward: (B, T, 512) -> (B, T, H)."""
    assert len(kernel_params) == NUM_LAYERS
    B, T, D = x_btd.shape
    H = kernel_params[0]["whh"].shape[-1]

    # Time-major flatten: row index = t*B + b.
    x_tm = jnp.transpose(x_btd, (1, 0, 2)).reshape(T * B, D)

    flat_args = [x_tm]
    in_specs = [pl.BlockSpec((T * B, D), lambda i: (0, 0))]
    for p in kernel_params:
        d_in = p["wih"].shape[0]
        flat_args += [p["wih"], p["whh"], p["b"]]
        in_specs += [
            pl.BlockSpec((d_in, 4 * H), lambda i: (0, 0)),
            pl.BlockSpec((4, H, H), lambda i: (0, 0, 0)),
            pl.BlockSpec((1, 4 * H), lambda i: (0, 0)),
        ]

    y_tm = pl.pallas_call(
        functools.partial(_lstm3_kernel, seq_len=T, batch=B),
        out_shape=jax.ShapeDtypeStruct((T * B, H), x_btd.dtype),
        grid=(1,),
        in_specs=in_specs,
        out_specs=pl.BlockSpec((T * B, H), lambda i: (0, 0)),
        scratch_shapes=[
            pltpu.VMEM((T * B, H), jnp.float32),
            pltpu.VMEM((T * B, H), jnp.float32),
        ],
        compiler_params=pltpu.CompilerParams(
            dimension_semantics=("arbitrary",)),
    )(*flat_args)

    return jnp.transpose(y_tm.reshape(T, B, H), (1, 0, 2))  # (B, T, H)


def init_lstm_params(key, input_size, hidden_size, num_layers):
    """PyTorch nn.LSTM layout: weight_ih (4H, D_in), weight_hh (4H, H),
    biases (4H,), all U(-k, k) with k = 1/sqrt(H). Gate order [i, f, g, o]."""
    k = 1.0 / math.sqrt(hidden_size)
    params = []
    for layer in range(num_layers):
        d_in = input_size if layer == 0 else hidden_size
        key, k1, k2, k3, k4 = jax.random.split(key, 5)
        params.append({
            "weight_ih": jax.random.uniform(k1, (4 * hidden_size, d_in), jnp.float32, -k, k),
            "weight_hh": jax.random.uniform(k2, (4 * hidden_size, hidden_size), jnp.float32, -k, k),
            "bias_ih": jax.random.uniform(k3, (4 * hidden_size,), jnp.float32, -k, k),
            "bias_hh": jax.random.uniform(k4, (4 * hidden_size,), jnp.float32, -k, k),
        })
    return params


def to_kernel_params(torch_params):
    """Convert PyTorch-layout weights to the kernel layout."""
    kp = []
    for p in torch_params:
        H = p["weight_hh"].shape[1]
        wih = jnp.transpose(p["weight_ih"])                                   # (D_in, 4H)
        whh = jnp.transpose(p["weight_hh"].reshape(4, H, H), (0, 2, 1))       # (4, H, H): W_g^T
        b = (p["bias_ih"] + p["bias_hh"]).reshape(1, 4 * H)                   # (1, 4H)
        kp.append({"wih": wih, "whh": whh, "b": b})
    return kp


def lstm_block_ref(x_btd, torch_params):
    """Pure-JAX reference matching torch.nn.LSTM semantics (zero initial state)."""
    B, T, _ = x_btd.shape
    hi = jax.lax.Precision.HIGHEST
    x = jnp.transpose(x_btd, (1, 0, 2))  # (T, B, D)
    for p in torch_params:
        w_ih, w_hh = p["weight_ih"], p["weight_hh"]
        b = p["bias_ih"] + p["bias_hh"]
        H = w_hh.shape[1]

        def step(carry, x_t, w_ih=w_ih, w_hh=w_hh, b=b, H=H):
            h, c = carry
            g = (jnp.dot(x_t, w_ih.T, precision=hi)
                 + jnp.dot(h, w_hh.T, precision=hi) + b)
            i = jax.nn.sigmoid(g[:, 0 * H:1 * H])
            f = jax.nn.sigmoid(g[:, 1 * H:2 * H])
            gg = jnp.tanh(g[:, 2 * H:3 * H])
            o = jax.nn.sigmoid(g[:, 3 * H:4 * H])
            c = f * c + i * gg
            h = o * jnp.tanh(c)
            return (h, c), h

        init = (jnp.zeros((B, H), jnp.float32), jnp.zeros((B, H), jnp.float32))
        (_, _), x = jax.lax.scan(step, init, x)
    return jnp.transpose(x, (1, 0, 2))  # (B, T, H)


if __name__ == "__main__":
    key = jax.random.PRNGKey(0)
    k_x, k_p = jax.random.split(key)

    B, T = 2, 8
    x = jax.random.normal(k_x, (B, T, INPUT_SIZE), jnp.float32)
    torch_params = init_lstm_params(k_p, INPUT_SIZE, HIDDEN_SIZE, NUM_LAYERS)
    kparams = to_kernel_params(torch_params)

    y = lstm_block(x, kparams)
    jax.block_until_ready(y)
    assert y.shape == (B, T, HIDDEN_SIZE), y.shape
    assert y.dtype == jnp.float32

    y_ref = lstm_block_ref(x, torch_params)
    max_err = float(jnp.max(jnp.abs(y - y_ref)))
    assert max_err < 5e-3, f"max abs err vs reference: {max_err}"
    print("KERNEL_OK")
</pallas_src>

<mosaic_0001>
module attributes {stable_mosaic.version = 11 : i64} {
  func.func @_lstm3_kernel(%arg0: i32, %arg1: memref<16x512xf32, #tpu.memory_space<vmem>>, %arg2: memref<512x128xf32, #tpu.memory_space<vmem>>, %arg3: memref<4x32x32xf32, #tpu.memory_space<vmem>>, %arg4: memref<1x128xf32, #tpu.memory_space<vmem>>, %arg5: memref<32x128xf32, #tpu.memory_space<vmem>>, %arg6: memref<4x32x32xf32, #tpu.memory_space<vmem>>, %arg7: memref<1x128xf32, #tpu.memory_space<vmem>>, %arg8: memref<32x128xf32, #tpu.memory_space<vmem>>, %arg9: memref<4x32x32xf32, #tpu.memory_space<vmem>>, %arg10: memref<1x128xf32, #tpu.memory_space<vmem>>, %arg11: memref<16x32xf32, #tpu.memory_space<vmem>>, %arg12: memref<16x32xf32, #tpu.memory_space<vmem>>, %arg13: memref<16x32xf32, #tpu.memory_space<vmem>>) attributes {dimension_semantics = [#tpu.dimension_semantics<arbitrary>], iteration_bounds = array<i64: 1>, scalar_prefetch = 0 : i64, scratch_operands = 2 : i64, tpu.core_type = #tpu.core_type<tc>, window_params = [{pipeline_mode = #tpu.pipeline_mode<synchronous>, transform_indices = @transform_0, window_bounds = array<i64: 16, 512>}, {pipeline_mode = #tpu.pipeline_mode<synchronous>, transform_indices = @transform_1, window_bounds = array<i64: 512, 128>}, {pipeline_mode = #tpu.pipeline_mode<synchronous>, transform_indices = @transform_2, window_bounds = array<i64: 4, 32, 32>}, {pipeline_mode = #tpu.pipeline_mode<synchronous>, transform_indices = @transform_3, window_bounds = array<i64: 1, 128>}, {pipeline_mode = #tpu.pipeline_mode<synchronous>, transform_indices = @transform_4, window_bounds = array<i64: 32, 128>}, {pipeline_mode = #tpu.pipeline_mode<synchronous>, transform_indices = @transform_5, window_bounds = array<i64: 4, 32, 32>}, {pipeline_mode = #tpu.pipeline_mode<synchronous>, transform_indices = @transform_6, window_bounds = array<i64: 1, 128>}, {pipeline_mode = #tpu.pipeline_mode<synchronous>, transform_indices = @transform_7, window_bounds = array<i64: 32, 128>}, {pipeline_mode = #tpu.pipeline_mode<synchronous>, transform_indices = @transform_8, window_bounds = array<i64: 4, 32, 32>}, {pipeline_mode = #tpu.pipeline_mode<synchronous>, transform_indices = @transform_9, window_bounds = array<i64: 1, 128>}, {pipeline_mode = #tpu.pipeline_mode<synchronous>, transform_indices = @transform_10, window_bounds = array<i64: 16, 32>}]} {
    %c0 = arith.constant 0 : index
    %c0_0 = arith.constant 0 : index
    %0 = vector.load %arg1[%c0, %c0_0] : memref<16x512xf32, #tpu.memory_space<vmem>>, vector<16x512xf32>
    %c0_1 = arith.constant 0 : index
    %c0_2 = arith.constant 0 : index
    %1 = vector.load %arg2[%c0_1, %c0_2] : memref<512x128xf32, #tpu.memory_space<vmem>>, vector<512x128xf32>
    %cst = arith.constant dense<0.000000e+00> : vector<16x128xf32>
    %2 = tpu.matmul %0, %1, %cst {dimension_numbers = #tpu.dot_dimension_numbers<[1], [0], [0], [1], [0, 0, 1, 1], [], []>} : vector<16x512xf32>, vector<512x128xf32>, vector<16x128xf32> -> vector<16x128xf32>
    %c0_3 = arith.constant 0 : index
    %c0_4 = arith.constant 0 : index
    %3 = vector.load %arg4[%c0_3, %c0_4] : memref<1x128xf32, #tpu.memory_space<vmem>>, vector<1x128xf32>
    %4 = vector.broadcast %3 : vector<1x128xf32> to vector<16x128xf32>
    %5 = arith.addf %2, %4 : vector<16x128xf32>
    %6 = vector.extract_strided_slice %5 {offsets = [0, 0], sizes = [16, 32], strides = [1, 1]} : vector<16x128xf32> to vector<16x32xf32>
    %7 = vector.extract_strided_slice %5 {offsets = [0, 32], sizes = [16, 32], strides = [1, 1]} : vector<16x128xf32> to vector<16x32xf32>
    %8 = vector.extract_strided_slice %5 {offsets = [0, 64], sizes = [16, 32], strides = [1, 1]} : vector<16x128xf32> to vector<16x32xf32>
    %9 = vector.extract_strided_slice %5 {offsets = [0, 96], sizes = [16, 32], strides = [1, 1]} : vector<16x128xf32> to vector<16x32xf32>
    %c0_5 = arith.constant 0 : index
    %c0_6 = arith.constant 0 : index
    %c0_7 = arith.constant 0 : index
    %10 = vector.load %arg3[%c0_5, %c0_6, %c0_7] : memref<4x32x32xf32, #tpu.memory_space<vmem>>, vector<1x32x32xf32>
    %11 = vector.shape_cast %10 : vector<1x32x32xf32> to vector<32x32xf32>
    %c1 = arith.constant 1 : index
    %c0_8 = arith.constant 0 : index
    %c0_9 = arith.constant 0 : index
    %12 = vector.load %arg3[%c1, %c0_8, %c0_9] : memref<4x32x32xf32, #tpu.memory_space<vmem>>, vector<1x32x32xf32>
    %13 = vector.shape_cast %12 : vector<1x32x32xf32> to vector<32x32xf32>
    %c2 = arith.constant 2 : index
    %c0_10 = arith.constant 0 : index
    %c0_11 = arith.constant 0 : index
    %14 = vector.load %arg3[%c2, %c0_10, %c0_11] : memref<4x32x32xf32, #tpu.memory_space<vmem>>, vector<1x32x32xf32>
    %15 = vector.shape_cast %14 : vector<1x32x32xf32> to vector<32x32xf32>
    %c3 = arith.constant 3 : index
    %c0_12 = arith.constant 0 : index
    %c0_13 = arith.constant 0 : index
    %16 = vector.load %arg3[%c3, %c0_12, %c0_13] : memref<4x32x32xf32, #tpu.memory_space<vmem>>, vector<1x32x32xf32>
    %17 = vector.shape_cast %16 : vector<1x32x32xf32> to vector<32x32xf32>
    %cst_14 = arith.constant 0.000000e+00 : f32
    %18 = vector.broadcast %cst_14 : f32 to vector<2x32xf32>
    %cst_15 = arith.constant 0.000000e+00 : f32
    %19 = vector.broadcast %cst_15 : f32 to vector<2x32xf32>
    %20 = vector.extract_strided_slice %6 {offsets = [0, 0], sizes = [2, 32], strides = [1, 1]} : vector<16x32xf32> to vector<2x32xf32>
    %cst_16 = arith.constant dense<0.000000e+00> : vector<2x32xf32>
    %21 = tpu.matmul %18, %11, %cst_16 {dimension_numbers = #tpu.dot_dimension_numbers<[1], [0], [0], [1], [0, 0, 1, 1], [], []>} : vector<2x32xf32>, vector<32x32xf32>, vector<2x32xf32> -> vector<2x32xf32>
    %22 = arith.addf %20, %21 : vector<2x32xf32>
    %23 = arith.negf %22 : vector<2x32xf32>
    %24 = math.exp %23 : vector<2x32xf32>
    %cst_17 = arith.constant 1.000000e+00 : f32
    %25 = vector.broadcast %cst_17 : f32 to vector<2x32xf32>
    %26 = arith.addf %25, %24 : vector<2x32xf32>
    %27 = arith.divf %25, %26 : vector<2x32xf32>
    %28 = vector.extract_strided_slice %7 {offsets = [0, 0], sizes = [2, 32], strides = [1, 1]} : vector<16x32xf32> to vector<2x32xf32>
    %cst_18 = arith.constant dense<0.000000e+00> : vector<2x32xf32>
    %29 = tpu.matmul %18, %13, %cst_18 {dimension_numbers = #tpu.dot_dimension_numbers<[1], [0], [0], [1], [0, 0, 1, 1], [], []>} : vector<2x32xf32>, vector<32x32xf32>, vector<2x32xf32> -> vector<2x32xf32>
    %30 = arith.addf %28, %29 : vector<2x32xf32>
    %31 = arith.negf %30 : vector<2x32xf32>
    %32 = math.exp %31 : vector<2x32xf32>
    %cst_19 = arith.constant 1.000000e+00 : f32
    %33 = vector.broadcast %cst_19 : f32 to vector<2x32xf32>
    %34 = arith.addf %33, %32 : vector<2x32xf32>
    %35 = arith.divf %33, %34 : vector<2x32xf32>
    %36 = vector.extract_strided_slice %8 {offsets = [0, 0], sizes = [2, 32], strides = [1, 1]} : vector<16x32xf32> to vector<2x32xf32>
    %cst_20 = arith.constant dense<0.000000e+00> : vector<2x32xf32>
    %37 = tpu.matmul %18, %15, %cst_20 {dimension_numbers = #tpu.dot_dimension_numbers<[1], [0], [0], [1], [0, 0, 1, 1], [], []>} : vector<2x32xf32>, vector<32x32xf32>, vector<2x32xf32> -> vector<2x32xf32>
    %38 = arith.addf %36, %37 : vector<2x32xf32>
    %39 = math.tanh %38 : vector<2x32xf32>
    %40 = vector.extract_strided_slice %9 {offsets = [0, 0], sizes = [2, 32], strides = [1, 1]} : vector<16x32xf32> to vector<2x32xf32>
    %cst_21 = arith.constant dense<0.000000e+00> : vector<2x32xf32>
    %41 = tpu.matmul %18, %17, %cst_21 {dimension_numbers = #tpu.dot_dimension_numbers<[1], [0], [0], [1], [0, 0, 1, 1], [], []>} : vector<2x32xf32>, vector<32x32xf32>, vector<2x32xf32> -> vector<2x32xf32>
    %42 = arith.addf %40, %41 : vector<2x32xf32>
    %43 = arith.negf %42 : vector<2x32xf32>
    %44 = math.exp %43 : vector<2x32xf32>
    %cst_22 = arith.constant 1.000000e+00 : f32
    %45 = vector.broadcast %cst_22 : f32 to vector<2x32xf32>
    %46 = arith.addf %45, %44 : vector<2x32xf32>
    %47 = arith.divf %45, %46 : vector<2x32xf32>
    %48 = arith.mulf %35, %19 : vector<2x32xf32>
    %49 = arith.mulf %27, %39 : vector<2x32xf32>
    %50 = arith.addf %48, %49 : vector<2x32xf32>
    %51 = math.tanh %50 : vector<2x32xf32>
    %52 = arith.mulf %47, %51 : vector<2x32xf32>
    %c0_23 = arith.constant 0 : index
    %c0_24 = arith.constant 0 : index
    %53 = vector.load %arg12[%c0_23, %c0_24] : memref<16x32xf32, #tpu.memory_space<vmem>>, vector<2x32xf32>
    tpu.vector_store %arg12[%c0_23, %c0_24], %52 {strides = array<i32>} : memref<16x32xf32, #tpu.memory_space<vmem>>, vector<2x32xf32>,
    %54 = vector.extract_strided_slice %6 {offsets = [2, 0], sizes = [2, 32], strides = [1, 1]} : vector<16x32xf32> to vector<2x32xf32>
    %cst_25 = arith.constant dense<0.000000e+00> : vector<2x32xf32>
    %55 = tpu.matmul %52, %11, %cst_25 {dimension_numbers = #tpu.dot_dimension_numbers<[1], [0], [0], [1], [0, 0, 1, 1], [], []>} : vector<2x32xf32>, vector<32x32xf32>, vector<2x32xf32> -> vector<2x32xf32>
    %56 = arith.addf %54, %55 : vector<2x32xf32>
    %57 = arith.negf %56 : vector<2x32xf32>
    %58 = math.exp %57 : vector<2x32xf32>
    %cst_26 = arith.constant 1.000000e+00 : f32
    %59 = vector.broadcast %cst_26 : f32 to vector<2x32xf32>
    %60 = arith.addf %59, %58 : vector<2x32xf32>
    %61 = arith.divf %59, %60 : vector<2x32xf32>
    %62 = vector.extract_strided_slice %7 {offsets = [2, 0], sizes = [2, 32], strides = [1, 1]} : vector<16x32xf32> to vector<2x32xf32>
    %cst_27 = arith.constant dense<0.000000e+00> : vector<2x32xf32>
    %63 = tpu.matmul %52, %13, %cst_27 {dimension_numbers = #tpu.dot_dimension_numbers<[1], [0], [0], [1], [0, 0, 1, 1], [], []>} : vector<2x32xf32>, vector<32x32xf32>, vector<2x32xf32> -> vector<2x32xf32>
    %64 = arith.addf %62, %63 : vector<2x32xf32>
    %65 = arith.negf %64 : vector<2x32xf32>
    %66 = math.exp %65 : vector<2x32xf32>
    %cst_28 = arith.constant 1.000000e+00 : f32
    %67 = vector.broadcast %cst_28 : f32 to vector<2x32xf32>
    %68 = arith.addf %67, %66 : vector<2x32xf32>
    %69 = arith.divf %67, %68 : vector<2x32xf32>
    %70 = vector.extract_strided_slice %8 {offsets = [2, 0], sizes = [2, 32], strides = [1, 1]} : vector<16x32xf32> to vector<2x32xf32>
    %cst_29 = arith.constant dense<0.000000e+00> : vector<2x32xf32>
    %71 = tpu.matmul %52, %15, %cst_29 {dimension_numbers = #tpu.dot_dimension_numbers<[1], [0], [0], [1], [0, 0, 1, 1], [], []>} : vector<2x32xf32>, vector<32x32xf32>, vector<2x32xf32> -> vector<2x32xf32>
    %72 = arith.addf %70, %71 : vector<2x32xf32>
    %73 = math.tanh %72 : vector<2x32xf32>
    %74 = vector.extract_strided_slice %9 {offsets = [2, 0], sizes = [2, 32], strides = [1, 1]} : vector<16x32xf32> to vector<2x32xf32>
    %cst_30 = arith.constant dense<0.000000e+00> : vector<2x32xf32>
    %75 = tpu.matmul %52, %17, %cst_30 {dimension_numbers = #tpu.dot_dimension_numbers<[1], [0], [0], [1], [0, 0, 1, 1], [], []>} : vector<2x32xf32>, vector<32x32xf32>, vector<2x32xf32> -> vector<2x32xf32>
    %76 = arith.addf %74, %75 : vector<2x32xf32>
    %77 = arith.negf %76 : vector<2x32xf32>
    %78 = math.exp %77 : vector<2x32xf32>
    %cst_31 = arith.constant 1.000000e+00 : f32
    %79 = vector.broadcast %cst_31 : f32 to vector<2x32xf32>
    %80 = arith.addf %79, %78 : vector<2x32xf32>
    %81 = arith.divf %79, %80 : vector<2x32xf32>
    %82 = arith.mulf %69, %50 : vector<2x32xf32>
    %83 = arith.mulf %61, %73 : vector<2x32xf32>
    %84 = arith.addf %82, %83 : vector<2x32xf32>
    %85 = math.tanh %84 : vector<2x32xf32>
    %86 = arith.mulf %81, %85 : vector<2x32xf32>
    %c2_32 = arith.constant 2 : index
    %c0_33 = arith.constant 0 : index
    %87 = vector.load %arg12[%c2_32, %c0_33] : memref<16x32xf32, #tpu.memory_space<vmem>>, vector<2x32xf32>
    tpu.vector_store %arg12[%c2_32, %c0_33], %86 {strides = array<i32>} : memref<16x32xf32, #tpu.memory_space<vmem>>, vector<2x32xf32>,
    %88 = vector.extract_strided_slice %6 {offsets = [4, 0], sizes = [2, 32], strides = [1, 1]} : vector<16x32xf32> to vector<2x32xf32>
    %cst_34 = arith.constant dense<0.000000e+00> : vector<2x32xf32>
    %89 = tpu.matmul %86, %11, %cst_34 {dimension_numbers = #tpu.dot_dimension_numbers<[1], [0], [0], [1], [0, 0, 1, 1], [], []>} : vector<2x32xf32>, vector<32x32xf32>, vector<2x32xf32> -> vector<2x32xf32>
    %90 = arith.addf %88, %89 : vector<2x32xf32>
    %91 = arith.negf %90 : vector<2x32xf32>
    %92 = math.exp %91 : vector<2x32xf32>
    %cst_35 = arith.constant 1.000000e+00 : f32
    %93 = vector.broadcast %cst_35 : f32 to vector<2x32xf32>
    %94 = arith.addf %93, %92 : vector<2x32xf32>
    %95 = arith.divf %93, %94 : vector<2x32xf32>
    %96 = vector.extract_strided_slice %7 {offsets = [4, 0], sizes = [2, 32], strides = [1, 1]} : vector<16x32xf32> to vector<2x32xf32>
    %cst_36 = arith.constant dense<0.000000e+00> : vector<2x32xf32>
    %97 = tpu.matmul %86, %13, %cst_36 {dimension_numbers = #tpu.dot_dimension_numbers<[1], [0], [0], [1], [0, 0, 1, 1], [], []>} : vector<2x32xf32>, vector<32x32xf32>, vector<2x32xf32> -> vector<2x32xf32>
    %98 = arith.addf %96, %97 : vector<2x32xf32>
    %99 = arith.negf %98 : vector<2x32xf32>
    %100 = math.exp %99 : vector<2x32xf32>
    %cst_37 = arith.constant 1.000000e+00 : f32
    %101 = vector.broadcast %cst_37 : f32 to vector<2x32xf32>
    %102 = arith.addf %101, %100 : vector<2x32xf32>
    %103 = arith.divf %101, %102 : vector<2x32xf32>
    %104 = vector.extract_strided_slice %8 {offsets = [4, 0], sizes = [2, 32], strides = [1, 1]} : vector<16x32xf32> to vector<2x32xf32>
    %cst_38 = arith.constant dense<0.000000e+00> : vector<2x32xf32>
    %105 = tpu.matmul %86, %15, %cst_38 {dimension_numbers = #tpu.dot_dimension_numbers<[1], [0], [0], [1], [0, 0, 1, 1], [], []>} : vector<2x32xf32>, vector<32x32xf32>, vector<2x32xf32> -> vector<2x32xf32>
    %106 = arith.addf %104, %105 : vector<2x32xf32>
    %107 = math.tanh %106 : vector<2x32xf32>
    %108 = vector.extract_strided_slice %9 {offsets = [4, 0], sizes = [2, 32], strides = [1, 1]} : vector<16x32xf32> to vector<2x32xf32>
    %cst_39 = arith.constant dense<0.000000e+00> : vector<2x32xf32>
    %109 = tpu.matmul %86, %17, %cst_39 {dimension_numbers = #tpu.dot_dimension_numbers<[1], [0], [0], [1], [0, 0, 1, 1], [], []>} : vector<2x32xf32>, vector<32x32xf32>, vector<2x32xf32> -> vector<2x32xf32>
    %110 = arith.addf %108, %109 : vector<2x32xf32>
    %111 = arith.negf %110 : vector<2x32xf32>
    %112 = math.exp %111 : vector<2x32xf32>
    %cst_40 = arith.constant 1.000000e+00 : f32
    %113 = vector.broadcast %cst_40 : f32 to vector<2x32xf32>
    %114 = arith.addf %113, %112 : vector<2x32xf32>
    %115 = arith.divf %113, %114 : vector<2x32xf32>
    %116 = arith.mulf %103, %84 : vector<2x32xf32>
    %117 = arith.mulf %95, %107 : vector<2x32xf32>
    %118 = arith.addf %116, %117 : vector<2x32xf32>
    %119 = math.tanh %118 : vector<2x32xf32>
    %120 = arith.mulf %115, %119 : vector<2x32xf32>
    %c4 = arith.constant 4 : index
    %c0_41 = arith.constant 0 : index
    %121 = vector.load %arg12[%c4, %c0_41] : memref<16x32xf32, #tpu.memory_space<vmem>>, vector<2x32xf32>
    tpu.vector_store %arg12[%c4, %c0_41], %120 {strides = array<i32>} : memref<16x32xf32, #tpu.memory_space<vmem>>, vector<2x32xf32>,
    %122 = vector.extract_strided_slice %6 {offsets = [6, 0], sizes = [2, 32], strides = [1, 1]} : vector<16x32xf32> to vector<2x32xf32>
    %cst_42 = arith.constant dense<0.000000e+00> : vector<2x32xf32>
    %123 = tpu.matmul %120, %11, %cst_42 {dimension_numbers = #tpu.dot_dimension_numbers<[1], [0], [0], [1], [0, 0, 1, 1], [], []>} : vector<2x32xf32>, vector<32x32xf32>, vector<2x32xf32> -> vector<2x32xf32>
    %124 = arith.addf %122, %123 : vector<2x32xf32>
    %125 = arith.negf %124 : vector<2x32xf32>
    %126 = math.exp %125 : vector<2x32xf32>
    %cst_43 = arith.constant 1.000000e+00 : f32
    %127 = vector.broadcast %cst_43 : f32 to vector<2x32xf32>
    %128 = arith.addf %127, %126 : vector<2x32xf32>
    %129 = arith.divf %127, %128 : vector<2x32xf32>
    %130 = vector.extract_strided_slice %7 {offsets = [6, 0], sizes = [2, 32], strides = [1, 1]} : vector<16x32xf32> to vector<2x32xf32>
    %cst_44 = arith.constant dense<0.000000e+00> : vector<2x32xf32>
    %131 = tpu.matmul %120, %13, %cst_44 {dimension_numbers = #tpu.dot_dimension_numbers<[1], [0], [0], [1], [0, 0, 1, 1], [], []>} : vector<2x32xf32>, vector<32x32xf32>, vector<2x32xf32> -> vector<2x32xf32>
    %132 = arith.addf %130, %131 : vector<2x32xf32>
    %133 = arith.negf %132 : vector<2x32xf32>
    %134 = math.exp %133 : vector<2x32xf32>
    %cst_45 = arith.constant 1.000000e+00 : f32
    %135 = vector.broadcast %cst_45 : f32 to vector<2x32xf32>
    %136 = arith.addf %135, %134 : vector<2x32xf32>
    %137 = arith.divf %135, %136 : vector<2x32xf32>
    %138 = vector.extract_strided_slice %8 {offsets = [6, 0], sizes = [2, 32], strides = [1, 1]} : vector<16x32xf32> to vector<2x32xf32>
    %cst_46 = arith.constant dense<0.000000e+00> : vector<2x32xf32>
    %139 = tpu.matmul %120, %15, %cst_46 {dimension_numbers = #tpu.dot_dimension_numbers<[1], [0], [0], [1], [0, 0, 1, 1], [], []>} : vector<2x32xf32>, vector<32x32xf32>, vector<2x32xf32> -> vector<2x32xf32>
    %140 = arith.addf %138, %139 : vector<2x32xf32>
    %141 = math.tanh %140 : vector<2x32xf32>
    %142 = vector.extract_strided_slice %9 {offsets = [6, 0], sizes = [2, 32], strides = [1, 1]} : vector<16x32xf32> to vector<2x32xf32>
    %cst_47 = arith.constant dense<0.000000e+00> : vector<2x32xf32>
    %143 = tpu.matmul %120, %17, %cst_47 {dimension_numbers = #tpu.dot_dimension_numbers<[1], [0], [0], [1], [0, 0, 1, 1], [], []>} : vector<2x32xf32>, vector<32x32xf32>, vector<2x32xf32> -> vector<2x32xf32>
    %144 = arith.addf %142, %143 : vector<2x32xf32>
    %145 = arith.negf %144 : vector<2x32xf32>
    %146 = math.exp %145 : vector<2x32xf32>
    %cst_48 = arith.constant 1.000000e+00 : f32
    %147 = vector.broadcast %cst_48 : f32 to vector<2x32xf32>
    %148 = arith.addf %147, %146 : vector<2x32xf32>
    %149 = arith.divf %147, %148 : vector<2x32xf32>
    %150 = arith.mulf %137, %118 : vector<2x32xf32>
    %151 = arith.mulf %129, %141 : vector<2x32xf32>
    %152 = arith.addf %150, %151 : vector<2x32xf32>
    %153 = math.tanh %152 : vector<2x32xf32>
    %154 = arith.mulf %149, %153 : vector<2x32xf32>
    %c6 = arith.constant 6 : index
    %c0_49 = arith.constant 0 : index
    %155 = vector.load %arg12[%c6, %c0_49] : memref<16x32xf32, #tpu.memory_space<vmem>>, vector<2x32xf32>
    tpu.vector_store %arg12[%c6, %c0_49], %154 {strides = array<i32>} : memref<16x32xf32, #tpu.memory_space<vmem>>, vector<2x32xf32>,
    %156 = vector.extract_strided_slice %6 {offsets = [8, 0], sizes = [2, 32], strides = [1, 1]} : vector<16x32xf32> to vector<2x32xf32>
    %cst_50 = arith.constant dense<0.000000e+00> : vector<2x32xf32>
    %157 = tpu.matmul %154, %11, %cst_50 {dimension_numbers = #tpu.dot_dimension_numbers<[1], [0], [0], [1], [0, 0, 1, 1], [], []>} : vector<2x32xf32>, vector<32x32xf32>, vector<2x32xf32> -> vector<2x32xf32>
    %158 = arith.addf %156, %157 : vector<2x32xf32>
    %159 = arith.negf %158 : vector<2x32xf32>
    %160 = math.exp %159 : vector<2x32xf32>
    %cst_51 = arith.constant 1.000000e+00 : f32
    %161 = vector.broadcast %cst_51 : f32 to vector<2x32xf32>
    %162 = arith.addf %161, %160 : vector<2x32xf32>
    %163 = arith.divf %161, %162 : vector<2x32xf32>
    %164 = vector.extract_strided_slice %7 {offsets = [8, 0], sizes = [2, 32], strides = [1, 1]} : vector<16x32xf32> to vector<2x32xf32>
    %cst_52 = arith.constant dense<0.000000e+00> : vector<2x32xf32>
    %165 = tpu.matmul %154, %13, %cst_52 {dimension_numbers = #tpu.dot_dimension_numbers<[1], [0], [0], [1], [0, 0, 1, 1], [], []>} : vector<2x32xf32>, vector<32x32xf32>, vector<2x32xf32> -> vector<2x32xf32>
    %166 = arith.addf %164, %165 : vector<2x32xf32>
    %167 = arith.negf %166 : vector<2x32xf32>
    %168 = math.exp %167 : vector<2x32xf32>
    %cst_53 = arith.constant 1.000000e+00 : f32
    %169 = vector.broadcast %cst_53 : f32 to vector<2x32xf32>
    %170 = arith.addf %169, %168 : vector<2x32xf32>
    %171 = arith.divf %169, %170 : vector<2x32xf32>
    %172 = vector.extract_strided_slice %8 {offsets = [8, 0], sizes = [2, 32], strides = [1, 1]} : vector<16x32xf32> to vector<2x32xf32>
    %cst_54 = arith.constant dense<0.000000e+00> : vector<2x32xf32>
    %173 = tpu.matmul %154, %15, %cst_54 {dimension_numbers = #tpu.dot_dimension_numbers<[1], [0], [0], [1], [0, 0, 1, 1], [], []>} : vector<2x32xf32>, vector<32x32xf32>, vector<2x32xf32> -> vector<2x32xf32>
    %174 = arith.addf %172, %173 : vector<2x32xf32>
    %175 = math.tanh %174 : vector<2x32xf32>
    %176 = vector.extract_strided_slice %9 {offsets = [8, 0], sizes = [2, 32], strides = [1, 1]} : vector<16x32xf32> to vector<2x32xf32>
    %cst_55 = arith.constant dense<0.000000e+00> : vector<2x32xf32>
    %177 = tpu.matmul %154, %17, %cst_55 {dimension_numbers = #tpu.dot_dimension_numbers<[1], [0], [0], [1], [0, 0, 1, 1], [], []>} : vector<2x32xf32>, vector<32x32xf32>, vector<2x32xf32> -> vector<2x32xf32>
    %178 = arith.addf %176, %177 : vector<2x32xf32>
    %179 = arith.negf %178 : vector<2x32xf32>
    %180 = math.exp %179 : vector<2x32xf32>
    %cst_56 = arith.constant 1.000000e+00 : f32
    %181 = vector.broadcast %cst_56 : f32 to vector<2x32xf32>
    %182 = arith.addf %181, %180 : vector<2x32xf32>
    %183 = arith.divf %181, %182 : vector<2x32xf32>
    %184 = arith.mulf %171, %152 : vector<2x32xf32>
    %185 = arith.mulf %163, %175 : vector<2x32xf32>
    %186 = arith.addf %184, %185 : vector<2x32xf32>
    %187 = math.tanh %186 : vector<2x32xf32>
    %188 = arith.mulf %183, %187 : vector<2x32xf32>
    %c8 = arith.constant 8 : index
    %c0_57 = arith.constant 0 : index
    %189 = vector.load %arg12[%c8, %c0_57] : memref<16x32xf32, #tpu.memory_space<vmem>>, vector<2x32xf32>
    tpu.vector_store %arg12[%c8, %c0_57], %188 {strides = array<i32>} : memref<16x32xf32, #tpu.memory_space<vmem>>, vector<2x32xf32>,
    %190 = vector.extract_strided_slice %6 {offsets = [10, 0], sizes = [2, 32], strides = [1, 1]} : vector<16x32xf32> to vector<2x32xf32>
    %cst_58 = arith.constant dense<0.000000e+00> : vector<2x32xf32>
    %191 = tpu.matmul %188, %11, %cst_58 {dimension_numbers = #tpu.dot_dimension_numbers<[1], [0], [0], [1], [0, 0, 1, 1], [], []>} : vector<2x32xf32>, vector<32x32xf32>, vector<2x32xf32> -> vector<2x32xf32>
    %192 = arith.addf %190, %191 : vector<2x32xf32>
    %193 = arith.negf %192 : vector<2x32xf32>
    %194 = math.exp %193 : vector<2x32xf32>
    %cst_59 = arith.constant 1.000000e+00 : f32
    %195 = vector.broadcast %cst_59 : f32 to vector<2x32xf32>
    %196 = arith.addf %195, %194 : vector<2x32xf32>
    %197 = arith.divf %195, %196 : vector<2x32xf32>
    %198 = vector.extract_strided_slice %7 {offsets = [10, 0], sizes = [2, 32], strides = [1, 1]} : vector<16x32xf32> to vector<2x32xf32>
    %cst_60 = arith.constant dense<0.000000e+00> : vector<2x32xf32>
    %199 = tpu.matmul %188, %13, %cst_60 {dimension_numbers = #tpu.dot_dimension_numbers<[1], [0], [0], [1], [0, 0, 1, 1], [], []>} : vector<2x32xf32>, vector<32x32xf32>, vector<2x32xf32> -> vector<2x32xf32>
    %200 = arith.addf %198, %199 : vector<2x32xf32>
    %201 = arith.negf %200 : vector<2x32xf32>
    %202 = math.exp %201 : vector<2x32xf32>
    %cst_61 = arith.constant 1.000000e+00 : f32
    %203 = vector.broadcast %cst_61 : f32 to vector<2x32xf32>
    %204 = arith.addf %203, %202 : vector<2x32xf32>
    %205 = arith.divf %203, %204 : vector<2x32xf32>
    %206 = vector.extract_strided_slice %8 {offsets = [10, 0], sizes = [2, 32], strides = [1, 1]} : vector<16x32xf32> to vector<2x32xf32>
    %cst_62 = arith.constant dense<0.000000e+00> : vector<2x32xf32>
    %207 = tpu.matmul %188, %15, %cst_62 {dimension_numbers = #tpu.dot_dimension_numbers<[1], [0], [0], [1], [0, 0, 1, 1], [], []>} : vector<2x32xf32>, vector<32x32xf32>, vector<2x32xf32> -> vector<2x32xf32>
    %208 = arith.addf %206, %207 : vector<2x32xf32>
    %209 = math.tanh %208 : vector<2x32xf32>
    %210 = vector.extract_strided_slice %9 {offsets = [10, 0], sizes = [2, 32], strides = [1, 1]} : vector<16x32xf32> to vector<2x32xf32>
    %cst_63 = arith.constant dense<0.000000e+00> : vector<2x32xf32>
    %211 = tpu.matmul %188, %17, %cst_63 {dimension_numbers = #tpu.dot_dimension_numbers<[1], [0], [0], [1], [0, 0, 1, 1], [], []>} : vector<2x32xf32>, vector<32x32xf32>, vector<2x32xf32> -> vector<2x32xf32>
    %212 = arith.addf %210, %211 : vector<2x32xf32>
    %213 = arith.negf %212 : vector<2x32xf32>
    %214 = math.exp %213 : vector<2x32xf32>
    %cst_64 = arith.constant 1.000000e+00 : f32
    %215 = vector.broadcast %cst_64 : f32 to vector<2x32xf32>
    %216 = arith.addf %215, %214 : vector<2x32xf32>
    %217 = arith.divf %215, %216 : vector<2x32xf32>
    %218 = arith.mulf %205, %186 : vector<2x32xf32>
    %219 = arith.mulf %197, %209 : vector<2x32xf32>
    %220 = arith.addf %218, %219 : vector<2x32xf32>
    %221 = math.tanh %220 : vector<2x32xf32>
    %222 = arith.mulf %217, %221 : vector<2x32xf32>
    %c10 = arith.constant 10 : index
    %c0_65 = arith.constant 0 : index
    %223 = vector.load %arg12[%c10, %c0_65] : memref<16x32xf32, #tpu.memory_space<vmem>>, vector<2x32xf32>
    tpu.vector_store %arg12[%c10, %c0_65], %222 {strides = array<i32>} : memref<16x32xf32, #tpu.memory_space<vmem>>, vector<2x32xf32>,
    %224 = vector.extract_strided_slice %6 {offsets = [12, 0], sizes = [2, 32], strides = [1, 1]} : vector<16x32xf32> to vector<2x32xf32>
    %cst_66 = arith.constant dense<0.000000e+00> : vector<2x32xf32>
    %225 = tpu.matmul %222, %11, %cst_66 {dimension_numbers = #tpu.dot_dimension_numbers<[1], [0], [0], [1], [0, 0, 1, 1], [], []>} : vector<2x32xf32>, vector<32x32xf32>, vector<2x32xf32> -> vector<2x32xf32>
    %226 = arith.addf %224, %225 : vector<2x32xf32>
    %227 = arith.negf %226 : vector<2x32xf32>
    %228 = math.exp %227 : vector<2x32xf32>
    %cst_67 = arith.constant 1.000000e+00 : f32
    %229 = vector.broadcast %cst_67 : f32 to vector<2x32xf32>
    %230 = arith.addf %229, %228 : vector<2x32xf32>
    %231 = arith.divf %229, %230 : vector<2x32xf32>
    %232 = vector.extract_strided_slice %7 {offsets = [12, 0], sizes = [2, 32], strides = [1, 1]} : vector<16x32xf32> to vector<2x32xf32>
    %cst_68 = arith.constant dense<0.000000e+00> : vector<2x32xf32>
    %233 = tpu.matmul %222, %13, %cst_68 {dimension_numbers = #tpu.dot_dimension_numbers<[1], [0], [0], [1], [0, 0, 1, 1], [], []>} : vector<2x32xf32>, vector<32x32xf32>, vector<2x32xf32> -> vector<2x32xf32>
    %234 = arith.addf %232, %233 : vector<2x32xf32>
    %235 = arith.negf %234 : vector<2x32xf32>
    %236 = math.exp %235 : vector<2x32xf32>
    %cst_69 = arith.constant 1.000000e+00 : f32
    %237 = vector.broadcast %cst_69 : f32 to vector<2x32xf32>
    %238 = arith.addf %237, %236 : vector<2x32xf32>
    %239 = arith.divf %237, %238 : vector<2x32xf32>
    %240 = vector.extract_strided_slice %8 {offsets = [12, 0], sizes = [2, 32], strides = [1, 1]} : vector<16x32xf32> to vector<2x32xf32>
    %cst_70 = arith.constant dense<0.000000e+00> : vector<2x32xf32>
    %241 = tpu.matmul %222, %15, %cst_70 {dimension_numbers = #tpu.dot_dimension_numbers<[1], [0], [0], [1], [0, 0, 1, 1], [], []>} : vector<2x32xf32>, vector<32x32xf32>, vector<2x32xf32> -> vector<2x32xf32>
    %242 = arith.addf %240, %241 : vector<2x32xf32>
    %243 = math.tanh %242 : vector<2x32xf32>
    %244 = vector.extract_strided_slice %9 {offsets = [12, 0], sizes = [2, 32], strides = [1, 1]} : vector<16x32xf32> to vector<2x32xf32>
    %cst_71 = arith.constant dense<0.000000e+00> : vector<2x32xf32>
    %245 = tpu.matmul %222, %17, %cst_71 {dimension_numbers = #tpu.dot_dimension_numbers<[1], [0], [0], [1], [0, 0, 1, 1], [], []>} : vector<2x32xf32>, vector<32x32xf32>, vector<2x32xf32> -> vector<2x32xf32>
    %246 = arith.addf %244, %245 : vector<2x32xf32>
    %247 = arith.negf %246 : vector<2x32xf32>
    %248 = math.exp %247 : vector<2x32xf32>
    %cst_72 = arith.constant 1.000000e+00 : f32
    %249 = vector.broadcast %cst_72 : f32 to vector<2x32xf32>
    %250 = arith.addf %249, %248 : vector<2x32xf32>
    %251 = arith.divf %249, %250 : vector<2x32xf32>
    %252 = arith.mulf %239, %220 : vector<2x32xf32>
    %253 = arith.mulf %231, %243 : vector<2x32xf32>
    %254 = arith.addf %252, %253 : vector<2x32xf32>
    %255 = math.tanh %254 : vector<2x32xf32>
    %256 = arith.mulf %251, %255 : vector<2x32xf32>
    %c12 = arith.constant 12 : index
    %c0_73 = arith.constant 0 : index
    %257 = vector.load %arg12[%c12, %c0_73] : memref<16x32xf32, #tpu.memory_space<vmem>>, vector<2x32xf32>
    tpu.vector_store %arg12[%c12, %c0_73], %256 {strides = array<i32>} : memref<16x32xf32, #tpu.memory_space<vmem>>, vector<2x32xf32>,
    %258 = vector.extract_strided_slice %6 {offsets = [14, 0], sizes = [2, 32], strides = [1, 1]} : vector<16x32xf32> to vector<2x32xf32>
    %cst_74 = arith.constant dense<0.000000e+00> : vector<2x32xf32>
    %259 = tpu.matmul %256, %11, %cst_74 {dimension_numbers = #tpu.dot_dimension_numbers<[1], [0], [0], [1], [0, 0, 1, 1], [], []>} : vector<2x32xf32>, vector<32x32xf32>, vector<2x32xf32> -> vector<2x32xf32>
    %260 = arith.addf %258, %259 : vector<2x32xf32>
    %261 = arith.negf %260 : vector<2x32xf32>
    %262 = math.exp %261 : vector<2x32xf32>
    %cst_75 = arith.constant 1.000000e+00 : f32
    %263 = vector.broadcast %cst_75 : f32 to vector<2x32xf32>
    %264 = arith.addf %263, %262 : vector<2x32xf32>
    %265 = arith.divf %263, %264 : vector<2x32xf32>
    %266 = vector.extract_strided_slice %7 {offsets = [14, 0], sizes = [2, 32], strides = [1, 1]} : vector<16x32xf32> to vector<2x32xf32>
    %cst_76 = arith.constant dense<0.000000e+00> : vector<2x32xf32>
    %267 = tpu.matmul %256, %13, %cst_76 {dimension_numbers = #tpu.dot_dimension_numbers<[1], [0], [0], [1], [0, 0, 1, 1], [], []>} : vector<2x32xf32>, vector<32x32xf32>, vector<2x32xf32> -> vector<2x32xf32>
    %268 = arith.addf %266, %267 : vector<2x32xf32>
    %269 = arith.negf %268 : vector<2x32xf32>
    %270 = math.exp %269 : vector<2x32xf32>
    %cst_77 = arith.constant 1.000000e+00 : f32
    %271 = vector.broadcast %cst_77 : f32 to vector<2x32xf32>
    %272 = arith.addf %271, %270 : vector<2x32xf32>
    %273 = arith.divf %271, %272 : vector<2x32xf32>
    %274 = vector.extract_strided_slice %8 {offsets = [14, 0], sizes = [2, 32], strides = [1, 1]} : vector<16x32xf32> to vector<2x32xf32>
    %cst_78 = arith.constant dense<0.000000e+00> : vector<2x32xf32>
    %275 = tpu.matmul %256, %15, %cst_78 {dimension_numbers = #tpu.dot_dimension_numbers<[1], [0], [0], [1], [0, 0, 1, 1], [], []>} : vector<2x32xf32>, vector<32x32xf32>, vector<2x32xf32> -> vector<2x32xf32>
    %276 = arith.addf %274, %275 : vector<2x32xf32>
    %277 = math.tanh %276 : vector<2x32xf32>
    %278 = vector.extract_strided_slice %9 {offsets = [14, 0], sizes = [2, 32], strides = [1, 1]} : vector<16x32xf32> to vector<2x32xf32>
    %cst_79 = arith.constant dense<0.000000e+00> : vector<2x32xf32>
    %279 = tpu.matmul %256, %17, %cst_79 {dimension_numbers = #tpu.dot_dimension_numbers<[1], [0], [0], [1], [0, 0, 1, 1], [], []>} : vector<2x32xf32>, vector<32x32xf32>, vector<2x32xf32> -> vector<2x32xf32>
    %280 = arith.addf %278, %279 : vector<2x32xf32>
    %281 = arith.negf %280 : vector<2x32xf32>
    %282 = math.exp %281 : vector<2x32xf32>
    %cst_80 = arith.constant 1.000000e+00 : f32
    %283 = vector.broadcast %cst_80 : f32 to vector<2x32xf32>
    %284 = arith.addf %283, %282 : vector<2x32xf32>
    %285 = arith.divf %283, %284 : vector<2x32xf32>
    %286 = arith.mulf %273, %254 : vector<2x32xf32>
    %287 = arith.mulf %265, %277 : vector<2x32xf32>
    %288 = arith.addf %286, %287 : vector<2x32xf32>
    %289 = math.tanh %288 : vector<2x32xf32>
    %290 = arith.mulf %285, %289 : vector<2x32xf32>
    %c14 = arith.constant 14 : index
    %c0_81 = arith.constant 0 : index
    %291 = vector.load %arg12[%c14, %c0_81] : memref<16x32xf32, #tpu.memory_space<vmem>>, vector<2x32xf32>
    tpu.vector_store %arg12[%c14, %c0_81], %290 {strides = array<i32>} : memref<16x32xf32, #tpu.memory_space<vmem>>, vector<2x32xf32>,
    %c0_82 = arith.constant 0 : index
    %c0_83 = arith.constant 0 : index
    %292 = vector.load %arg12[%c0_82, %c0_83] : memref<16x32xf32, #tpu.memory_space<vmem>>, vector<16x32xf32>
    %c0_84 = arith.constant 0 : index
    %c0_85 = arith.constant 0 : index
    %293 = vector.load %arg5[%c0_84, %c0_85] : memref<32x128xf32, #tpu.memory_space<vmem>>, vector<32x128xf32>
    %cst_86 = arith.constant dense<0.000000e+00> : vector<16x128xf32>
    %294 = tpu.matmul %292, %293, %cst_86 {dimension_numbers = #tpu.dot_dimension_numbers<[1], [0], [0], [1], [0, 0, 1, 1], [], []>} : vector<16x32xf32>, vector<32x128xf32>, vector<16x128xf32> -> vector<16x128xf32>
    %c0_87 = arith.constant 0 : index
    %c0_88 = arith.constant 0 : index
    %295 = vector.load %arg7[%c0_87, %c0_88] : memref<1x128xf32, #tpu.memory_space<vmem>>, vector<1x128xf32>
    %296 = vector.broadcast %295 : vector<1x128xf32> to vector<16x128xf32>
    %297 = arith.addf %294, %296 : vector<16x128xf32>
    %298 = vector.extract_strided_slice %297 {offsets = [0, 0], sizes = [16, 32], strides = [1, 1]} : vector<16x128xf32> to vector<16x32xf32>
    %299 = vector.extract_strided_slice %297 {offsets = [0, 32], sizes = [16, 32], strides = [1, 1]} : vector<16x128xf32> to vector<16x32xf32>
    %300 = vector.extract_strided_slice %297 {offsets = [0, 64], sizes = [16, 32], strides = [1, 1]} : vector<16x128xf32> to vector<16x32xf32>
    %301 = vector.extract_strided_slice %297 {offsets = [0, 96], sizes = [16, 32], strides = [1, 1]} : vector<16x128xf32> to vector<16x32xf32>
    %c0_89 = arith.constant 0 : index
    %c0_90 = arith.constant 0 : index
    %c0_91 = arith.constant 0 : index
    %302 = vector.load %arg6[%c0_89, %c0_90, %c0_91] : memref<4x32x32xf32, #tpu.memory_space<vmem>>, vector<1x32x32xf32>
    %303 = vector.shape_cast %302 : vector<1x32x32xf32> to vector<32x32xf32>
    %c1_92 = arith.constant 1 : index
    %c0_93 = arith.constant 0 : index
    %c0_94 = arith.constant 0 : index
    %304 = vector.load %arg6[%c1_92, %c0_93, %c0_94] : memref<4x32x32xf32, #tpu.memory_space<vmem>>, vector<1x32x32xf32>
    %305 = vector.shape_cast %304 : vector<1x32x32xf32> to vector<32x32xf32>
    %c2_95 = arith.constant 2 : index
    %c0_96 = arith.constant 0 : index
    %c0_97 = arith.constant 0 : index
    %306 = vector.load %arg6[%c2_95, %c0_96, %c0_97] : memref<4x32x32xf32, #tpu.memory_space<vmem>>, vector<1x32x32xf32>
    %307 = vector.shape_cast %306 : vector<1x32x32xf32> to vector<32x32xf32>
    %c3_98 = arith.constant 3 : index
    %c0_99 = arith.constant 0 : index
    %c0_100 = arith.constant 0 : index
    %308 = vector.load %arg6[%c3_98, %c0_99, %c0_100] : memref<4x32x32xf32, #tpu.memory_space<vmem>>, vector<1x32x32xf32>
    %309 = vector.shape_cast %308 : vector<1x32x32xf32> to vector<32x32xf32>
    %cst_101 = arith.constant 0.000000e+00 : f32
    %310 = vector.broadcast %cst_101 : f32 to vector<2x32xf32>
    %cst_102 = arith.constant 0.000000e+00 : f32
    %311 = vector.broadcast %cst_102 : f32 to vector<2x32xf32>
    %312 = vector.extract_strided_slice %298 {offsets = [0, 0], sizes = [2, 32], strides = [1, 1]} : vector<16x32xf32> to vector<2x32xf32>
    %cst_103 = arith.constant dense<0.000000e+00> : vector<2x32xf32>
    %313 = tpu.matmul %310, %303, %cst_103 {dimension_numbers = #tpu.dot_dimension_numbers<[1], [0], [0], [1], [0, 0, 1, 1], [], []>} : vector<2x32xf32>, vector<32x32xf32>, vector<2x32xf32> -> vector<2x32xf32>
    %314 = arith.addf %312, %313 : vector<2x32xf32>
    %315 = arith.negf %314 : vector<2x32xf32>
    %316 = math.exp %315 : vector<2x32xf32>
    %cst_104 = arith.constant 1.000000e+00 : f32
    %317 = vector.broadcast %cst_104 : f32 to vector<2x32xf32>
    %318 = arith.addf %317, %316 : vector<2x32xf32>
    %319 = arith.divf %317, %318 : vector<2x32xf32>
    %320 = vector.extract_strided_slice %299 {offsets = [0, 0], sizes = [2, 32], strides = [1, 1]} : vector<16x32xf32> to vector<2x32xf32>
    %cst_105 = arith.constant dense<0.000000e+00> : vector<2x32xf32>
    %321 = tpu.matmul %310, %305, %cst_105 {dimension_numbers = #tpu.dot_dimension_numbers<[1], [0], [0], [1], [0, 0, 1, 1], [], []>} : vector<2x32xf32>, vector<32x32xf32>, vector<2x32xf32> -> vector<2x32xf32>
    %322 = arith.addf %320, %321 : vector<2x32xf32>
    %323 = arith.negf %322 : vector<2x32xf32>
    %324 = math.exp %323 : vector<2x32xf32>
    %cst_106 = arith.constant 1.000000e+00 : f32
    %325 = vector.broadcast %cst_106 : f32 to vector<2x32xf32>
    %326 = arith.addf %325, %324 : vector<2x32xf32>
    %327 = arith.divf %325, %326 : vector<2x32xf32>
    %328 = vector.extract_strided_slice %300 {offsets = [0, 0], sizes = [2, 32], strides = [1, 1]} : vector<16x32xf32> to vector<2x32xf32>
    %cst_107 = arith.constant dense<0.000000e+00> : vector<2x32xf32>
    %329 = tpu.matmul %310, %307, %cst_107 {dimension_numbers = #tpu.dot_dimension_numbers<[1], [0], [0], [1], [0, 0, 1, 1], [], []>} : vector<2x32xf32>, vector<32x32xf32>, vector<2x32xf32> -> vector<2x32xf32>
    %330 = arith.addf %328, %329 : vector<2x32xf32>
    %331 = math.tanh %330 : vector<2x32xf32>
    %332 = vector.extract_strided_slice %301 {offsets = [0, 0], sizes = [2, 32], strides = [1, 1]} : vector<16x32xf32> to vector<2x32xf32>
    %cst_108 = arith.constant dense<0.000000e+00> : vector<2x32xf32>
    %333 = tpu.matmul %310, %309, %cst_108 {dimension_numbers = #tpu.dot_dimension_numbers<[1], [0], [0], [1], [0, 0, 1, 1], [], []>} : vector<2x32xf32>, vector<32x32xf32>, vector<2x32xf32> -> vector<2x32xf32>
    %334 = arith.addf %332, %333 : vector<2x32xf32>
    %335 = arith.negf %334 : vector<2x32xf32>
    %336 = math.exp %335 : vector<2x32xf32>
    %cst_109 = arith.constant 1.000000e+00 : f32
    %337 = vector.broadcast %cst_109 : f32 to vector<2x32xf32>
    %338 = arith.addf %337, %336 : vector<2x32xf32>
    %339 = arith.divf %337, %338 : vector<2x32xf32>
    %340 = arith.mulf %327, %311 : vector<2x32xf32>
    %341 = arith.mulf %319, %331 : vector<2x32xf32>
    %342 = arith.addf %340, %341 : vector<2x32xf32>
    %343 = math.tanh %342 : vector<2x32xf32>
    %344 = arith.mulf %339, %343 : vector<2x32xf32>
    %c0_110 = arith.constant 0 : index
    %c0_111 = arith.constant 0 : index
    %345 = vector.load %arg13[%c0_110, %c0_111] : memref<16x32xf32, #tpu.memory_space<vmem>>, vector<2x32xf32>
    tpu.vector_store %arg13[%c0_110, %c0_111], %344 {strides = array<i32>} : memref<16x32xf32, #tpu.memory_space<vmem>>, vector<2x32xf32>,
    %346 = vector.extract_strided_slice %298 {offsets = [2, 0], sizes = [2, 32], strides = [1, 1]} : vector<16x32xf32> to vector<2x32xf32>
    %cst_112 = arith.constant dense<0.000000e+00> : vector<2x32xf32>
    %347 = tpu.matmul %344, %303, %cst_112 {dimension_numbers = #tpu.dot_dimension_numbers<[1], [0], [0], [1], [0, 0, 1, 1], [], []>} : vector<2x32xf32>, vector<32x32xf32>, vector<2x32xf32> -> vector<2x32xf32>
    %348 = arith.addf %346, %347 : vector<2x32xf32>
    %349 = arith.negf %348 : vector<2x32xf32>
    %350 = math.exp %349 : vector<2x32xf32>
    %cst_113 = arith.constant 1.000000e+00 : f32
    %351 = vector.broadcast %cst_113 : f32 to vector<2x32xf32>
    %352 = arith.addf %351, %350 : vector<2x32xf32>
    %353 = arith.divf %351, %352 : vector<2x32xf32>
    %354 = vector.extract_strided_slice %299 {offsets = [2, 0], sizes = [2, 32], strides = [1, 1]} : vector<16x32xf32> to vector<2x32xf32>
    %cst_114 = arith.constant dense<0.000000e+00> : vector<2x32xf32>
    %355 = tpu.matmul %344, %305, %cst_114 {dimension_numbers = #tpu.dot_dimension_numbers<[1], [0], [0], [1], [0, 0, 1, 1], [], []>} : vector<2x32xf32>, vector<32x32xf32>, vector<2x32xf32> -> vector<2x32xf32>
    %356 = arith.addf %354, %355 : vector<2x32xf32>
    %357 = arith.negf %356 : vector<2x32xf32>
    %358 = math.exp %357 : vector<2x32xf32>
    %cst_115 = arith.constant 1.000000e+00 : f32
    %359 = vector.broadcast %cst_115 : f32 to vector<2x32xf32>
    %360 = arith.addf %359, %358 : vector<2x32xf32>
    %361 = arith.divf %359, %360 : vector<2x32xf32>
    %362 = vector.extract_strided_slice %300 {offsets = [2, 0], sizes = [2, 32], strides = [1, 1]} : vector<16x32xf32> to vector<2x32xf32>
    %cst_116 = arith.constant dense<0.000000e+00> : vector<2x32xf32>
    %363 = tpu.matmul %344, %307, %cst_116 {dimension_numbers = #tpu.dot_dimension_numbers<[1], [0], [0], [1], [0, 0, 1, 1], [], []>} : vector<2x32xf32>, vector<32x32xf32>, vector<2x32xf32> -> vector<2x32xf32>
    %364 = arith.addf %362, %363 : vector<2x32xf32>
    %365 = math.tanh %364 : vector<2x32xf32>
    %366 = vector.extract_strided_slice %301 {offsets = [2, 0], sizes = [2, 32], strides = [1, 1]} : vector<16x32xf32> to vector<2x32xf32>
    %cst_117 = arith.constant dense<0.000000e+00> : vector<2x32xf32>
    %367 = tpu.matmul %344, %309, %cst_117 {dimension_numbers = #tpu.dot_dimension_numbers<[1], [0], [0], [1], [0, 0, 1, 1], [], []>} : vector<2x32xf32>, vector<32x32xf32>, vector<2x32xf32> -> vector<2x32xf32>
    %368 = arith.addf %366, %367 : vector<2x32xf32>
    %369 = arith.negf %368 : vector<2x32xf32>
    %370 = math.exp %369 : vector<2x32xf32>
    %cst_118 = arith.constant 1.000000e+00 : f32
    %371 = vector.broadcast %cst_118 : f32 to vector<2x32xf32>
    %372 = arith.addf %371, %370 : vector<2x32xf32>
    %373 = arith.divf %371, %372 : vector<2x32xf32>
    %374 = arith.mulf %361, %342 : vector<2x32xf32>
    %375 = arith.mulf %353, %365 : vector<2x32xf32>
    %376 = arith.addf %374, %375 : vector<2x32xf32>
    %377 = math.tanh %376 : vector<2x32xf32>
    %378 = arith.mulf %373, %377 : vector<2x32xf32>
    %c2_119 = arith.constant 2 : index
    %c0_120 = arith.constant 0 : index
    %379 = vector.load %arg13[%c2_119, %c0_120] : memref<16x32xf32, #tpu.memory_space<vmem>>, vector<2x32xf32>
    tpu.vector_store %arg13[%c2_119, %c0_120], %378 {strides = array<i32>} : memref<16x32xf32, #tpu.memory_space<vmem>>, vector<2x32xf32>,
    %380 = vector.extract_strided_slice %298 {offsets = [4, 0], sizes = [2, 32], strides = [1, 1]} : vector<16x32xf32> to vector<2x32xf32>
    %cst_121 = arith.constant dense<0.000000e+00> : vector<2x32xf32>
    %381 = tpu.matmul %378, %303, %cst_121 {dimension_numbers = #tpu.dot_dimension_numbers<[1], [0], [0], [1], [0, 0, 1, 1], [], []>} : vector<2x32xf32>, vector<32x32xf32>, vector<2x32xf32> -> vector<2x32xf32>
    %382 = arith.addf %380, %381 : vector<2x32xf32>
    %383 = arith.negf %382 : vector<2x32xf32>
    %384 = math.exp %383 : vector<2x32xf32>
    %cst_122 = arith.constant 1.000000e+00 : f32
    %385 = vector.broadcast %cst_122 : f32 to vector<2x32xf32>
    %386 = arith.addf %385, %384 : vector<2x32xf32>
    %387 = arith.divf %385, %386 : vector<2x32xf32>
    %388 = vector.extract_strided_slice %299 {offsets = [4, 0], sizes = [2, 32], strides = [1, 1]} : vector<16x32xf32> to vector<2x32xf32>
    %cst_123 = arith.constant dense<0.000000e+00> : vector<2x32xf32>
    %389 = tpu.matmul %378, %305, %cst_123 {dimension_numbers = #tpu.dot_dimension_numbers<[1], [0], [0], [1], [0, 0, 1, 1], [], []>} : vector<2x32xf32>, vector<32x32xf32>, vector<2x32xf32> -> vector<2x32xf32>
    %390 = arith.addf %388, %389 : vector<2x32xf32>
    %391 = arith.negf %390 : vector<2x32xf32>
    %392 = math.exp %391 : vector<2x32xf32>
    %cst_124 = arith.constant 1.000000e+00 : f32
    %393 = vector.broadcast %cst_124 : f32 to vector<2x32xf32>
    %394 = arith.addf %393, %392 : vector<2x32xf32>
    %395 = arith.divf %393, %394 : vector<2x32xf32>
    %396 = vector.extract_strided_slice %300 {offsets = [4, 0], sizes = [2, 32], strides = [1, 1]} : vector<16x32xf32> to vector<2x32xf32>
    %cst_125 = arith.constant dense<0.000000e+00> : vector<2x32xf32>
    %397 = tpu.matmul %378, %307, %cst_125 {dimension_numbers = #tpu.dot_dimension_numbers<[1], [0], [0], [1], [0, 0, 1, 1], [], []>} : vector<2x32xf32>, vector<32x32xf32>, vector<2x32xf32> -> vector<2x32xf32>
    %398 = arith.addf %396, %397 : vector<2x32xf32>
    %399 = math.tanh %398 : vector<2x32xf32>
    %400 = vector.extract_strided_slice %301 {offsets = [4, 0], sizes = [2, 32], strides = [1, 1]} : vector<16x32xf32> to vector<2x32xf32>
    %cst_126 = arith.constant dense<0.000000e+00> : vector<2x32xf32>
    %401 = tpu.matmul %378, %309, %cst_126 {dimension_numbers = #tpu.dot_dimension_numbers<[1], [0], [0], [1], [0, 0, 1, 1], [], []>} : vector<2x32xf32>, vector<32x32xf32>, vector<2x32xf32> -> vector<2x32xf32>
    %402 = arith.addf %400, %401 : vector<2x32xf32>
    %403 = arith.negf %402 : vector<2x32xf32>
    %404 = math.exp %403 : vector<2x32xf32>
    %cst_127 = arith.constant 1.000000e+00 : f32
    %405 = vector.broadcast %cst_127 : f32 to vector<2x32xf32>
    %406 = arith.addf %405, %404 : vector<2x32xf32>
    %407 = arith.divf %405, %406 : vector<2x32xf32>
    %408 = arith.mulf %395, %376 : vector<2x32xf32>
    %409 = arith.mulf %387, %399 : vector<2x32xf32>
    %410 = arith.addf %408, %409 : vector<2x32xf32>
    %411 = math.tanh %410 : vector<2x32xf32>
    %412 = arith.mulf %407, %411 : vector<2x32xf32>
    %c4_128 = arith.constant 4 : index
    %c0_129 = arith.constant 0 : index
    %413 = vector.load %arg13[%c4_128, %c0_129] : memref<16x32xf32, #tpu.memory_space<vmem>>, vector<2x32xf32>
    tpu.vector_store %arg13[%c4_128, %c0_129], %412 {strides = array<i32>} : memref<16x32xf32, #tpu.memory_space<vmem>>, vector<2x32xf32>,
    %414 = vector.extract_strided_slice %298 {offsets = [6, 0], sizes = [2, 32], strides = [1, 1]} : vector<16x32xf32> to vector<2x32xf32>
    %cst_130 = arith.constant dense<0.000000e+00> : vector<2x32xf32>
    %415 = tpu.matmul %412, %303, %cst_130 {dimension_numbers = #tpu.dot_dimension_numbers<[1], [0], [0], [1], [0, 0, 1, 1], [], []>} : vector<2x32xf32>, vector<32x32xf32>, vector<2x32xf32> -> vector<2x32xf32>
    %416 = arith.addf %414, %415 : vector<2x32xf32>
    %417 = arith.negf %416 : vector<2x32xf32>
    %418 = math.exp %417 : vector<2x32xf32>
    %cst_131 = arith.constant 1.000000e+00 : f32
    %419 = vector.broadcast %cst_131 : f32 to vector<2x32xf32>
    %420 = arith.addf %419, %418 : vector<2x32xf32>
    %421 = arith.divf %419, %420 : vector<2x32xf32>
    %422 = vector.extract_strided_slice %299 {offsets = [6, 0], sizes = [2, 32], strides = [1, 1]} : vector<16x32xf32> to vector<2x32xf32>
    %cst_132 = arith.constant dense<0.000000e+00> : vector<2x32xf32>
    %423 = tpu.matmul %412, %305, %cst_132 {dimension_numbers = #tpu.dot_dimension_numbers<[1], [0], [0], [1], [0, 0, 1, 1], [], []>} : vector<2x32xf32>, vector<32x32xf32>, vector<2x32xf32> -> vector<2x32xf32>
    %424 = arith.addf %422, %423 : vector<2x32xf32>
    %425 = arith.negf %424 : vector<2x32xf32>
    %426 = math.exp %425 : vector<2x32xf32>
    %cst_133 = arith.constant 1.000000e+00 : f32
    %427 = vector.broadcast %cst_133 : f32 to vector<2x32xf32>
    %428 = arith.addf %427, %426 : vector<2x32xf32>
    %429 = arith.divf %427, %428 : vector<2x32xf32>
    %430 = vector.extract_strided_slice %300 {offsets = [6, 0], sizes = [2, 32], strides = [1, 1]} : vector<16x32xf32> to vector<2x32xf32>
    %cst_134 = arith.constant dense<0.000000e+00> : vector<2x32xf32>
    %431 = tpu.matmul %412, %307, %cst_134 {dimension_numbers = #tpu.dot_dimension_numbers<[1], [0], [0], [1], [0, 0, 1, 1], [], []>} : vector<2x32xf32>, vector<32x32xf32>, vector<2x32xf32> -> vector<2x32xf32>
    %432 = arith.addf %430, %431 : vector<2x32xf32>
    %433 = math.tanh %432 : vector<2x32xf32>
    %434 = vector.extract_strided_slice %301 {offsets = [6, 0], sizes = [2, 32], strides = [1, 1]} : vector<16x32xf32> to vector<2x32xf32>
    %cst_135 = arith.constant dense<0.000000e+00> : vector<2x32xf32>
    %435 = tpu.matmul %412, %309, %cst_135 {dimension_numbers = #tpu.dot_dimension_numbers<[1], [0], [0], [1], [0, 0, 1, 1], [], []>} : vector<2x32xf32>, vector<32x32xf32>, vector<2x32xf32> -> vector<2x32xf32>
    %436 = arith.addf %434, %435 : vector<2x32xf32>
    %437 = arith.negf %436 : vector<2x32xf32>
    %438 = math.exp %437 : vector<2x32xf32>
    %cst_136 = arith.constant 1.000000e+00 : f32
    %439 = vector.broadcast %cst_136 : f32 to vector<2x32xf32>
    %440 = arith.addf %439, %438 : vector<2x32xf32>
    %441 = arith.divf %439, %440 : vector<2x32xf32>
    %442 = arith.mulf %429, %410 : vector<2x32xf32>
    %443 = arith.mulf %421, %433 : vector<2x32xf32>
    %444 = arith.addf %442, %443 : vector<2x32xf32>
    %445 = math.tanh %444 : vector<2x32xf32>
    %446 = arith.mulf %441, %445 : vector<2x32xf32>
    %c6_137 = arith.constant 6 : index
    %c0_138 = arith.constant 0 : index
    %447 = vector.load %arg13[%c6_137, %c0_138] : memref<16x32xf32, #tpu.memory_space<vmem>>, vector<2x32xf32>
    tpu.vector_store %arg13[%c6_137, %c0_138], %446 {strides = array<i32>} : memref<16x32xf32, #tpu.memory_space<vmem>>, vector<2x32xf32>,
    %448 = vector.extract_strided_slice %298 {offsets = [8, 0], sizes = [2, 32], strides = [1, 1]} : vector<16x32xf32> to vector<2x32xf32>
    %cst_139 = arith.constant dense<0.000000e+00> : vector<2x32xf32>
    %449 = tpu.matmul %446, %303, %cst_139 {dimension_numbers = #tpu.dot_dimension_numbers<[1], [0], [0], [1], [0, 0, 1, 1], [], []>} : vector<2x32xf32>, vector<32x32xf32>, vector<2x32xf32> -> vector<2x32xf32>
    %450 = arith.addf %448, %449 : vector<2x32xf32>
    %451 = arith.negf %450 : vector<2x32xf32>
    %452 = math.exp %451 : vector<2x32xf32>
    %cst_140 = arith.constant 1.000000e+00 : f32
    %453 = vector.broadcast %cst_140 : f32 to vector<2x32xf32>
    %454 = arith.addf %453, %452 : vector<2x32xf32>
    %455 = arith.divf %453, %454 : vector<2x32xf32>
    %456 = vector.extract_strided_slice %299 {offsets = [8, 0], sizes = [2, 32], strides = [1, 1]} : vector<16x32xf32> to vector<2x32xf32>
    %cst_141 = arith.constant dense<0.000000e+00> : vector<2x32xf32>
    %457 = tpu.matmul %446, %305, %cst_141 {dimension_numbers = #tpu.dot_dimension_numbers<[1], [0], [0], [1], [0, 0, 1, 1], [], []>} : vector<2x32xf32>, vector<32x32xf32>, vector<2x32xf32> -> vector<2x32xf32>
    %458 = arith.addf %456, %457 : vector<2x32xf32>
    %459 = arith.negf %458 : vector<2x32xf32>
    %460 = math.exp %459 : vector<2x32xf32>
    %cst_142 = arith.constant 1.000000e+00 : f32
    %461 = vector.broadcast %cst_142 : f32 to vector<2x32xf32>
    %462 = arith.addf %461, %460 : vector<2x32xf32>
    %463 = arith.divf %461, %462 : vector<2x32xf32>
    %464 = vector.extract_strided_slice %300 {offsets = [8, 0], sizes = [2, 32], strides = [1, 1]} : vector<16x32xf32> to vector<2x32xf32>
    %cst_143 = arith.constant dense<0.000000e+00> : vector<2x32xf32>
    %465 = tpu.matmul %446, %307, %cst_143 {dimension_numbers = #tpu.dot_dimension_numbers<[1], [0], [0], [1], [0, 0, 1, 1], [], []>} : vector<2x32xf32>, vector<32x32xf32>, vector<2x32xf32> -> vector<2x32xf32>
    %466 = arith.addf %464, %465 : vector<2x32xf32>
    %467 = math.tanh %466 : vector<2x32xf32>
    %468 = vector.extract_strided_slice %301 {offsets = [8, 0], sizes = [2, 32], strides = [1, 1]} : vector<16x32xf32> to vector<2x32xf32>
    %cst_144 = arith.constant dense<0.000000e+00> : vector<2x32xf32>
    %469 = tpu.matmul %446, %309, %cst_144 {dimension_numbers = #tpu.dot_dimension_numbers<[1], [0], [0], [1], [0, 0, 1, 1], [], []>} : vector<2x32xf32>, vector<32x32xf32>, vector<2x32xf32> -> vector<2x32xf32>
    %470 = arith.addf %468, %469 : vector<2x32xf32>
    %471 = arith.negf %470 : vector<2x32xf32>
    %472 = math.exp %471 : vector<2x32xf32>
    %cst_145 = arith.constant 1.000000e+00 : f32
    %473 = vector.broadcast %cst_145 : f32 to vector<2x32xf32>
    %474 = arith.addf %473, %472 : vector<2x32xf32>
    %475 = arith.divf %473, %474 : vector<2x32xf32>
    %476 = arith.mulf %463, %444 : vector<2x32xf32>
    %477 = arith.mulf %455, %467 : vector<2x32xf32>
    %478 = arith.addf %476, %477 : vector<2x32xf32>
    %479 = math.tanh %478 : vector<2x32xf32>
    %480 = arith.mulf %475, %479 : vector<2x32xf32>
    %c8_146 = arith.constant 8 : index
    %c0_147 = arith.constant 0 : index
    %481 = vector.load %arg13[%c8_146, %c0_147] : memref<16x32xf32, #tpu.memory_space<vmem>>, vector<2x32xf32>
    tpu.vector_store %arg13[%c8_146, %c0_147], %480 {strides = array<i32>} : memref<16x32xf32, #tpu.memory_space<vmem>>, vector<2x32xf32>,
    %482 = vector.extract_strided_slice %298 {offsets = [10, 0], sizes = [2, 32], strides = [1, 1]} : vector<16x32xf32> to vector<2x32xf32>
    %cst_148 = arith.constant dense<0.000000e+00> : vector<2x32xf32>
    %483 = tpu.matmul %480, %303, %cst_148 {dimension_numbers = #tpu.dot_dimension_numbers<[1], [0], [0], [1], [0, 0, 1, 1], [], []>} : vector<2x32xf32>, vector<32x32xf32>, vector<2x32xf32> -> vector<2x32xf32>
    %484 = arith.addf %482, %483 : vector<2x32xf32>
    %485 = arith.negf %484 : vector<2x32xf32>
    %486 = math.exp %485 : vector<2x32xf32>
    %cst_149 = arith.constant 1.000000e+00 : f32
    %487 = vector.broadcast %cst_149 : f32 to vector<2x32xf32>
    %488 = arith.addf %487, %486 : vector<2x32xf32>
    %489 = arith.divf %487, %488 : vector<2x32xf32>
    %490 = vector.extract_strided_slice %299 {offsets = [10, 0], sizes = [2, 32], strides = [1, 1]} : vector<16x32xf32> to vector<2x32xf32>
    %cst_150 = arith.constant dense<0.000000e+00> : vector<2x32xf32>
    %491 = tpu.matmul %480, %305, %cst_150 {dimension_numbers = #tpu.dot_dimension_numbers<[1], [0], [0], [1], [0, 0, 1, 1], [], []>} : vector<2x32xf32>, vector<32x32xf32>, vector<2x32xf32> -> vector<2x32xf32>
    %492 = arith.addf %490, %491 : vector<2x32xf32>
    %493 = arith.negf %492 : vector<2x32xf32>
    %494 = math.exp %493 : vector<2x32xf32>
    %cst_151 = arith.constant 1.000000e+00 : f32
    %495 = vector.broadcast %cst_151 : f32 to vector<2x32xf32>
    %496 = arith.addf %495, %494 : vector<2x32xf32>
    %497 = arith.divf %495, %496 : vector<2x32xf32>
    %498 = vector.extract_strided_slice %300 {offsets = [10, 0], sizes = [2, 32], strides = [1, 1]} : vector<16x32xf32> to vector<2x32xf32>
    %cst_152 = arith.constant dense<0.000000e+00> : vector<2x32xf32>
    %499 = tpu.matmul %480, %307, %cst_152 {dimension_numbers = #tpu.dot_dimension_numbers<[1], [0], [0], [1], [0, 0, 1, 1], [], []>} : vector<2x32xf32>, vector<32x32xf32>, vector<2x32xf32> -> vector<2x32xf32>
    %500 = arith.addf %498, %499 : vector<2x32xf32>
    %501 = math.tanh %500 : vector<2x32xf32>
    %502 = vector.extract_strided_slice %301 {offsets = [10, 0], sizes = [2, 32], strides = [1, 1]} : vector<16x32xf32> to vector<2x32xf32>
    %cst_153 = arith.constant dense<0.000000e+00> : vector<2x32xf32>
    %503 = tpu.matmul %480, %309, %cst_153 {dimension_numbers = #tpu.dot_dimension_numbers<[1], [0], [0], [1], [0, 0, 1, 1], [], []>} : vector<2x32xf32>, vector<32x32xf32>, vector<2x32xf32> -> vector<2x32xf32>
    %504 = arith.addf %502, %503 : vector<2x32xf32>
    %505 = arith.negf %504 : vector<2x32xf32>
    %506 = math.exp %505 : vector<2x32xf32>
    %cst_154 = arith.constant 1.000000e+00 : f32
    %507 = vector.broadcast %cst_154 : f32 to vector<2x32xf32>
    %508 = arith.addf %507, %506 : vector<2x32xf32>
    %509 = arith.divf %507, %508 : vector<2x32xf32>
    %510 = arith.mulf %497, %478 : vector<2x32xf32>
    %511 = arith.mulf %489, %501 : vector<2x32xf32>
    %512 = arith.addf %510, %511 : vector<2x32xf32>
    %513 = math.tanh %512 : vector<2x32xf32>
    %514 = arith.mulf %509, %513 : vector<2x32xf32>
    %c10_155 = arith.constant 10 : index
    %c0_156 = arith.constant 0 : index
    %515 = vector.load %arg13[%c10_155, %c0_156] : memref<16x32xf32, #tpu.memory_space<vmem>>, vector<2x32xf32>
    tpu.vector_store %arg13[%c10_155, %c0_156], %514 {strides = array<i32>} : memref<16x32xf32, #tpu.memory_space<vmem>>, vector<2x32xf32>,
    %516 = vector.extract_strided_slice %298 {offsets = [12, 0], sizes = [2, 32], strides = [1, 1]} : vector<16x32xf32> to vector<2x32xf32>
    %cst_157 = arith.constant dense<0.000000e+00> : vector<2x32xf32>
    %517 = tpu.matmul %514, %303, %cst_157 {dimension_numbers = #tpu.dot_dimension_numbers<[1], [0], [0], [1], [0, 0, 1, 1], [], []>} : vector<2x32xf32>, vector<32x32xf32>, vector<2x32xf32> -> vector<2x32xf32>
    %518 = arith.addf %516, %517 : vector<2x32xf32>
    %519 = arith.negf %518 : vector<2x32xf32>
    %520 = math.exp %519 : vector<2x32xf32>
    %cst_158 = arith.constant 1.000000e+00 : f32
    %521 = vector.broadcast %cst_158 : f32 to vector<2x32xf32>
    %522 = arith.addf %521, %520 : vector<2x32xf32>
    %523 = arith.divf %521, %522 : vector<2x32xf32>
    %524 = vector.extract_strided_slice %299 {offsets = [12, 0], sizes = [2, 32], strides = [1, 1]} : vector<16x32xf32> to vector<2x32xf32>
    %cst_159 = arith.constant dense<0.000000e+00> : vector<2x32xf32>
    %525 = tpu.matmul %514, %305, %cst_159 {dimension_numbers = #tpu.dot_dimension_numbers<[1], [0], [0], [1], [0, 0, 1, 1], [], []>} : vector<2x32xf32>, vector<32x32xf32>, vector<2x32xf32> -> vector<2x32xf32>
    %526 = arith.addf %524, %525 : vector<2x32xf32>
    %527 = arith.negf %526 : vector<2x32xf32>
    %528 = math.exp %527 : vector<2x32xf32>
    %cst_160 = arith.constant 1.000000e+00 : f32
    %529 = vector.broadcast %cst_160 : f32 to vector<2x32xf32>
    %530 = arith.addf %529, %528 : vector<2x32xf32>
    %531 = arith.divf %529, %530 : vector<2x32xf32>
    %532 = vector.extract_strided_slice %300 {offsets = [12, 0], sizes = [2, 32], strides = [1, 1]} : vector<16x32xf32> to vector<2x32xf32>
    %cst_161 = arith.constant dense<0.000000e+00> : vector<2x32xf32>
    %533 = tpu.matmul %514, %307, %cst_161 {dimension_numbers = #tpu.dot_dimension_numbers<[1], [0], [0], [1], [0, 0, 1, 1], [], []>} : vector<2x32xf32>, vector<32x32xf32>, vector<2x32xf32> -> vector<2x32xf32>
    %534 = arith.addf %532, %533 : vector<2x32xf32>
    %535 = math.tanh %534 : vector<2x32xf32>
    %536 = vector.extract_strided_slice %301 {offsets = [12, 0], sizes = [2, 32], strides = [1, 1]} : vector<16x32xf32> to vector<2x32xf32>
    %cst_162 = arith.constant dense<0.000000e+00> : vector<2x32xf32>
    %537 = tpu.matmul %514, %309, %cst_162 {dimension_numbers = #tpu.dot_dimension_numbers<[1], [0], [0], [1], [0, 0, 1, 1], [], []>} : vector<2x32xf32>, vector<32x32xf32>, vector<2x32xf32> -> vector<2x32xf32>
    %538 = arith.addf %536, %537 : vector<2x32xf32>
    %539 = arith.negf %538 : vector<2x32xf32>
    %540 = math.exp %539 : vector<2x32xf32>
    %cst_163 = arith.constant 1.000000e+00 : f32
    %541 = vector.broadcast %cst_163 : f32 to vector<2x32xf32>
    %542 = arith.addf %541, %540 : vector<2x32xf32>
    %543 = arith.divf %541, %542 : vector<2x32xf32>
    %544 = arith.mulf %531, %512 : vector<2x32xf32>
    %545 = arith.mulf %523, %535 : vector<2x32xf32>
    %546 = arith.addf %544, %545 : vector<2x32xf32>
    %547 = math.tanh %546 : vector<2x32xf32>
    %548 = arith.mulf %543, %547 : vector<2x32xf32>
    %c12_164 = arith.constant 12 : index
    %c0_165 = arith.constant 0 : index
    %549 = vector.load %arg13[%c12_164, %c0_165] : memref<16x32xf32, #tpu.memory_space<vmem>>, vector<2x32xf32>
    tpu.vector_store %arg13[%c12_164, %c0_165], %548 {strides = array<i32>} : memref<16x32xf32, #tpu.memory_space<vmem>>, vector<2x32xf32>,
    %550 = vector.extract_strided_slice %298 {offsets = [14, 0], sizes = [2, 32], strides = [1, 1]} : vector<16x32xf32> to vector<2x32xf32>
    %cst_166 = arith.constant dense<0.000000e+00> : vector<2x32xf32>
    %551 = tpu.matmul %548, %303, %cst_166 {dimension_numbers = #tpu.dot_dimension_numbers<[1], [0], [0], [1], [0, 0, 1, 1], [], []>} : vector<2x32xf32>, vector<32x32xf32>, vector<2x32xf32> -> vector<2x32xf32>
    %552 = arith.addf %550, %551 : vector<2x32xf32>
    %553 = arith.negf %552 : vector<2x32xf32>
    %554 = math.exp %553 : vector<2x32xf32>
    %cst_167 = arith.constant 1.000000e+00 : f32
    %555 = vector.broadcast %cst_167 : f32 to vector<2x32xf32>
    %556 = arith.addf %555, %554 : vector<2x32xf32>
    %557 = arith.divf %555, %556 : vector<2x32xf32>
    %558 = vector.extract_strided_slice %299 {offsets = [14, 0], sizes = [2, 32], strides = [1, 1]} : vector<16x32xf32> to vector<2x32xf32>
    %cst_168 = arith.constant dense<0.000000e+00> : vector<2x32xf32>
    %559 = tpu.matmul %548, %305, %cst_168 {dimension_numbers = #tpu.dot_dimension_numbers<[1], [0], [0], [1], [0, 0, 1, 1], [], []>} : vector<2x32xf32>, vector<32x32xf32>, vector<2x32xf32> -> vector<2x32xf32>
    %560 = arith.addf %558, %559 : vector<2x32xf32>
    %561 = arith.negf %560 : vector<2x32xf32>
    %562 = math.exp %561 : vector<2x32xf32>
    %cst_169 = arith.constant 1.000000e+00 : f32
    %563 = vector.broadcast %cst_169 : f32 to vector<2x32xf32>
    %564 = arith.addf %563, %562 : vector<2x32xf32>
    %565 = arith.divf %563, %564 : vector<2x32xf32>
    %566 = vector.extract_strided_slice %300 {offsets = [14, 0], sizes = [2, 32], strides = [1, 1]} : vector<16x32xf32> to vector<2x32xf32>
    %cst_170 = arith.constant dense<0.000000e+00> : vector<2x32xf32>
    %567 = tpu.matmul %548, %307, %cst_170 {dimension_numbers = #tpu.dot_dimension_numbers<[1], [0], [0], [1], [0, 0, 1, 1], [], []>} : vector<2x32xf32>, vector<32x32xf32>, vector<2x32xf32> -> vector<2x32xf32>
    %568 = arith.addf %566, %567 : vector<2x32xf32>
    %569 = math.tanh %568 : vector<2x32xf32>
    %570 = vector.extract_strided_slice %301 {offsets = [14, 0], sizes = [2, 32], strides = [1, 1]} : vector<16x32xf32> to vector<2x32xf32>
    %cst_171 = arith.constant dense<0.000000e+00> : vector<2x32xf32>
    %571 = tpu.matmul %548, %309, %cst_171 {dimension_numbers = #tpu.dot_dimension_numbers<[1], [0], [0], [1], [0, 0, 1, 1], [], []>} : vector<2x32xf32>, vector<32x32xf32>, vector<2x32xf32> -> vector<2x32xf32>
    %572 = arith.addf %570, %571 : vector<2x32xf32>
    %573 = arith.negf %572 : vector<2x32xf32>
    %574 = math.exp %573 : vector<2x32xf32>
    %cst_172 = arith.constant 1.000000e+00 : f32
    %575 = vector.broadcast %cst_172 : f32 to vector<2x32xf32>
    %576 = arith.addf %575, %574 : vector<2x32xf32>
    %577 = arith.divf %575, %576 : vector<2x32xf32>
    %578 = arith.mulf %565, %546 : vector<2x32xf32>
    %579 = arith.mulf %557, %569 : vector<2x32xf32>
    %580 = arith.addf %578, %579 : vector<2x32xf32>
    %581 = math.tanh %580 : vector<2x32xf32>
    %582 = arith.mulf %577, %581 : vector<2x32xf32>
    %c14_173 = arith.constant 14 : index
    %c0_174 = arith.constant 0 : index
    %583 = vector.load %arg13[%c14_173, %c0_174] : memref<16x32xf32, #tpu.memory_space<vmem>>, vector<2x32xf32>
    tpu.vector_store %arg13[%c14_173, %c0_174], %582 {strides = array<i32>} : memref<16x32xf32, #tpu.memory_space<vmem>>, vector<2x32xf32>,
    %c0_175 = arith.constant 0 : index
    %c0_176 = arith.constant 0 : index
    %584 = vector.load %arg13[%c0_175, %c0_176] : memref<16x32xf32, #tpu.memory_space<vmem>>, vector<16x32xf32>
    %c0_177 = arith.constant 0 : index
    %c0_178 = arith.constant 0 : index
    %585 = vector.load %arg8[%c0_177, %c0_178] : memref<32x128xf32, #tpu.memory_space<vmem>>, vector<32x128xf32>
    %cst_179 = arith.constant dense<0.000000e+00> : vector<16x128xf32>
    %586 = tpu.matmul %584, %585, %cst_179 {dimension_numbers = #tpu.dot_dimension_numbers<[1], [0], [0], [1], [0, 0, 1, 1], [], []>} : vector<16x32xf32>, vector<32x128xf32>, vector<16x128xf32> -> vector<16x128xf32>
    %c0_180 = arith.constant 0 : index
    %c0_181 = arith.constant 0 : index
    %587 = vector.load %arg10[%c0_180, %c0_181] : memref<1x128xf32, #tpu.memory_space<vmem>>, vector<1x128xf32>
    %588 = vector.broadcast %587 : vector<1x128xf32> to vector<16x128xf32>
    %589 = arith.addf %586, %588 : vector<16x128xf32>
    %590 = vector.extract_strided_slice %589 {offsets = [0, 0], sizes = [16, 32], strides = [1, 1]} : vector<16x128xf32> to vector<16x32xf32>
    %591 = vector.extract_strided_slice %589 {offsets = [0, 32], sizes = [16, 32], strides = [1, 1]} : vector<16x128xf32> to vector<16x32xf32>
    %592 = vector.extract_strided_slice %589 {offsets = [0, 64], sizes = [16, 32], strides = [1, 1]} : vector<16x128xf32> to vector<16x32xf32>
    %593 = vector.extract_strided_slice %589 {offsets = [0, 96], sizes = [16, 32], strides = [1, 1]} : vector<16x128xf32> to vector<16x32xf32>
    %c0_182 = arith.constant 0 : index
    %c0_183 = arith.constant 0 : index
    %c0_184 = arith.constant 0 : index
    %594 = vector.load %arg9[%c0_182, %c0_183, %c0_184] : memref<4x32x32xf32, #tpu.memory_space<vmem>>, vector<1x32x32xf32>
    %595 = vector.shape_cast %594 : vector<1x32x32xf32> to vector<32x32xf32>
    %c1_185 = arith.constant 1 : index
    %c0_186 = arith.constant 0 : index
    %c0_187 = arith.constant 0 : index
    %596 = vector.load %arg9[%c1_185, %c0_186, %c0_187] : memref<4x32x32xf32, #tpu.memory_space<vmem>>, vector<1x32x32xf32>
    %597 = vector.shape_cast %596 : vector<1x32x32xf32> to vector<32x32xf32>
    %c2_188 = arith.constant 2 : index
    %c0_189 = arith.constant 0 : index
    %c0_190 = arith.constant 0 : index
    %598 = vector.load %arg9[%c2_188, %c0_189, %c0_190] : memref<4x32x32xf32, #tpu.memory_space<vmem>>, vector<1x32x32xf32>
    %599 = vector.shape_cast %598 : vector<1x32x32xf32> to vector<32x32xf32>
    %c3_191 = arith.constant 3 : index
    %c0_192 = arith.constant 0 : index
    %c0_193 = arith.constant 0 : index
    %600 = vector.load %arg9[%c3_191, %c0_192, %c0_193] : memref<4x32x32xf32, #tpu.memory_space<vmem>>, vector<1x32x32xf32>
    %601 = vector.shape_cast %600 : vector<1x32x32xf32> to vector<32x32xf32>
    %cst_194 = arith.constant 0.000000e+00 : f32
    %602 = vector.broadcast %cst_194 : f32 to vector<2x32xf32>
    %cst_195 = arith.constant 0.000000e+00 : f32
    %603 = vector.broadcast %cst_195 : f32 to vector<2x32xf32>
    %604 = vector.extract_strided_slice %590 {offsets = [0, 0], sizes = [2, 32], strides = [1, 1]} : vector<16x32xf32> to vector<2x32xf32>
    %cst_196 = arith.constant dense<0.000000e+00> : vector<2x32xf32>
    %605 = tpu.matmul %602, %595, %cst_196 {dimension_numbers = #tpu.dot_dimension_numbers<[1], [0], [0], [1], [0, 0, 1, 1], [], []>} : vector<2x32xf32>, vector<32x32xf32>, vector<2x32xf32> -> vector<2x32xf32>
    %606 = arith.addf %604, %605 : vector<2x32xf32>
    %607 = arith.negf %606 : vector<2x32xf32>
    %608 = math.exp %607 : vector<2x32xf32>
    %cst_197 = arith.constant 1.000000e+00 : f32
    %609 = vector.broadcast %cst_197 : f32 to vector<2x32xf32>
    %610 = arith.addf %609, %608 : vector<2x32xf32>
    %611 = arith.divf %609, %610 : vector<2x32xf32>
    %612 = vector.extract_strided_slice %591 {offsets = [0, 0], sizes = [2, 32], strides = [1, 1]} : vector<16x32xf32> to vector<2x32xf32>
    %cst_198 = arith.constant dense<0.000000e+00> : vector<2x32xf32>
    %613 = tpu.matmul %602, %597, %cst_198 {dimension_numbers = #tpu.dot_dimension_numbers<[1], [0], [0], [1], [0, 0, 1, 1], [], []>} : vector<2x32xf32>, vector<32x32xf32>, vector<2x32xf32> -> vector<2x32xf32>
    %614 = arith.addf %612, %613 : vector<2x32xf32>
    %615 = arith.negf %614 : vector<2x32xf32>
    %616 = math.exp %615 : vector<2x32xf32>
    %cst_199 = arith.constant 1.000000e+00 : f32
    %617 = vector.broadcast %cst_199 : f32 to vector<2x32xf32>
    %618 = arith.addf %617, %616 : vector<2x32xf32>
    %619 = arith.divf %617, %618 : vector<2x32xf32>
    %620 = vector.extract_strided_slice %592 {offsets = [0, 0], sizes = [2, 32], strides = [1, 1]} : vector<16x32xf32> to vector<2x32xf32>
    %cst_200 = arith.constant dense<0.000000e+00> : vector<2x32xf32>
    %621 = tpu.matmul %602, %599, %cst_200 {dimension_numbers = #tpu.dot_dimension_numbers<[1], [0], [0], [1], [0, 0, 1, 1], [], []>} : vector<2x32xf32>, vector<32x32xf32>, vector<2x32xf32> -> vector<2x32xf32>
    %622 = arith.addf %620, %621 : vector<2x32xf32>
    %623 = math.tanh %622 : vector<2x32xf32>
    %624 = vector.extract_strided_slice %593 {offsets = [0, 0], sizes = [2, 32], strides = [1, 1]} : vector<16x32xf32> to vector<2x32xf32>
    %cst_201 = arith.constant dense<0.000000e+00> : vector<2x32xf32>
    %625 = tpu.matmul %602, %601, %cst_201 {dimension_numbers = #tpu.dot_dimension_numbers<[1], [0], [0], [1], [0, 0, 1, 1], [], []>} : vector<2x32xf32>, vector<32x32xf32>, vector<2x32xf32> -> vector<2x32xf32>
    %626 = arith.addf %624, %625 : vector<2x32xf32>
    %627 = arith.negf %626 : vector<2x32xf32>
    %628 = math.exp %627 : vector<2x32xf32>
    %cst_202 = arith.constant 1.000000e+00 : f32
    %629 = vector.broadcast %cst_202 : f32 to vector<2x32xf32>
    %630 = arith.addf %629, %628 : vector<2x32xf32>
    %631 = arith.divf %629, %630 : vector<2x32xf32>
    %632 = arith.mulf %619, %603 : vector<2x32xf32>
    %633 = arith.mulf %611, %623 : vector<2x32xf32>
    %634 = arith.addf %632, %633 : vector<2x32xf32>
    %635 = math.tanh %634 : vector<2x32xf32>
    %636 = arith.mulf %631, %635 : vector<2x32xf32>
    %c0_203 = arith.constant 0 : index
    %c0_204 = arith.constant 0 : index
    %637 = vector.load %arg11[%c0_203, %c0_204] : memref<16x32xf32, #tpu.memory_space<vmem>>, vector<2x32xf32>
    tpu.vector_store %arg11[%c0_203, %c0_204], %636 {strides = array<i32>} : memref<16x32xf32, #tpu.memory_space<vmem>>, vector<2x32xf32>,
    %638 = vector.extract_strided_slice %590 {offsets = [2, 0], sizes = [2, 32], strides = [1, 1]} : vector<16x32xf32> to vector<2x32xf32>
    %cst_205 = arith.constant dense<0.000000e+00> : vector<2x32xf32>
    %639 = tpu.matmul %636, %595, %cst_205 {dimension_numbers = #tpu.dot_dimension_numbers<[1], [0], [0], [1], [0, 0, 1, 1], [], []>} : vector<2x32xf32>, vector<32x32xf32>, vector<2x32xf32> -> vector<2x32xf32>
    %640 = arith.addf %638, %639 : vector<2x32xf32>
    %641 = arith.negf %640 : vector<2x32xf32>
    %642 = math.exp %641 : vector<2x32xf32>
    %cst_206 = arith.constant 1.000000e+00 : f32
    %643 = vector.broadcast %cst_206 : f32 to vector<2x32xf32>
    %644 = arith.addf %643, %642 : vector<2x32xf32>
    %645 = arith.divf %643, %644 : vector<2x32xf32>
    %646 = vector.extract_strided_slice %591 {offsets = [2, 0], sizes = [2, 32], strides = [1, 1]} : vector<16x32xf32> to vector<2x32xf32>
    %cst_207 = arith.constant dense<0.000000e+00> : vector<2x32xf32>
    %647 = tpu.matmul %636, %597, %cst_207 {dimension_numbers = #tpu.dot_dimension_numbers<[1], [0], [0], [1], [0, 0, 1, 1], [], []>} : vector<2x32xf32>, vector<32x32xf32>, vector<2x32xf32> -> vector<2x32xf32>
    %648 = arith.addf %646, %647 : vector<2x32xf32>
    %649 = arith.negf %648 : vector<2x32xf32>
    %650 = math.exp %649 : vector<2x32xf32>
    %cst_208 = arith.constant 1.000000e+00 : f32
    %651 = vector.broadcast %cst_208 : f32 to vector<2x32xf32>
    %652 = arith.addf %651, %650 : vector<2x32xf32>
    %653 = arith.divf %651, %652 : vector<2x32xf32>
    %654 = vector.extract_strided_slice %592 {offsets = [2, 0], sizes = [2, 32], strides = [1, 1]} : vector<16x32xf32> to vector<2x32xf32>
    %cst_209 = arith.constant dense<0.000000e+00> : vector<2x32xf32>
    %655 = tpu.matmul %636, %599, %cst_209 {dimension_numbers = #tpu.dot_dimension_numbers<[1], [0], [0], [1], [0, 0, 1, 1], [], []>} : vector<2x32xf32>, vector<32x32xf32>, vector<2x32xf32> -> vector<2x32xf32>
    %656 = arith.addf %654, %655 : vector<2x32xf32>
    %657 = math.tanh %656 : vector<2x32xf32>
    %658 = vector.extract_strided_slice %593 {offsets = [2, 0], sizes = [2, 32], strides = [1, 1]} : vector<16x32xf32> to vector<2x32xf32>
    %cst_210 = arith.constant dense<0.000000e+00> : vector<2x32xf32>
    %659 = tpu.matmul %636, %601, %cst_210 {dimension_numbers = #tpu.dot_dimension_numbers<[1], [0], [0], [1], [0, 0, 1, 1], [], []>} : vector<2x32xf32>, vector<32x32xf32>, vector<2x32xf32> -> vector<2x32xf32>
    %660 = arith.addf %658, %659 : vector<2x32xf32>
    %661 = arith.negf %660 : vector<2x32xf32>
    %662 = math.exp %661 : vector<2x32xf32>
    %cst_211 = arith.constant 1.000000e+00 : f32
    %663 = vector.broadcast %cst_211 : f32 to vector<2x32xf32>
    %664 = arith.addf %663, %662 : vector<2x32xf32>
    %665 = arith.divf %663, %664 : vector<2x32xf32>
    %666 = arith.mulf %653, %634 : vector<2x32xf32>
    %667 = arith.mulf %645, %657 : vector<2x32xf32>
    %668 = arith.addf %666, %667 : vector<2x32xf32>
    %669 = math.tanh %668 : vector<2x32xf32>
    %670 = arith.mulf %665, %669 : vector<2x32xf32>
    %c2_212 = arith.constant 2 : index
    %c0_213 = arith.constant 0 : index
    %671 = vector.load %arg11[%c2_212, %c0_213] : memref<16x32xf32, #tpu.memory_space<vmem>>, vector<2x32xf32>
    tpu.vector_store %arg11[%c2_212, %c0_213], %670 {strides = array<i32>} : memref<16x32xf32, #tpu.memory_space<vmem>>, vector<2x32xf32>,
    %672 = vector.extract_strided_slice %590 {offsets = [4, 0], sizes = [2, 32], strides = [1, 1]} : vector<16x32xf32> to vector<2x32xf32>
    %cst_214 = arith.constant dense<0.000000e+00> : vector<2x32xf32>
    %673 = tpu.matmul %670, %595, %cst_214 {dimension_numbers = #tpu.dot_dimension_numbers<[1], [0], [0], [1], [0, 0, 1, 1], [], []>} : vector<2x32xf32>, vector<32x32xf32>, vector<2x32xf32> -> vector<2x32xf32>
    %674 = arith.addf %672, %673 : vector<2x32xf32>
    %675 = arith.negf %674 : vector<2x32xf32>
    %676 = math.exp %675 : vector<2x32xf32>
    %cst_215 = arith.constant 1.000000e+00 : f32
    %677 = vector.broadcast %cst_215 : f32 to vector<2x32xf32>
    %678 = arith.addf %677, %676 : vector<2x32xf32>
    %679 = arith.divf %677, %678 : vector<2x32xf32>
    %680 = vector.extract_strided_slice %591 {offsets = [4, 0], sizes = [2, 32], strides = [1, 1]} : vector<16x32xf32> to vector<2x32xf32>
    %cst_216 = arith.constant dense<0.000000e+00> : vector<2x32xf32>
    %681 = tpu.matmul %670, %597, %cst_216 {dimension_numbers = #tpu.dot_dimension_numbers<[1], [0], [0], [1], [0, 0, 1, 1], [], []>} : vector<2x32xf32>, vector<32x32xf32>, vector<2x32xf32> -> vector<2x32xf32>
    %682 = arith.addf %680, %681 : vector<2x32xf32>
    %683 = arith.negf %682 : vector<2x32xf32>
    %684 = math.exp %683 : vector<2x32xf32>
    %cst_217 = arith.constant 1.000000e+00 : f32
    %685 = vector.broadcast %cst_217 : f32 to vector<2x32xf32>
    %686 = arith.addf %685, %684 : vector<2x32xf32>
    %687 = arith.divf %685, %686 : vector<2x32xf32>
    %688 = vector.extract_strided_slice %592 {offsets = [4, 0], sizes = [2, 32], strides = [1, 1]} : vector<16x32xf32> to vector<2x32xf32>
    %cst_218 = arith.constant dense<0.000000e+00> : vector<2x32xf32>
    %689 = tpu.matmul %670, %599, %cst_218 {dimension_numbers = #tpu.dot_dimension_numbers<[1], [0], [0], [1], [0, 0, 1, 1], [], []>} : vector<2x32xf32>, vector<32x32xf32>, vector<2x32xf32> -> vector<2x32xf32>
    %690 = arith.addf %688, %689 : vector<2x32xf32>
    %691 = math.tanh %690 : vector<2x32xf32>
    %692 = vector.extract_strided_slice %593 {offsets = [4, 0], sizes = [2, 32], strides = [1, 1]} : vector<16x32xf32> to vector<2x32xf32>
    %cst_219 = arith.constant dense<0.000000e+00> : vector<2x32xf32>
    %693 = tpu.matmul %670, %601, %cst_219 {dimension_numbers = #tpu.dot_dimension_numbers<[1], [0], [0], [1], [0, 0, 1, 1], [], []>} : vector<2x32xf32>, vector<32x32xf32>, vector<2x32xf32> -> vector<2x32xf32>
    %694 = arith.addf %692, %693 : vector<2x32xf32>
    %695 = arith.negf %694 : vector<2x32xf32>
    %696 = math.exp %695 : vector<2x32xf32>
    %cst_220 = arith.constant 1.000000e+00 : f32
    %697 = vector.broadcast %cst_220 : f32 to vector<2x32xf32>
    %698 = arith.addf %697, %696 : vector<2x32xf32>
    %699 = arith.divf %697, %698 : vector<2x32xf32>
    %700 = arith.mulf %687, %668 : vector<2x32xf32>
    %701 = arith.mulf %679, %691 : vector<2x32xf32>
    %702 = arith.addf %700, %701 : vector<2x32xf32>
    %703 = math.tanh %702 : vector<2x32xf32>
    %704 = arith.mulf %699, %703 : vector<2x32xf32>
    %c4_221 = arith.constant 4 : index
    %c0_222 = arith.constant 0 : index
    %705 = vector.load %arg11[%c4_221, %c0_222] : memref<16x32xf32, #tpu.memory_space<vmem>>, vector<2x32xf32>
    tpu.vector_store %arg11[%c4_221, %c0_222], %704 {strides = array<i32>} : memref<16x32xf32, #tpu.memory_space<vmem>>, vector<2x32xf32>,
    %706 = vector.extract_strided_slice %590 {offsets = [6, 0], sizes = [2, 32], strides = [1, 1]} : vector<16x32xf32> to vector<2x32xf32>
    %cst_223 = arith.constant dense<0.000000e+00> : vector<2x32xf32>
    %707 = tpu.matmul %704, %595, %cst_223 {dimension_numbers = #tpu.dot_dimension_numbers<[1], [0], [0], [1], [0, 0, 1, 1], [], []>} : vector<2x32xf32>, vector<32x32xf32>, vector<2x32xf32> -> vector<2x32xf32>
    %708 = arith.addf %706, %707 : vector<2x32xf32>
    %709 = arith.negf %708 : vector<2x32xf32>
    %710 = math.exp %709 : vector<2x32xf32>
    %cst_224 = arith.constant 1.000000e+00 : f32
    %711 = vector.broadcast %cst_224 : f32 to vector<2x32xf32>
    %712 = arith.addf %711, %710 : vector<2x32xf32>
    %713 = arith.divf %711, %712 : vector<2x32xf32>
    %714 = vector.extract_strided_slice %591 {offsets = [6, 0], sizes = [2, 32], strides = [1, 1]} : vector<16x32xf32> to vector<2x32xf32>
    %cst_225 = arith.constant dense<0.000000e+00> : vector<2x32xf32>
    %715 = tpu.matmul %704, %597, %cst_225 {dimension_numbers = #tpu.dot_dimension_numbers<[1], [0], [0], [1], [0, 0, 1, 1], [], []>} : vector<2x32xf32>, vector<32x32xf32>, vector<2x32xf32> -> vector<2x32xf32>
    %716 = arith.addf %714, %715 : vector<2x32xf32>
    %717 = arith.negf %716 : vector<2x32xf32>
    %718 = math.exp %717 : vector<2x32xf32>
    %cst_226 = arith.constant 1.000000e+00 : f32
    %719 = vector.broadcast %cst_226 : f32 to vector<2x32xf32>
    %720 = arith.addf %719, %718 : vector<2x32xf32>
    %721 = arith.divf %719, %720 : vector<2x32xf32>
    %722 = vector.extract_strided_slice %592 {offsets = [6, 0], sizes = [2, 32], strides = [1, 1]} : vector<16x32xf32> to vector<2x32xf32>
    %cst_227 = arith.constant dense<0.000000e+00> : vector<2x32xf32>
    %723 = tpu.matmul %704, %599, %cst_227 {dimension_numbers = #tpu.dot_dimension_numbers<[1], [0], [0], [1], [0, 0, 1, 1], [], []>} : vector<2x32xf32>, vector<32x32xf32>, vector<2x32xf32> -> vector<2x32xf32>
    %724 = arith.addf %722, %723 : vector<2x32xf32>
    %725 = math.tanh %724 : vector<2x32xf32>
    %726 = vector.extract_strided_slice %593 {offsets = [6, 0], sizes = [2, 32], strides = [1, 1]} : vector<16x32xf32> to vector<2x32xf32>
    %cst_228 = arith.constant dense<0.000000e+00> : vector<2x32xf32>
    %727 = tpu.matmul %704, %601, %cst_228 {dimension_numbers = #tpu.dot_dimension_numbers<[1], [0], [0], [1], [0, 0, 1, 1], [], []>} : vector<2x32xf32>, vector<32x32xf32>, vector<2x32xf32> -> vector<2x32xf32>
    %728 = arith.addf %726, %727 : vector<2x32xf32>
    %729 = arith.negf %728 : vector<2x32xf32>
    %730 = math.exp %729 : vector<2x32xf32>
    %cst_229 = arith.constant 1.000000e+00 : f32
    %731 = vector.broadcast %cst_229 : f32 to vector<2x32xf32>
    %732 = arith.addf %731, %730 : vector<2x32xf32>
    %733 = arith.divf %731, %732 : vector<2x32xf32>
    %734 = arith.mulf %721, %702 : vector<2x32xf32>
    %735 = arith.mulf %713, %725 : vector<2x32xf32>
    %736 = arith.addf %734, %735 : vector<2x32xf32>
    %737 = math.tanh %736 : vector<2x32xf32>
    %738 = arith.mulf %733, %737 : vector<2x32xf32>
    %c6_230 = arith.constant 6 : index
    %c0_231 = arith.constant 0 : index
    %739 = vector.load %arg11[%c6_230, %c0_231] : memref<16x32xf32, #tpu.memory_space<vmem>>, vector<2x32xf32>
    tpu.vector_store %arg11[%c6_230, %c0_231], %738 {strides = array<i32>} : memref<16x32xf32, #tpu.memory_space<vmem>>, vector<2x32xf32>,
    %740 = vector.extract_strided_slice %590 {offsets = [8, 0], sizes = [2, 32], strides = [1, 1]} : vector<16x32xf32> to vector<2x32xf32>
    %cst_232 = arith.constant dense<0.000000e+00> : vector<2x32xf32>
    %741 = tpu.matmul %738, %595, %cst_232 {dimension_numbers = #tpu.dot_dimension_numbers<[1], [0], [0], [1], [0, 0, 1, 1], [], []>} : vector<2x32xf32>, vector<32x32xf32>, vector<2x32xf32> -> vector<2x32xf32>
    %742 = arith.addf %740, %741 : vector<2x32xf32>
    %743 = arith.negf %742 : vector<2x32xf32>
    %744 = math.exp %743 : vector<2x32xf32>
    %cst_233 = arith.constant 1.000000e+00 : f32
    %745 = vector.broadcast %cst_233 : f32 to vector<2x32xf32>
    %746 = arith.addf %745, %744 : vector<2x32xf32>
    %747 = arith.divf %745, %746 : vector<2x32xf32>
    %748 = vector.extract_strided_slice %591 {offsets = [8, 0], sizes = [2, 32], strides = [1, 1]} : vector<16x32xf32> to vector<2x32xf32>
    %cst_234 = arith.constant dense<0.000000e+00> : vector<2x32xf32>
    %749 = tpu.matmul %738, %597, %cst_234 {dimension_numbers = #tpu.dot_dimension_numbers<[1], [0], [0], [1], [0, 0, 1, 1], [], []>} : vector<2x32xf32>, vector<32x32xf32>, vector<2x32xf32> -> vector<2x32xf32>
    %750 = arith.addf %748, %749 : vector<2x32xf32>
    %751 = arith.negf %750 : vector<2x32xf32>
    %752 = math.exp %751 : vector<2x32xf32>
    %cst_235 = arith.constant 1.000000e+00 : f32
    %753 = vector.broadcast %cst_235 : f32 to vector<2x32xf32>
    %754 = arith.addf %753, %752 : vector<2x32xf32>
    %755 = arith.divf %753, %754 : vector<2x32xf32>
    %756 = vector.extract_strided_slice %592 {offsets = [8, 0], sizes = [2, 32], strides = [1, 1]} : vector<16x32xf32> to vector<2x32xf32>
    %cst_236 = arith.constant dense<0.000000e+00> : vector<2x32xf32>
    %757 = tpu.matmul %738, %599, %cst_236 {dimension_numbers = #tpu.dot_dimension_numbers<[1], [0], [0], [1], [0, 0, 1, 1], [], []>} : vector<2x32xf32>, vector<32x32xf32>, vector<2x32xf32> -> vector<2x32xf32>
    %758 = arith.addf %756, %757 : vector<2x32xf32>
    %759 = math.tanh %758 : vector<2x32xf32>
    %760 = vector.extract_strided_slice %593 {offsets = [8, 0], sizes = [2, 32], strides = [1, 1]} : vector<16x32xf32> to vector<2x32xf32>
    %cst_237 = arith.constant dense<0.000000e+00> : vector<2x32xf32>
    %761 = tpu.matmul %738, %601, %cst_237 {dimension_numbers = #tpu.dot_dimension_numbers<[1], [0], [0], [1], [0, 0, 1, 1], [], []>} : vector<2x32xf32>, vector<32x32xf32>, vector<2x32xf32> -> vector<2x32xf32>
    %762 = arith.addf %760, %761 : vector<2x32xf32>
    %763 = arith.negf %762 : vector<2x32xf32>
    %764 = math.exp %763 : vector<2x32xf32>
    %cst_238 = arith.constant 1.000000e+00 : f32
    %765 = vector.broadcast %cst_238 : f32 to vector<2x32xf32>
    %766 = arith.addf %765, %764 : vector<2x32xf32>
    %767 = arith.divf %765, %766 : vector<2x32xf32>
    %768 = arith.mulf %755, %736 : vector<2x32xf32>
    %769 = arith.mulf %747, %759 : vector<2x32xf32>
    %770 = arith.addf %768, %769 : vector<2x32xf32>
    %771 = math.tanh %770 : vector<2x32xf32>
    %772 = arith.mulf %767, %771 : vector<2x32xf32>
    %c8_239 = arith.constant 8 : index
    %c0_240 = arith.constant 0 : index
    %773 = vector.load %arg11[%c8_239, %c0_240] : memref<16x32xf32, #tpu.memory_space<vmem>>, vector<2x32xf32>
    tpu.vector_store %arg11[%c8_239, %c0_240], %772 {strides = array<i32>} : memref<16x32xf32, #tpu.memory_space<vmem>>, vector<2x32xf32>,
    %774 = vector.extract_strided_slice %590 {offsets = [10, 0], sizes = [2, 32], strides = [1, 1]} : vector<16x32xf32> to vector<2x32xf32>
    %cst_241 = arith.constant dense<0.000000e+00> : vector<2x32xf32>
    %775 = tpu.matmul %772, %595, %cst_241 {dimension_numbers = #tpu.dot_dimension_numbers<[1], [0], [0], [1], [0, 0, 1, 1], [], []>} : vector<2x32xf32>, vector<32x32xf32>, vector<2x32xf32> -> vector<2x32xf32>
    %776 = arith.addf %774, %775 : vector<2x32xf32>
    %777 = arith.negf %776 : vector<2x32xf32>
    %778 = math.exp %777 : vector<2x32xf32>
    %cst_242 = arith.constant 1.000000e+00 : f32
    %779 = vector.broadcast %cst_242 : f32 to vector<2x32xf32>
    %780 = arith.addf %779, %778 : vector<2x32xf32>
    %781 = arith.divf %779, %780 : vector<2x32xf32>
    %782 = vector.extract_strided_slice %591 {offsets = [10, 0], sizes = [2, 32], strides = [1, 1]} : vector<16x32xf32> to vector<2x32xf32>
    %cst_243 = arith.constant dense<0.000000e+00> : vector<2x32xf32>
    %783 = tpu.matmul %772, %597, %cst_243 {dimension_numbers = #tpu.dot_dimension_numbers<[1], [0], [0], [1], [0, 0, 1, 1], [], []>} : vector<2x32xf32>, vector<32x32xf32>, vector<2x32xf32> -> vector<2x32xf32>
    %784 = arith.addf %782, %783 : vector<2x32xf32>
    %785 = arith.negf %784 : vector<2x32xf32>
    %786 = math.exp %785 : vector<2x32xf32>
    %cst_244 = arith.constant 1.000000e+00 : f32
    %787 = vector.broadcast %cst_244 : f32 to vector<2x32xf32>
    %788 = arith.addf %787, %786 : vector<2x32xf32>
    %789 = arith.divf %787, %788 : vector<2x32xf32>
    %790 = vector.extract_strided_slice %592 {offsets = [10, 0], sizes = [2, 32], strides = [1, 1]} : vector<16x32xf32> to vector<2x32xf32>
    %cst_245 = arith.constant dense<0.000000e+00> : vector<2x32xf32>
    %791 = tpu.matmul %772, %599, %cst_245 {dimension_numbers = #tpu.dot_dimension_numbers<[1], [0], [0], [1], [0, 0, 1, 1], [], []>} : vector<2x32xf32>, vector<32x32xf32>, vector<2x32xf32> -> vector<2x32xf32>
    %792 = arith.addf %790, %791 : vector<2x32xf32>
    %793 = math.tanh %792 : vector<2x32xf32>
    %794 = vector.extract_strided_slice %593 {offsets = [10, 0], sizes = [2, 32], strides = [1, 1]} : vector<16x32xf32> to vector<2x32xf32>
    %cst_246 = arith.constant dense<0.000000e+00> : vector<2x32xf32>
    %795 = tpu.matmul %772, %601, %cst_246 {dimension_numbers = #tpu.dot_dimension_numbers<[1], [0], [0], [1], [0, 0, 1, 1], [], []>} : vector<2x32xf32>, vector<32x32xf32>, vector<2x32xf32> -> vector<2x32xf32>
    %796 = arith.addf %794, %795 : vector<2x32xf32>
    %797 = arith.negf %796 : vector<2x32xf32>
    %798 = math.exp %797 : vector<2x32xf32>
    %cst_247 = arith.constant 1.000000e+00 : f32
    %799 = vector.broadcast %cst_247 : f32 to vector<2x32xf32>
    %800 = arith.addf %799, %798 : vector<2x32xf32>
    %801 = arith.divf %799, %800 : vector<2x32xf32>
    %802 = arith.mulf %789, %770 : vector<2x32xf32>
    %803 = arith.mulf %781, %793 : vector<2x32xf32>
    %804 = arith.addf %802, %803 : vector<2x32xf32>
    %805 = math.tanh %804 : vector<2x32xf32>
    %806 = arith.mulf %801, %805 : vector<2x32xf32>
    %c10_248 = arith.constant 10 : index
    %c0_249 = arith.constant 0 : index
    %807 = vector.load %arg11[%c10_248, %c0_249] : memref<16x32xf32, #tpu.memory_space<vmem>>, vector<2x32xf32>
    tpu.vector_store %arg11[%c10_248, %c0_249], %806 {strides = array<i32>} : memref<16x32xf32, #tpu.memory_space<vmem>>, vector<2x32xf32>,
    %808 = vector.extract_strided_slice %590 {offsets = [12, 0], sizes = [2, 32], strides = [1, 1]} : vector<16x32xf32> to vector<2x32xf32>
    %cst_250 = arith.constant dense<0.000000e+00> : vector<2x32xf32>
    %809 = tpu.matmul %806, %595, %cst_250 {dimension_numbers = #tpu.dot_dimension_numbers<[1], [0], [0], [1], [0, 0, 1, 1], [], []>} : vector<2x32xf32>, vector<32x32xf32>, vector<2x32xf32> -> vector<2x32xf32>
    %810 = arith.addf %808, %809 : vector<2x32xf32>
    %811 = arith.negf %810 : vector<2x32xf32>
    %812 = math.exp %811 : vector<2x32xf32>
    %cst_251 = arith.constant 1.000000e+00 : f32
    %813 = vector.broadcast %cst_251 : f32 to vector<2x32xf32>
    %814 = arith.addf %813, %812 : vector<2x32xf32>
    %815 = arith.divf %813, %814 : vector<2x32xf32>
    %816 = vector.extract_strided_slice %591 {offsets = [12, 0], sizes = [2, 32], strides = [1, 1]} : vector<16x32xf32> to vector<2x32xf32>
    %cst_252 = arith.constant dense<0.000000e+00> : vector<2x32xf32>
    %817 = tpu.matmul %806, %597, %cst_252 {dimension_numbers = #tpu.dot_dimension_numbers<[1], [0], [0], [1], [0, 0, 1, 1], [], []>} : vector<2x32xf32>, vector<32x32xf32>, vector<2x32xf32> -> vector<2x32xf32>
    %818 = arith.addf %816, %817 : vector<2x32xf32>
    %819 = arith.negf %818 : vector<2x32xf32>
    %820 = math.exp %819 : vector<2x32xf32>
    %cst_253 = arith.constant 1.000000e+00 : f32
    %821 = vector.broadcast %cst_253 : f32 to vector<2x32xf32>
    %822 = arith.addf %821, %820 : vector<2x32xf32>
    %823 = arith.divf %821, %822 : vector<2x32xf32>
    %824 = vector.extract_strided_slice %592 {offsets = [12, 0], sizes = [2, 32], strides = [1, 1]} : vector<16x32xf32> to vector<2x32xf32>
    %cst_254 = arith.constant dense<0.000000e+00> : vector<2x32xf32>
    %825 = tpu.matmul %806, %599, %cst_254 {dimension_numbers = #tpu.dot_dimension_numbers<[1], [0], [0], [1], [0, 0, 1, 1], [], []>} : vector<2x32xf32>, vector<32x32xf32>, vector<2x32xf32> -> vector<2x32xf32>
    %826 = arith.addf %824, %825 : vector<2x32xf32>
    %827 = math.tanh %826 : vector<2x32xf32>
    %828 = vector.extract_strided_slice %593 {offsets = [12, 0], sizes = [2, 32], strides = [1, 1]} : vector<16x32xf32> to vector<2x32xf32>
    %cst_255 = arith.constant dense<0.000000e+00> : vector<2x32xf32>
    %829 = tpu.matmul %806, %601, %cst_255 {dimension_numbers = #tpu.dot_dimension_numbers<[1], [0], [0], [1], [0, 0, 1, 1], [], []>} : vector<2x32xf32>, vector<32x32xf32>, vector<2x32xf32> -> vector<2x32xf32>
    %830 = arith.addf %828, %829 : vector<2x32xf32>
    %831 = arith.negf %830 : vector<2x32xf32>
    %832 = math.exp %831 : vector<2x32xf32>
    %cst_256 = arith.constant 1.000000e+00 : f32
    %833 = vector.broadcast %cst_256 : f32 to vector<2x32xf32>
    %834 = arith.addf %833, %832 : vector<2x32xf32>
    %835 = arith.divf %833, %834 : vector<2x32xf32>
    %836 = arith.mulf %823, %804 : vector<2x32xf32>
    %837 = arith.mulf %815, %827 : vector<2x32xf32>
    %838 = arith.addf %836, %837 : vector<2x32xf32>
    %839 = math.tanh %838 : vector<2x32xf32>
    %840 = arith.mulf %835, %839 : vector<2x32xf32>
    %c12_257 = arith.constant 12 : index
    %c0_258 = arith.constant 0 : index
    %841 = vector.load %arg11[%c12_257, %c0_258] : memref<16x32xf32, #tpu.memory_space<vmem>>, vector<2x32xf32>
    tpu.vector_store %arg11[%c12_257, %c0_258], %840 {strides = array<i32>} : memref<16x32xf32, #tpu.memory_space<vmem>>, vector<2x32xf32>,
    %842 = vector.extract_strided_slice %590 {offsets = [14, 0], sizes = [2, 32], strides = [1, 1]} : vector<16x32xf32> to vector<2x32xf32>
    %cst_259 = arith.constant dense<0.000000e+00> : vector<2x32xf32>
    %843 = tpu.matmul %840, %595, %cst_259 {dimension_numbers = #tpu.dot_dimension_numbers<[1], [0], [0], [1], [0, 0, 1, 1], [], []>} : vector<2x32xf32>, vector<32x32xf32>, vector<2x32xf32> -> vector<2x32xf32>
    %844 = arith.addf %842, %843 : vector<2x32xf32>
    %845 = arith.negf %844 : vector<2x32xf32>
    %846 = math.exp %845 : vector<2x32xf32>
    %cst_260 = arith.constant 1.000000e+00 : f32
    %847 = vector.broadcast %cst_260 : f32 to vector<2x32xf32>
    %848 = arith.addf %847, %846 : vector<2x32xf32>
    %849 = arith.divf %847, %848 : vector<2x32xf32>
    %850 = vector.extract_strided_slice %591 {offsets = [14, 0], sizes = [2, 32], strides = [1, 1]} : vector<16x32xf32> to vector<2x32xf32>
    %cst_261 = arith.constant dense<0.000000e+00> : vector<2x32xf32>
    %851 = tpu.matmul %840, %597, %cst_261 {dimension_numbers = #tpu.dot_dimension_numbers<[1], [0], [0], [1], [0, 0, 1, 1], [], []>} : vector<2x32xf32>, vector<32x32xf32>, vector<2x32xf32> -> vector<2x32xf32>
    %852 = arith.addf %850, %851 : vector<2x32xf32>
    %853 = arith.negf %852 : vector<2x32xf32>
    %854 = math.exp %853 : vector<2x32xf32>
    %cst_262 = arith.constant 1.000000e+00 : f32
    %855 = vector.broadcast %cst_262 : f32 to vector<2x32xf32>
    %856 = arith.addf %855, %854 : vector<2x32xf32>
    %857 = arith.divf %855, %856 : vector<2x32xf32>
    %858 = vector.extract_strided_slice %592 {offsets = [14, 0], sizes = [2, 32], strides = [1, 1]} : vector<16x32xf32> to vector<2x32xf32>
    %cst_263 = arith.constant dense<0.000000e+00> : vector<2x32xf32>
    %859 = tpu.matmul %840, %599, %cst_263 {dimension_numbers = #tpu.dot_dimension_numbers<[1], [0], [0], [1], [0, 0, 1, 1], [], []>} : vector<2x32xf32>, vector<32x32xf32>, vector<2x32xf32> -> vector<2x32xf32>
    %860 = arith.addf %858, %859 : vector<2x32xf32>
    %861 = math.tanh %860 : vector<2x32xf32>
    %862 = vector.extract_strided_slice %593 {offsets = [14, 0], sizes = [2, 32], strides = [1, 1]} : vector<16x32xf32> to vector<2x32xf32>
    %cst_264 = arith.constant dense<0.000000e+00> : vector<2x32xf32>
    %863 = tpu.matmul %840, %601, %cst_264 {dimension_numbers = #tpu.dot_dimension_numbers<[1], [0], [0], [1], [0, 0, 1, 1], [], []>} : vector<2x32xf32>, vector<32x32xf32>, vector<2x32xf32> -> vector<2x32xf32>
    %864 = arith.addf %862, %863 : vector<2x32xf32>
    %865 = arith.negf %864 : vector<2x32xf32>
    %866 = math.exp %865 : vector<2x32xf32>
    %cst_265 = arith.constant 1.000000e+00 : f32
    %867 = vector.broadcast %cst_265 : f32 to vector<2x32xf32>
    %868 = arith.addf %867, %866 : vector<2x32xf32>
    %869 = arith.divf %867, %868 : vector<2x32xf32>
    %870 = arith.mulf %857, %838 : vector<2x32xf32>
    %871 = arith.mulf %849, %861 : vector<2x32xf32>
    %872 = arith.addf %870, %871 : vector<2x32xf32>
    %873 = math.tanh %872 : vector<2x32xf32>
    %874 = arith.mulf %869, %873 : vector<2x32xf32>
    %c14_266 = arith.constant 14 : index
    %c0_267 = arith.constant 0 : index
    %875 = vector.load %arg11[%c14_266, %c0_267] : memref<16x32xf32, #tpu.memory_space<vmem>>, vector<2x32xf32>
    tpu.vector_store %arg11[%c14_266, %c0_267], %874 {strides = array<i32>} : memref<16x32xf32, #tpu.memory_space<vmem>>, vector<2x32xf32>,
    return
  }
  func.func @transform_0(%arg0: i32) -> (i32, i32) {
    %c0_i32 = arith.constant 0 : i32
    %c0_i32_0 = arith.constant 0 : i32
    %c0_i32_1 = arith.constant 0 : i32
    return %c0_i32, %c0_i32_0 : i32, i32
  }
  func.func @transform_1(%arg0: i32) -> (i32, i32) {
    %c0_i32 = arith.constant 0 : i32
    %c0_i32_0 = arith.constant 0 : i32
    %c0_i32_1 = arith.constant 0 : i32
    return %c0_i32, %c0_i32_0 : i32, i32
  }
  func.func @transform_2(%arg0: i32) -> (i32, i32, i32) {
    %c0_i32 = arith.constant 0 : i32
    %c0_i32_0 = arith.constant 0 : i32
    %c0_i32_1 = arith.constant 0 : i32
    %c0_i32_2 = arith.constant 0 : i32
    return %c0_i32, %c0_i32_0, %c0_i32_1 : i32, i32, i32
  }
  func.func @transform_3(%arg0: i32) -> (i32, i32) {
    %c0_i32 = arith.constant 0 : i32
    %c0_i32_0 = arith.constant 0 : i32
    %c0_i32_1 = arith.constant 0 : i32
    return %c0_i32, %c0_i32_0 : i32, i32
  }
  func.func @transform_4(%arg0: i32) -> (i32, i32) {
    %c0_i32 = arith.constant 0 : i32
    %c0_i32_0 = arith.constant 0 : i32
    %c0_i32_1 = arith.constant 0 : i32
    return %c0_i32, %c0_i32_0 : i32, i32
  }
  func.func @transform_5(%arg0: i32) -> (i32, i32, i32) {
    %c0_i32 = arith.constant 0 : i32
    %c0_i32_0 = arith.constant 0 : i32
    %c0_i32_1 = arith.constant 0 : i32
    %c0_i32_2 = arith.constant 0 : i32
    return %c0_i32, %c0_i32_0, %c0_i32_1 : i32, i32, i32
  }
  func.func @transform_6(%arg0: i32) -> (i32, i32) {
    %c0_i32 = arith.constant 0 : i32
    %c0_i32_0 = arith.constant 0 : i32
    %c0_i32_1 = arith.constant 0 : i32
    return %c0_i32, %c0_i32_0 : i32, i32
  }
  func.func @transform_7(%arg0: i32) -> (i32, i32) {
    %c0_i32 = arith.constant 0 : i32
    %c0_i32_0 = arith.constant 0 : i32
    %c0_i32_1 = arith.constant 0 : i32
    return %c0_i32, %c0_i32_0 : i32, i32
  }
  func.func @transform_8(%arg0: i32) -> (i32, i32, i32) {
    %c0_i32 = arith.constant 0 : i32
    %c0_i32_0 = arith.constant 0 : i32
    %c0_i32_1 = arith.constant 0 : i32
    %c0_i32_2 = arith.constant 0 : i32
    return %c0_i32, %c0_i32_0, %c0_i32_1 : i32, i32, i32
  }
  func.func @transform_9(%arg0: i32) -> (i32, i32) {
    %c0_i32 = arith.constant 0 : i32
    %c0_i32_0 = arith.constant 0 : i32
    %c0_i32_1 = arith.constant 0 : i32
    return %c0_i32, %c0_i32_0 : i32, i32
  }
  func.func @transform_10(%arg0: i32) -> (i32, i32) {
    %c0_i32 = arith.constant 0 : i32
    %c0_i32_0 = arith.constant 0 : i32
    %c0_i32_1 = arith.constant 0 : i32
    return %c0_i32, %c0_i32_0 : i32, i32
  }
}

</mosaic_0001>

<llo_original>
// kernel: tpu_custom_call.1
$region0: #{tpu_custom_call.1}
  #allocation0 [shape = 'u32[]', space=smem, size = 0x4, offset = 0x4, fixed_abs, tag = 'smem constant byte address 0x4 - core index']
  #allocation1 [shape = 'u32[72,128]{1,0:T(1,128)}', space=vmem, size = 0x9000, scoped, tag = 'internal scratch']
  #allocation2 [shape = 'f32[16,32]{1,0:T(8,128)}', space=vmem, size = 0x2000, scoped, tag = 'scratch operand']
  #allocation3 [shape = 'f32[16,32]{1,0:T(8,128)}', space=vmem, size = 0x2000, scoped, tag = 'scratch operand']
  %s0 = inlined_call_operand.hbm [shape: f32[16,512], index: 0, kind: input, shape index: {}]
  %s1 = inlined_call_operand.hbm [shape: f32[512,128], index: 1, kind: input, shape index: {}]
  %s2 = inlined_call_operand.hbm [shape: f32[4,32,32], index: 2, kind: input, shape index: {}]
  %s3 = inlined_call_operand.vmem [shape: f32[1,128], index: 3, kind: input, shape index: {}]
  %s4 = inlined_call_operand.hbm [shape: f32[32,128], index: 4, kind: input, shape index: {}]
  %s5 = inlined_call_operand.hbm [shape: f32[4,32,32], index: 5, kind: input, shape index: {}]
  %s6 = inlined_call_operand.vmem [shape: f32[1,128], index: 6, kind: input, shape index: {}]
  %s7 = inlined_call_operand.hbm [shape: f32[32,128], index: 7, kind: input, shape index: {}]
  %s8 = inlined_call_operand.hbm [shape: f32[4,32,32], index: 8, kind: input, shape index: {}]
  %s9 = inlined_call_operand.vmem [shape: f32[1,128], index: 9, kind: input, shape index: {}]
  %s10 = inlined_call_operand.hbm [shape: f32[16,32], index: 10, kind: output, shape index: {}]
  %s11 = sld [smem:[#allocation0]]
  $region78: #{tpu_custom_call.1} parent=0
    _
  %s13 = ssub.s32 1, %s11
  %s14 = scalar_select 0, %s13, %s11
  $region1: #{tpu_custom_call.1} parent=0
    #allocation4 [shape = 'u8[32768]{0}', space=vmem, size = 0x8000, scoped, tag = 'input window, operand 0, single buffered']
    #allocation5 [shape = 's32[1]{0}', space=sflag, size = 0x4, scoped, tag = 'scoped memory for tpu_custom_call.1']
    #allocation6 [shape = 's32[1]{0}', space=sflag, size = 0x4, scoped, tag = 'scoped memory for tpu_custom_call.1']
    #allocation7 [shape = 'u8[262144]{0}', space=vmem, size = 0x40000, scoped, tag = 'input window, operand 1, single buffered']
    #allocation8 [shape = 's32[1]{0}', space=sflag, size = 0x4, scoped, tag = 'scoped memory for tpu_custom_call.1']
    #allocation9 [shape = 'u8[65536]{0}', space=vmem, size = 0x10000, scoped, tag = 'input window, operand 2, single buffered']
    #allocation10 [shape = 'u8[16384]{0}', space=vmem, size = 0x4000, scoped, tag = 'input window, operand 4, single buffered']
    #allocation11 [shape = 's32[1]{0}', space=sflag, size = 0x4, scoped, tag = 'scoped memory for tpu_custom_call.1']
    #allocation12 [shape = 'u8[65536]{0}', space=vmem, size = 0x10000, scoped, tag = 'input window, operand 5, single buffered']
    #allocation13 [shape = 'u8[16384]{0}', space=vmem, size = 0x4000, scoped, tag = 'input window, operand 7, single buffered']
    #allocation14 [shape = 's32[1]{0}', space=sflag, size = 0x4, scoped, tag = 'scoped memory for tpu_custom_call.1']
    #allocation15 [shape = 'u8[65536]{0}', space=vmem, size = 0x10000, scoped, tag = 'input window, operand 8, single buffered']
    #allocation16 [shape = 'u8[8192]{0}', space=vmem, size = 0x2000, scoped, tag = 'output window, operand 0, single buffered']
    %15 = vsyncpa [#allocation5], 0
    %16 = vsyncpa [#allocation8], 0
    %17 = vsyncpa [#allocation11], 0
    %18 = vsyncpa [#allocation14], 0
    %19 = vsyncpa [#allocation6], 0
    // Predicated region
    $region2: #{tpu_custom_call.1} parent=1 // pred_check
      _
    $region3: #{tpu_custom_call.1} parent=1 // pred_check_branch
      %21 = sbr.rel (0) target = $region5
    $region4: #{tpu_custom_call.1} parent=1 // pred_region
      %23 = vsyncadd [#allocation5], 0
      %s24 = sshll.u32 %s0, 4
      %s25 = int_to_ptr.hbm [resolvable:$true] %s24
      %s26 = sshll.u32 [#allocation4], 4
      %s27 = int_to_ptr.vmem [resolvable:$true] %s26
      %32 = dma.hbm_to_vmem [thread:$0]  %s25, 1024, %s27, [#allocation5], 512, 512, 32
    $region5: #{tpu_custom_call.1} parent=1 // pred_fallthru
      _
    // Predicated region
    $region6: #{tpu_custom_call.1} parent=1 // pred_check
      _
    $region7: #{tpu_custom_call.1} parent=1 // pred_check_branch
      %34 = sbr.rel (0) target = $region9
    $region8: #{tpu_custom_call.1} parent=1 // pred_region
      %36 = vsyncadd [#allocation8], 0
      %s37 = sshll.u32 %s1, 4
      %s38 = int_to_ptr.hbm [resolvable:$true] %s37
      %s39 = sshll.u32 [#allocation7], 4
      %s40 = int_to_ptr.vmem [resolvable:$true] %s39
      %45 = dma.hbm_to_vmem [thread:$0]  %s38, 8192, %s40, [#allocation8], 128, 128, 8
    $region9: #{tpu_custom_call.1} parent=1 // pred_fallthru
      _
    // Predicated region
    $region10: #{tpu_custom_call.1} parent=1 // pred_check
      _
    $region11: #{tpu_custom_call.1} parent=1 // pred_check_branch
      %47 = sbr.rel (0) target = $region13
    $region12: #{tpu_custom_call.1} parent=1 // pred_region
      %49 = vsyncadd [#allocation8], 0
      %s50 = sshll.u32 %s2, 4
      %s51 = int_to_ptr.hbm [resolvable:$true] %s50
      %s52 = sshll.u32 [#allocation9], 4
      %s53 = int_to_ptr.vmem [resolvable:$true] %s52
      %58 = dma.hbm_to_vmem [thread:$0]  %s51, 2048, %s53, [#allocation8], 128, 128, 8
    $region13: #{tpu_custom_call.1} parent=1 // pred_fallthru
      _
    // Predicated region
    $region14: #{tpu_custom_call.1} parent=1 // pred_check
      _
    $region15: #{tpu_custom_call.1} parent=1 // pred_check_branch
      %60 = sbr.rel (0) target = $region17
    $region16: #{tpu_custom_call.1} parent=1 // pred_region
      _
    $region17: #{tpu_custom_call.1} parent=1 // pred_fallthru
      _
    // Predicated region
    $region18: #{tpu_custom_call.1} parent=1 // pred_check
      _
    $region19: #{tpu_custom_call.1} parent=1 // pred_check_branch
      %62 = sbr.rel (0) target = $region21
    $region20: #{tpu_custom_call.1} parent=1 // pred_region
      %64 = vsyncadd [#allocation11], 0
      %s65 = sshll.u32 %s4, 4
      %s66 = int_to_ptr.hbm [resolvable:$true] %s65
      %s67 = sshll.u32 [#allocation10], 4
      %s68 = int_to_ptr.vmem [resolvable:$true] %s67
      %73 = dma.hbm_to_vmem [thread:$0]  %s66, 512, %s68, [#allocation11], 128, 128, 8
    $region21: #{tpu_custom_call.1} parent=1 // pred_fallthru
      _
    // Predicated region
    $region22: #{tpu_custom_call.1} parent=1 // pred_check
      _
    $region23: #{tpu_custom_call.1} parent=1 // pred_check_branch
      %75 = sbr.rel (0) target = $region25
    $region24: #{tpu_custom_call.1} parent=1 // pred_region
      %77 = vsyncadd [#allocation11], 0
      %s78 = sshll.u32 %s5, 4
      %s79 = int_to_ptr.hbm [resolvable:$true] %s78
      %s80 = sshll.u32 [#allocation12], 4
      %s81 = int_to_ptr.vmem [resolvable:$true] %s80
      %86 = dma.hbm_to_vmem [thread:$0]  %s79, 2048, %s81, [#allocation11], 128, 128, 8
    $region25: #{tpu_custom_call.1} parent=1 // pred_fallthru
      _
    // Predicated region
    $region26: #{tpu_custom_call.1} parent=1 // pred_check
      _
    $region27: #{tpu_custom_call.1} parent=1 // pred_check_branch
      %88 = sbr.rel (0) target = $region29
    $region28: #{tpu_custom_call.1} parent=1 // pred_region
      _
    $region29: #{tpu_custom_call.1} parent=1 // pred_fallthru
      _
    // Predicated region
    $region30: #{tpu_custom_call.1} parent=1 // pred_check
      _
    $region31: #{tpu_custom_call.1} parent=1 // pred_check_branch
      %90 = sbr.rel (0) target = $region33
    $region32: #{tpu_custom_call.1} parent=1 // pred_region
      %92 = vsyncadd [#allocation14], 0
      %s93 = sshll.u32 %s7, 4
      %s94 = int_to_ptr.hbm [resolvable:$true] %s93
      %s95 = sshll.u32 [#allocation13], 4
      %s96 = int_to_ptr.vmem [resolvable:$true] %s95
      %101 = dma.hbm_to_vmem [thread:$0]  %s94, 512, %s96, [#allocation14], 128, 128, 8
    $region33: #{tpu_custom_call.1} parent=1 // pred_fallthru
      _
    // Predicated region
    $region34: #{tpu_custom_call.1} parent=1 // pred_check
      _
    $region35: #{tpu_custom_call.1} parent=1 // pred_check_branch
      %103 = sbr.rel (0) target = $region37
    $region36: #{tpu_custom_call.1} parent=1 // pred_region
      %105 = vsyncadd [#allocation14], 0
      %s106 = sshll.u32 %s8, 4
      %s107 = int_to_ptr.hbm [resolvable:$true] %s106
      %s108 = sshll.u32 [#allocation15], 4
      %s109 = int_to_ptr.vmem [resolvable:$true] %s108
      %114 = dma.hbm_to_vmem [thread:$0]  %s107, 2048, %s109, [#allocation14], 128, 128, 8
    $region37: #{tpu_custom_call.1} parent=1 // pred_fallthru
      _
    // Predicated region
    $region38: #{tpu_custom_call.1} parent=1 // pred_check
      _
    $region39: #{tpu_custom_call.1} parent=1 // pred_check_branch
      %116 = sbr.rel (0) target = $region41
    $region40: #{tpu_custom_call.1} parent=1 // pred_region
      _
    $region41: #{tpu_custom_call.1} parent=1 // pred_fallthru
      _
    // Predicated region
    $region42: #{tpu_custom_call.1} parent=1 // pred_check
      _
    $region43: #{tpu_custom_call.1} parent=1 // pred_check_branch
      %118 = sbr.rel (0) target = $region45
    $region44: #{tpu_custom_call.1} parent=1 // pred_region
      %120 = dma.done [#allocation5], 1024
    $region45: #{tpu_custom_call.1} parent=1 // pred_fallthru
      _
    // Predicated region
    $region46: #{tpu_custom_call.1} parent=1 // pred_check
      _
    $region47: #{tpu_custom_call.1} parent=1 // pred_check_branch
      %122 = sbr.rel (0) target = $region49
    $region48: #{tpu_custom_call.1} parent=1 // pred_region
      %124 = dma.done [#allocation8], 8192
    $region49: #{tpu_custom_call.1} parent=1 // pred_fallthru
      _
    // Predicated region
    $region50: #{tpu_custom_call.1} parent=1 // pred_check
      _
    $region51: #{tpu_custom_call.1} parent=1 // pred_check_branch
      %126 = sbr.rel (0) target = $region53
    $region52: #{tpu_custom_call.1} parent=1 // pred_region
      %128 = dma.done [#allocation8], 2048
    $region53: #{tpu_custom_call.1} parent=1 // pred_fallthru
      _
    // Predicated region
    $region54: #{tpu_custom_call.1} parent=1 // pred_check
      _
    $region55: #{tpu_custom_call.1} parent=1 // pred_check_branch
      %130 = sbr.rel (0) target = $region57
    $region56: #{tpu_custom_call.1} parent=1 // pred_region
      %132 = dma.done [#allocation11], 512
    $region57: #{tpu_custom_call.1} parent=1 // pred_fallthru
      _
    // Predicated region
    $region58: #{tpu_custom_call.1} parent=1 // pred_check
      _
    $region59: #{tpu_custom_call.1} parent=1 // pred_check_branch
      %134 = sbr.rel (0) target = $region61
    $region60: #{tpu_custom_call.1} parent=1 // pred_region
      %136 = dma.done [#allocation11], 2048
    $region61: #{tpu_custom_call.1} parent=1 // pred_fallthru
      _
    // Predicated region
    $region62: #{tpu_custom_call.1} parent=1 // pred_check
      _
    $region63: #{tpu_custom_call.1} parent=1 // pred_check_branch
      %138 = sbr.rel (0) target = $region65
    $region64: #{tpu_custom_call.1} parent=1 // pred_region
      %140 = dma.done [#allocation14], 512
    $region65: #{tpu_custom_call.1} parent=1 // pred_fallthru
      _
    // Predicated region
    $region66: #{tpu_custom_call.1} parent=1 // pred_check
      _
    $region67: #{tpu_custom_call.1} parent=1 // pred_check_branch
      %142 = sbr.rel (0) target = $region69
    $region68: #{tpu_custom_call.1} parent=1 // pred_region
      %144 = dma.done [#allocation14], 2048
    $region69: #{tpu_custom_call.1} parent=1 // pred_fallthru
      _
    %v145 = vld [vmem:[#allocation4] sm:$0xff]
    %v146 = vld [vmem:[#allocation4 + $0x8] sm:$0xff]
    %v147 = vld [vmem:[#allocation4 + $0x10] sm:$0xff]
    %v148 = vld [vmem:[#allocation4 + $0x18] sm:$0xff]
    %v149 = vld [vmem:[#allocation4 + $0x20] sm:$0xff]
    %v150 = vld [vmem:[#allocation4 + $0x28] sm:$0xff]
    %v151 = vld [vmem:[#allocation4 + $0x30] sm:$0xff]
    %v152 = vld [vmem:[#allocation4 + $0x38] sm:$0xff]
    %v153 = vld [vmem:[#allocation7] sm:$0xff]
    %v154 = vld [vmem:[#allocation7 + $0x8] sm:$0xff]
    %v155 = vld [vmem:[#allocation7 + $0x10] sm:$0xff]
    %v156 = vld [vmem:[#allocation7 + $0x18] sm:$0xff]
    %v157 = vld [vmem:[#allocation7 + $0x20] sm:$0xff]
    %v158 = vld [vmem:[#allocation7 + $0x28] sm:$0xff]
    %v159 = vld [vmem:[#allocation7 + $0x30] sm:$0xff]
    %v160 = vld [vmem:[#allocation7 + $0x38] sm:$0xff]
    %v161 = vld [vmem:[#allocation7 + $0x40] sm:$0xff]
    %v162 = vld [vmem:[#allocation7 + $0x48] sm:$0xff]
    %v163 = vld [vmem:[#allocation7 + $0x50] sm:$0xff]
    %v164 = vld [vmem:[#allocation7 + $0x58] sm:$0xff]
    %v165 = vld [vmem:[#allocation7 + $0x60] sm:$0xff]
    %v166 = vld [vmem:[#allocation7 + $0x68] sm:$0xff]
    %v167 = vld [vmem:[#allocation7 + $0x70] sm:$0xff]
    %v168 = vld [vmem:[#allocation7 + $0x78] sm:$0xff]
    %v169 = vld [vmem:[#allocation7 + $0x80] sm:$0xff]
    %v170 = vld [vmem:[#allocation7 + $0x88] sm:$0xff]
    %v171 = vld [vmem:[#allocation7 + $0x90] sm:$0xff]
    %v172 = vld [vmem:[#allocation7 + $0x98] sm:$0xff]
    %v173 = vld [vmem:[#allocation7 + $0xa0] sm:$0xff]
    %v174 = vld [vmem:[#allocation7 + $0xa8] sm:$0xff]
    %v175 = vld [vmem:[#allocation7 + $0xb0] sm:$0xff]
    %v176 = vld [vmem:[#allocation7 + $0xb8] sm:$0xff]
    %v177 = vld [vmem:[#allocation7 + $0xc0] sm:$0xff]
    %v178 = vld [vmem:[#allocation7 + $0xc8] sm:$0xff]
    %v179 = vld [vmem:[#allocation7 + $0xd0] sm:$0xff]
    %v180 = vld [vmem:[#allocation7 + $0xd8] sm:$0xff]
    %v181 = vld [vmem:[#allocation7 + $0xe0] sm:$0xff]
    %v182 = vld [vmem:[#allocation7 + $0xe8] sm:$0xff]
    %v183 = vld [vmem:[#allocation7 + $0xf0] sm:$0xff]
    %v184 = vld [vmem:[#allocation7 + $0xf8] sm:$0xff]
    %v185 = vld [vmem:[#allocation7 + $0x100] sm:$0xff]
    %v186 = vld [vmem:[#allocation7 + $0x108] sm:$0xff]
    %v187 = vld [vmem:[#allocation7 + $0x110] sm:$0xff]
    %v188 = vld [vmem:[#allocation7 + $0x118] sm:$0xff]
    %v189 = vld [vmem:[#allocation7 + $0x120] sm:$0xff]
    %v190 = vld [vmem:[#allocation7 + $0x128] sm:$0xff]
    %v191 = vld [vmem:[#allocation7 + $0x130] sm:$0xff]
    %v192 = vld [vmem:[#allocation7 + $0x138] sm:$0xff]
    %v193 = vld [vmem:[#allocation7 + $0x140] sm:$0xff]
    %v194 = vld [vmem:[#allocation7 + $0x148] sm:$0xff]
    %v195 = vld [vmem:[#allocation7 + $0x150] sm:$0xff]
    %v196 = vld [vmem:[#allocation7 + $0x158] sm:$0xff]
    %v197 = vld [vmem:[#allocation7 + $0x160] sm:$0xff]
    %v198 = vld [vmem:[#allocation7 + $0x168] sm:$0xff]
    %v199 = vld [vmem:[#allocation7 + $0x170] sm:$0xff]
    %v200 = vld [vmem:[#allocation7 + $0x178] sm:$0xff]
    %v201 = vld [vmem:[#allocation7 + $0x180] sm:$0xff]
    %v202 = vld [vmem:[#allocation7 + $0x188] sm:$0xff]
    %v203 = vld [vmem:[#allocation7 + $0x190] sm:$0xff]
    %v204 = vld [vmem:[#allocation7 + $0x198] sm:$0xff]
    %v205 = vld [vmem:[#allocation7 + $0x1a0] sm:$0xff]
    %v206 = vld [vmem:[#allocation7 + $0x1a8] sm:$0xff]
    %v207 = vld [vmem:[#allocation7 + $0x1b0] sm:$0xff]
    %v208 = vld [vmem:[#allocation7 + $0x1b8] sm:$0xff]
    %v209 = vld [vmem:[#allocation7 + $0x1c0] sm:$0xff]
    %v210 = vld [vmem:[#allocation7 + $0x1c8] sm:$0xff]
    %v211 = vld [vmem:[#allocation7 + $0x1d0] sm:$0xff]
    %v212 = vld [vmem:[#allocation7 + $0x1d8] sm:$0xff]
    %v213 = vld [vmem:[#allocation7 + $0x1e0] sm:$0xff]
    %v214 = vld [vmem:[#allocation7 + $0x1e8] sm:$0xff]
    %v215 = vld [vmem:[#allocation7 + $0x1f0] sm:$0xff]
    %v216 = vld [vmem:[#allocation7 + $0x1f8] sm:$0xff]
    %v217 = vld [vmem:[%s3] sm:$0x1]
    %v219 = vperm.slane %v217, 0
    %221 = vmatpush.msra.mxu0 %v168
    %222 = vmatpush.msra.mxu0 %v167
    %223 = vmatpush.msra.mxu0 %v166
    %224 = vmatpush.msra.mxu0 %v165
    %225 = vmatpush.msra.mxu0 %v164
    %226 = vmatpush.msra.mxu0 %v163
    %227 = vmatpush.msra.mxu0 %v162
    %228 = vmatpush.msra.mxu0 %v161
    %229 = vmatpush.msra.mxu0 %v160
    %230 = vmatpush.msra.mxu0 %v159
    %231 = vmatpush.msra.mxu0 %v158
    %232 = vmatpush.msra.mxu0 %v157
    %233 = vmatpush.msra.mxu0 %v156
    %234 = vmatpush.msra.mxu0 %v155
    %235 = vmatpush.msra.mxu0 %v154
    %236 = vmatpush.msra.mxu0 %v153
    %237 = vmatmul.f32.gmra.mxu0 %v145
    %v238 = vpop.f32.mrf.mxu0
    %v239 = vadd.f32 %v219, %v238
    %240 = vmatmul.f32.gmra.mxu0 %v149
    %v241 = vpop.f32.mrf.mxu0
    %v242 = vadd.f32 %v219, %v241
    %243 = vdwg.mxu0
    %244 = vmatpush.msra.mxu0 %v184
    %245 = vmatpush.msra.mxu0 %v183
    %246 = vmatpush.msra.mxu0 %v182
    %247 = vmatpush.msra.mxu0 %v181
    %248 = vmatpush.msra.mxu0 %v180
    %249 = vmatpush.msra.mxu0 %v179
    %250 = vmatpush.msra.mxu0 %v178
    %251 = vmatpush.msra.mxu0 %v177
    %252 = vmatpush.msra.mxu0 %v176
    %253 = vmatpush.msra.mxu0 %v175
    %254 = vmatpush.msra.mxu0 %v174
    %255 = vmatpush.msra.mxu0 %v173
    %256 = vmatpush.msra.mxu0 %v172
    %257 = vmatpush.msra.mxu0 %v171
    %258 = vmatpush.msra.mxu0 %v170
    %259 = vmatpush.msra.mxu0 %v169
    %260 = vmatmul.f32.gmra.mxu0 %v146
    %v261 = vpop.f32.mrf.mxu0
    %v262 = vadd.f32 %v239, %v261
    %263 = vmatmul.f32.gmra.mxu0 %v150
    %v264 = vpop.f32.mrf.mxu0
    %v265 = vadd.f32 %v242, %v264
    %266 = vdwg.mxu0
    %267 = vmatpush.msra.mxu0 %v200
    %268 = vmatpush.msra.mxu0 %v199
    %269 = vmatpush.msra.mxu0 %v198
    %270 = vmatpush.msra.mxu0 %v197
    %271 = vmatpush.msra.mxu0 %v196
    %272 = vmatpush.msra.mxu0 %v195
    %273 = vmatpush.msra.mxu0 %v194
    %274 = vmatpush.msra.mxu0 %v193
    %275 = vmatpush.msra.mxu0 %v192
    %276 = vmatpush.msra.mxu0 %v191
    %277 = vmatpush.msra.mxu0 %v190
    %278 = vmatpush.msra.mxu0 %v189
    %279 = vmatpush.msra.mxu0 %v188
    %280 = vmatpush.msra.mxu0 %v187
    %281 = vmatpush.msra.mxu0 %v186
    %282 = vmatpush.msra.mxu0 %v185
    %283 = vmatmul.f32.gmra.mxu0 %v147
    %v284 = vpop.f32.mrf.mxu0
    %v285 = vadd.f32 %v262, %v284
    %286 = vmatmul.f32.gmra.mxu0 %v151
    %v287 = vpop.f32.mrf.mxu0
    %v288 = vadd.f32 %v265, %v287
    %289 = vdwg.mxu0
    %290 = vmatpush.msra.mxu0 %v216
    %291 = vmatpush.msra.mxu0 %v215
    %292 = vmatpush.msra.mxu0 %v214
    %293 = vmatpush.msra.mxu0 %v213
    %294 = vmatpush.msra.mxu0 %v212
    %295 = vmatpush.msra.mxu0 %v211
    %296 = vmatpush.msra.mxu0 %v210
    %297 = vmatpush.msra.mxu0 %v209
    %298 = vmatpush.msra.mxu0 %v208
    %299 = vmatpush.msra.mxu0 %v207
    %300 = vmatpush.msra.mxu0 %v206
    %301 = vmatpush.msra.mxu0 %v205
    %302 = vmatpush.msra.mxu0 %v204
    %303 = vmatpush.msra.mxu0 %v203
    %304 = vmatpush.msra.mxu0 %v202
    %305 = vmatpush.msra.mxu0 %v201
    %306 = vmatmul.f32.gmra.mxu0 %v148
    %v307 = vpop.f32.mrf.mxu0
    %v308 = vadd.f32 %v285, %v307
    %309 = vmatmul.f32.gmra.mxu0 %v152
    %v310 = vpop.f32.mrf.mxu0
    %v311 = vadd.f32 %v288, %v310
    %312 = vdwg.mxu0
    %v313 = vld [vmem:[#allocation9] sm:$0xff]
    %v314 = vld [vmem:[#allocation9 + $0x8] sm:$0xff]
    %v315 = vld [vmem:[#allocation9 + $0x10] sm:$0xff]
    %v316 = vld [vmem:[#allocation9 + $0x18] sm:$0xff]
    %s317 = scalar_lea.vmem [#allocation9], 32
    %v318 = vld [vmem:[%s317] sm:$0xff]
    %v319 = vld [vmem:[%s317 + $0x8] sm:$0xff]
    %v320 = vld [vmem:[%s317 + $0x10] sm:$0xff]
    %v321 = vld [vmem:[%s317 + $0x18] sm:$0xff]
    %s322 = scalar_lea.vmem [#allocation9], 64
    %v323 = vld [vmem:[%s322] sm:$0xff]
    %v324 = vld [vmem:[%s322 + $0x8] sm:$0xff]
    %v325 = vld [vmem:[%s322 + $0x10] sm:$0xff]
    %v326 = vld [vmem:[%s322 + $0x18] sm:$0xff]
    %s327 = scalar_lea.vmem [#allocation9], 96
    %v328 = vld [vmem:[%s327] sm:$0xff]
    %v329 = vld [vmem:[%s327 + $0x8] sm:$0xff]
    %v330 = vld [vmem:[%s327 + $0x10] sm:$0xff]
    %v331 = vld [vmem:[%s327 + $0x18] sm:$0xff]
    %vm332 = vcmask 261120
    %v334 = vsel %vm332, 0.0, 0
    %336 = vmatpush.msra.mxu0 0.0
    %337 = vmatpush.msra.mxu0 0.0
    %338 = vmatpush.msra.mxu0 0.0
    %339 = vmatpush.msra.mxu0 0.0
    %340 = vmatpush.msra.mxu0 0.0
    %341 = vmatpush.msra.mxu0 0.0
    %342 = vmatpush.msra.mxu0 0.0
    %343 = vmatpush.msra.mxu0 0.0
    %344 = vmatpush.msra.mxu0 0.0
    %345 = vmatpush.msra.mxu0 0.0
    %346 = vmatpush.msra.mxu0 0.0
    %347 = vmatpush.msra.mxu0 0.0
    %348 = vmatpush.msra.mxu0 %v316
    %349 = vmatpush.msra.mxu0 %v315
    %350 = vmatpush.msra.mxu0 %v314
    %351 = vmatpush.msra.mxu0 %v313
    %352 = vmatmul.f32.gmra.mxu0 %v334
    %v353 = vpop.f32.mrf.mxu0
    %v354 = vadd.f32 0.0, %v353
    %355 = vdwg.mxu0
    %v356 = vadd.f32 %v308, %v354
    %v357 = vxor.u32 %v356, 2147483648
    %v358 = vmul.f32 %v357, 1.442695
    %v359 = vpow.pop %v358
    %v360 = vadd.f32 %v359, 1.0
    %v361 = vrcp.pop %v360
    %v362 = vmul.f32 %v360, %v361
    %v363 = vsub.f32 1.0, %v362
    %v364 = vmul.f32 %v361, %v363
    %v365 = vadd.f32 %v361, %v364
    %vm366 = vweird.f32 %v360
    %vm367 = vweird.f32 %v361
    %vm368 = vmor %vm366, %vm367
    %v369 = vsel %vm368, %v361, %v365
    %v370 = vand.u32 2147483647, %v360
    %vm371 = vcmp.eq.f32.partialorder %v370, 8.507059e+37
    %v372 = vand.u32 %v360, 2147483648
    %v373 = vor.u32 1.1754944e-38, %v372
    %v374 = vsel %vm371, %v373, %v369
    %v375 = vmul.f32 1.0, %v374
    %376 = vmatpush.msra.mxu0 0.0
    %377 = vmatpush.msra.mxu0 0.0
    %378 = vmatpush.msra.mxu0 0.0
    %379 = vmatpush.msra.mxu0 0.0
    %380 = vmatpush.msra.mxu0 0.0
    %381 = vmatpush.msra.mxu0 0.0
    %382 = vmatpush.msra.mxu0 0.0
    %383 = vmatpush.msra.mxu0 0.0
    %384 = vmatpush.msra.mxu0 0.0
    %385 = vmatpush.msra.mxu0 0.0
    %386 = vmatpush.msra.mxu0 0.0
    %387 = vmatpush.msra.mxu0 0.0
    %388 = vmatpush.msra.mxu0 %v321
    %389 = vmatpush.msra.mxu0 %v320
    %390 = vmatpush.msra.mxu0 %v319
    %391 = vmatpush.msra.mxu0 %v318
    %392 = vmatmul.f32.gmra.mxu0 %v334
    %v393 = vpop.f32.mrf.mxu0
    %v394 = vadd.f32 0.0, %v393
    %395 = vdwg.mxu0
    %397 = vrot.lane.b32.xlu0 %v394, 32
    %v398 = vpop.permute.xlu0 %397
    %v400 = vadd.f32 %v308, %v398
    %v401 = vxor.u32 %v400, 2147483648
    %v402 = vmul.f32 %v401, 1.442695
    %v403 = vpow.pop %v402
    %v404 = vadd.f32 %v403, 1.0
    %v405 = vrcp.pop %v404
    %v406 = vmul.f32 %v404, %v405
    %v407 = vsub.f32 1.0, %v406
    %v408 = vmul.f32 %v405, %v407
    %v409 = vadd.f32 %v405, %v408
    %vm410 = vweird.f32 %v404
    %vm411 = vweird.f32 %v405
    %vm412 = vmor %vm410, %vm411
    %v413 = vsel %vm412, %v405, %v409
    %v414 = vand.u32 2147483647, %v404
    %vm415 = vcmp.eq.f32.partialorder %v414, 8.507059e+37
    %v416 = vand.u32 %v404, 2147483648
    %v417 = vor.u32 1.1754944e-38, %v416
    %v418 = vsel %vm415, %v417, %v413
    %v419 = vmul.f32 1.0, %v418
    %420 = vmatpush.msra.mxu0 0.0
    %421 = vmatpush.msra.mxu0 0.0
    %422 = vmatpush.msra.mxu0 0.0
    %423 = vmatpush.msra.mxu0 0.0
    %424 = vmatpush.msra.mxu0 0.0
    %425 = vmatpush.msra.mxu0 0.0
    %426 = vmatpush.msra.mxu0 0.0
    %427 = vmatpush.msra.mxu0 0.0
    %428 = vmatpush.msra.mxu0 0.0
    %429 = vmatpush.msra.mxu0 0.0
    %430 = vmatpush.msra.mxu0 0.0
    %431 = vmatpush.msra.mxu0 0.0
    %432 = vmatpush.msra.mxu0 %v326
    %433 = vmatpush.msra.mxu0 %v325
    %434 = vmatpush.msra.mxu0 %v324
    %435 = vmatpush.msra.mxu0 %v323
    %436 = vmatmul.f32.gmra.mxu0 %v334
    %v437 = vpop.f32.mrf.mxu0
    %v438 = vadd.f32 0.0, %v437
    %439 = vdwg.mxu0
    %441 = vrot.lane.b32.xlu0 %v438, 64
    %v442 = vpop.permute.xlu0 %441
    %v444 = vadd.f32 %v308, %v442
    %v445 = vtanh.pop %v444
    %446 = vmatpush.msra.mxu0 0.0
    %447 = vmatpush.msra.mxu0 0.0
    %448 = vmatpush.msra.mxu0 0.0
    %449 = vmatpush.msra.mxu0 0.0
    %450 = vmatpush.msra.mxu0 0.0
    %451 = vmatpush.msra.mxu0 0.0
    %452 = vmatpush.msra.mxu0 0.0
    %453 = vmatpush.msra.mxu0 0.0
    %454 = vmatpush.msra.mxu0 0.0
    %455 = vmatpush.msra.mxu0 0.0
    %456 = vmatpush.msra.mxu0 0.0
    %457 = vmatpush.msra.mxu0 0.0
    %458 = vmatpush.msra.mxu0 %v331
    %459 = vmatpush.msra.mxu0 %v330
    %460 = vmatpush.msra.mxu0 %v329
    %461 = vmatpush.msra.mxu0 %v328
    %462 = vmatmul.f32.gmra.mxu0 %v334
    %v463 = vpop.f32.mrf.mxu0
    %v464 = vadd.f32 0.0, %v463
    %465 = vdwg.mxu0
    %467 = vrot.lane.b32.xlu0 %v464, 96
    %v468 = vpop.permute.xlu0 %467
    %v470 = vadd.f32 %v308, %v468
    %v471 = vxor.u32 %v470, 2147483648
    %v472 = vmul.f32 %v471, 1.442695
    %v473 = vpow.pop %v472
    %v474 = vadd.f32 %v473, 1.0
    %v475 = vrcp.pop %v474
    %v476 = vmul.f32 %v474, %v475
    %v477 = vsub.f32 1.0, %v476
    %v478 = vmul.f32 %v475, %v477
    %v479 = vadd.f32 %v475, %v478
    %vm480 = vweird.f32 %v474
    %vm481 = vweird.f32 %v475
    %vm482 = vmor %vm480, %vm481
    %v483 = vsel %vm482, %v475, %v479
    %v484 = vand.u32 2147483647, %v474
    %vm485 = vcmp.eq.f32.partialorder %v484, 8.507059e+37
    %v486 = vand.u32 %v474, 2147483648
    %v487 = vor.u32 1.1754944e-38, %v486
    %v488 = vsel %vm485, %v487, %v483
    %v489 = vmul.f32 1.0, %v488
    %v490 = vmul.f32 %v419, 0.0
    %492 = vrot.lane.b32.xlu0 %v445, 64
    %v493 = vpop.permute.xlu0 %492
    %v495 = vmul.f32 %v375, %v493
    %497 = vrot.lane.b32.xlu0 %v495, 32
    %v498 = vpop.permute.xlu0 %497
    %v500 = vadd.f32 %v490, %v498
    %v501 = vtanh.pop %v500
    %503 = vrot.lane.b32.xlu0 %v501, 64
    %v504 = vpop.permute.xlu0 %503
    %v506 = vmul.f32 %v489, %v504
    %508 = vrot.lane.b32.xlu0 %v506, 32
    %v509 = vpop.permute.xlu0 %508
    %vm511 = vcmask 254976
    %512 = vst.msk [vmem:[#allocation2] sm:$0x3] %vm511, %v509
    %v513 = vsel %vm332, %v509, 0
    %515 = vmatpush.msra.mxu0 0.0
    %516 = vmatpush.msra.mxu0 0.0
    %517 = vmatpush.msra.mxu0 0.0
    %518 = vmatpush.msra.mxu0 0.0
    %519 = vmatpush.msra.mxu0 0.0
    %520 = vmatpush.msra.mxu0 0.0
    %521 = vmatpush.msra.mxu0 0.0
    %522 = vmatpush.msra.mxu0 0.0
    %523 = vmatpush.msra.mxu0 0.0
    %524 = vmatpush.msra.mxu0 0.0
    %525 = vmatpush.msra.mxu0 0.0
    %526 = vmatpush.msra.mxu0 0.0
    %527 = vmatpush.msra.mxu0 %v316
    %528 = vmatpush.msra.mxu0 %v315
    %529 = vmatpush.msra.mxu0 %v314
    %530 = vmatpush.msra.mxu0 %v313
    %531 = vmatmul.f32.gmra.mxu0 %v513
    %v532 = vpop.f32.mrf.mxu0
    %v533 = vadd.f32 0.0, %v532
    %534 = vdwg.mxu0
    %v536 = vrot.slane %v533, 6
    %v538 = vadd.f32 %v308, %v536
    %v539 = vxor.u32 %v538, 2147483648
    %v540 = vmul.f32 %v539, 1.442695
    %v541 = vpow.pop %v540
    %v542 = vadd.f32 %v541, 1.0
    %v543 = vrcp.pop %v542
    %v544 = vmul.f32 %v542, %v543
    %v545 = vsub.f32 1.0, %v544
    %v546 = vmul.f32 %v543, %v545
    %v547 = vadd.f32 %v543, %v546
    %vm548 = vweird.f32 %v542
    %vm549 = vweird.f32 %v543
    %vm550 = vmor %vm548, %vm549
    %v551 = vsel %vm550, %v543, %v547
    %v552 = vand.u32 2147483647, %v542
    %vm553 = vcmp.eq.f32.partialorder %v552, 8.507059e+37
    %v554 = vand.u32 %v542, 2147483648
    %v555 = vor.u32 1.1754944e-38, %v554
    %v556 = vsel %vm553, %v555, %v551
    %v557 = vmul.f32 1.0, %v556
    %558 = vmatpush.msra.mxu0 0.0
    %559 = vmatpush.msra.mxu0 0.0
    %560 = vmatpush.msra.mxu0 0.0
    %561 = vmatpush.msra.mxu0 0.0
    %562 = vmatpush.msra.mxu0 0.0
    %563 = vmatpush.msra.mxu0 0.0
    %564 = vmatpush.msra.mxu0 0.0
    %565 = vmatpush.msra.mxu0 0.0
    %566 = vmatpush.msra.mxu0 0.0
    %567 = vmatpush.msra.mxu0 0.0
    %568 = vmatpush.msra.mxu0 0.0
    %569 = vmatpush.msra.mxu0 0.0
    %570 = vmatpush.msra.mxu0 %v321
    %571 = vmatpush.msra.mxu0 %v320
    %572 = vmatpush.msra.mxu0 %v319
    %573 = vmatpush.msra.mxu0 %v318
    %574 = vmatmul.f32.gmra.mxu0 %v513
    %v575 = vpop.f32.mrf.mxu0
    %v576 = vadd.f32 0.0, %v575
    %577 = vdwg.mxu0
    %v579 = vrot.slane %v576, 6
    %580 = vrot.lane.b32.xlu0 %v579, 32
    %v581 = vpop.permute.xlu0 %580
    %v583 = vadd.f32 %v308, %v581
    %v584 = vxor.u32 %v583, 2147483648
    %v585 = vmul.f32 %v584, 1.442695
    %v586 = vpow.pop %v585
    %v587 = vadd.f32 %v586, 1.0
    %v588 = vrcp.pop %v587
    %v589 = vmul.f32 %v587, %v588
    %v590 = vsub.f32 1.0, %v589
    %v591 = vmul.f32 %v588, %v590
    %v592 = vadd.f32 %v588, %v591
    %vm593 = vweird.f32 %v587
    %vm594 = vweird.f32 %v588
    %vm595 = vmor %vm593, %vm594
    %v596 = vsel %vm595, %v588, %v592
    %v597 = vand.u32 2147483647, %v587
    %vm598 = vcmp.eq.f32.partialorder %v597, 8.507059e+37
    %v599 = vand.u32 %v587, 2147483648
    %v600 = vor.u32 1.1754944e-38, %v599
    %v601 = vsel %vm598, %v600, %v596
    %v602 = vmul.f32 1.0, %v601
    %603 = vmatpush.msra.mxu0 0.0
    %604 = vmatpush.msra.mxu0 0.0
    %605 = vmatpush.msra.mxu0 0.0
    %606 = vmatpush.msra.mxu0 0.0
    %607 = vmatpush.msra.mxu0 0.0
    %608 = vmatpush.msra.mxu0 0.0
    %609 = vmatpush.msra.mxu0 0.0
    %610 = vmatpush.msra.mxu0 0.0
    %611 = vmatpush.msra.mxu0 0.0
    %612 = vmatpush.msra.mxu0 0.0
    %613 = vmatpush.msra.mxu0 0.0
    %614 = vmatpush.msra.mxu0 0.0
    %615 = vmatpush.msra.mxu0 %v326
    %616 = vmatpush.msra.mxu0 %v325
    %617 = vmatpush.msra.mxu0 %v324
    %618 = vmatpush.msra.mxu0 %v323
    %619 = vmatmul.f32.gmra.mxu0 %v513
    %v620 = vpop.f32.mrf.mxu0
    %v621 = vadd.f32 0.0, %v620
    %622 = vdwg.mxu0
    %v624 = vrot.slane %v621, 6
    %625 = vrot.lane.b32.xlu0 %v624, 64
    %v626 = vpop.permute.xlu0 %625
    %v628 = vadd.f32 %v308, %v626
    %v629 = vtanh.pop %v628
    %630 = vmatpush.msra.mxu0 0.0
    %631 = vmatpush.msra.mxu0 0.0
    %632 = vmatpush.msra.mxu0 0.0
    %633 = vmatpush.msra.mxu0 0.0
    %634 = vmatpush.msra.mxu0 0.0
    %635 = vmatpush.msra.mxu0 0.0
    %636 = vmatpush.msra.mxu0 0.0
    %637 = vmatpush.msra.mxu0 0.0
    %638 = vmatpush.msra.mxu0 0.0
    %639 = vmatpush.msra.mxu0 0.0
    %640 = vmatpush.msra.mxu0 0.0
    %641 = vmatpush.msra.mxu0 0.0
    %642 = vmatpush.msra.mxu0 %v331
    %643 = vmatpush.msra.mxu0 %v330
    %644 = vmatpush.msra.mxu0 %v329
    %645 = vmatpush.msra.mxu0 %v328
    %646 = vmatmul.f32.gmra.mxu0 %v513
    %v647 = vpop.f32.mrf.mxu0
    %v648 = vadd.f32 0.0, %v647
    %649 = vdwg.mxu0
    %v651 = vrot.slane %v648, 6
    %652 = vrot.lane.b32.xlu0 %v651, 96
    %v653 = vpop.permute.xlu0 %652
    %v655 = vadd.f32 %v308, %v653
    %v656 = vxor.u32 %v655, 2147483648
    %v657 = vmul.f32 %v656, 1.442695
    %v658 = vpow.pop %v657
    %v659 = vadd.f32 %v658, 1.0
    %v660 = vrcp.pop %v659
    %v661 = vmul.f32 %v659, %v660
    %v662 = vsub.f32 1.0, %v661
    %v663 = vmul.f32 %v660, %v662
    %v664 = vadd.f32 %v660, %v663
    %vm665 = vweird.f32 %v659
    %vm666 = vweird.f32 %v660
    %vm667 = vmor %vm665, %vm666
    %v668 = vsel %vm667, %v660, %v664
    %v669 = vand.u32 2147483647, %v659
    %vm670 = vcmp.eq.f32.partialorder %v669, 8.507059e+37
    %v671 = vand.u32 %v659, 2147483648
    %v672 = vor.u32 1.1754944e-38, %v671
    %v673 = vsel %vm670, %v672, %v668
    %v674 = vmul.f32 1.0, %v673
    %v676 = vrot.slane %v500, 6
    %v678 = vmul.f32 %v602, %v676
    %680 = vrot.lane.b32.xlu0 %v629, 64
    %v681 = vpop.permute.xlu0 %680
    %v683 = vmul.f32 %v557, %v681
    %685 = vrot.lane.b32.xlu0 %v683, 32
    %v686 = vpop.permute.xlu0 %685
    %v688 = vadd.f32 %v678, %v686
    %v689 = vtanh.pop %v688
    %691 = vrot.lane.b32.xlu0 %v689, 64
    %v692 = vpop.permute.xlu0 %691
    %v694 = vmul.f32 %v674, %v692
    %696 = vrot.lane.b32.xlu0 %v694, 32
    %v697 = vpop.permute.xlu0 %696
    %vm699 = vcmask 257026
    %700 = vst.msk [vmem:[#allocation2] sm:$0xc] %vm699, %v697
    %v701 = vrot.slane %v694, 2
    %702 = vrot.lane.b32.xlu0 %v701, 32
    %v703 = vpop.permute.xlu0 %702
    %v704 = vsel %vm332, %v703, 0
    %706 = vmatpush.msra.mxu0 0.0
    %707 = vmatpush.msra.mxu0 0.0
    %708 = vmatpush.msra.mxu0 0.0
    %709 = vmatpush.msra.mxu0 0.0
    %710 = vmatpush.msra.mxu0 0.0
    %711 = vmatpush.msra.mxu0 0.0
    %712 = vmatpush.msra.mxu0 0.0
    %713 = vmatpush.msra.mxu0 0.0
    %714 = vmatpush.msra.mxu0 0.0
    %715 = vmatpush.msra.mxu0 0.0
    %716 = vmatpush.msra.mxu0 0.0
    %717 = vmatpush.msra.mxu0 0.0
    %718 = vmatpush.msra.mxu0 %v316
    %719 = vmatpush.msra.mxu0 %v315
    %720 = vmatpush.msra.mxu0 %v314
    %721 = vmatpush.msra.mxu0 %v313
    %722 = vmatmul.f32.gmra.mxu0 %v704
    %v723 = vpop.f32.mrf.mxu0
    %v724 = vadd.f32 0.0, %v723
    %725 = vdwg.mxu0
    %v727 = vrot.slane %v724, 4
    %v729 = vadd.f32 %v308, %v727
    %v730 = vxor.u32 %v729, 2147483648
    %v731 = vmul.f32 %v730, 1.442695
    %v732 = vpow.pop %v731
    %v733 = vadd.f32 %v732, 1.0
    %v734 = vrcp.pop %v733
    %v735 = vmul.f32 %v733, %v734
    %v736 = vsub.f32 1.0, %v735
    %v737 = vmul.f32 %v734, %v736
    %v738 = vadd.f32 %v734, %v737
    %vm739 = vweird.f32 %v733
    %vm740 = vweird.f32 %v734
    %vm741 = vmor %vm739, %vm740
    %v742 = vsel %vm741, %v734, %v738
    %v743 = vand.u32 2147483647, %v733
    %vm744 = vcmp.eq.f32.partialorder %v743, 8.507059e+37
    %v745 = vand.u32 %v733, 2147483648
    %v746 = vor.u32 1.1754944e-38, %v745
    %v747 = vsel %vm744, %v746, %v742
    %v748 = vmul.f32 1.0, %v747
    %749 = vmatpush.msra.mxu0 0.0
    %750 = vmatpush.msra.mxu0 0.0
    %751 = vmatpush.msra.mxu0 0.0
    %752 = vmatpush.msra.mxu0 0.0
    %753 = vmatpush.msra.mxu0 0.0
    %754 = vmatpush.msra.mxu0 0.0
    %755 = vmatpush.msra.mxu0 0.0
    %756 = vmatpush.msra.mxu0 0.0
    %757 = vmatpush.msra.mxu0 0.0
    %758 = vmatpush.msra.mxu0 0.0
    %759 = vmatpush.msra.mxu0 0.0
    %760 = vmatpush.msra.mxu0 0.0
    %761 = vmatpush.msra.mxu0 %v321
    %762 = vmatpush.msra.mxu0 %v320
    %763 = vmatpush.msra.mxu0 %v319
    %764 = vmatpush.msra.mxu0 %v318
    %765 = vmatmul.f32.gmra.mxu0 %v704
    %v766 = vpop.f32.mrf.mxu0
    %v767 = vadd.f32 0.0, %v766
    %768 = vdwg.mxu0
    %v770 = vrot.slane %v767, 4
    %771 = vrot.lane.b32.xlu0 %v770, 32
    %v772 = vpop.permute.xlu0 %771
    %v774 = vadd.f32 %v308, %v772
    %v775 = vxor.u32 %v774, 2147483648
    %v776 = vmul.f32 %v775, 1.442695
    %v777 = vpow.pop %v776
    %v778 = vadd.f32 %v777, 1.0
    %v779 = vrcp.pop %v778
    %v780 = vmul.f32 %v778, %v779
    %v781 = vsub.f32 1.0, %v780
    %v782 = vmul.f32 %v779, %v781
    %v783 = vadd.f32 %v779, %v782
    %vm784 = vweird.f32 %v778
    %vm785 = vweird.f32 %v779
    %vm786 = vmor %vm784, %vm785
    %v787 = vsel %vm786, %v779, %v783
    %v788 = vand.u32 2147483647, %v778
    %vm789 = vcmp.eq.f32.partialorder %v788, 8.507059e+37
    %v790 = vand.u32 %v778, 2147483648
    %v791 = vor.u32 1.1754944e-38, %v790
    %v792 = vsel %vm789, %v791, %v787
    %v793 = vmul.f32 1.0, %v792
    %794 = vmatpush.msra.mxu0 0.0
    %795 = vmatpush.msra.mxu0 0.0
    %796 = vmatpush.msra.mxu0 0.0
    %797 = vmatpush.msra.mxu0 0.0
    %798 = vmatpush.msra.mxu0 0.0
    %799 = vmatpush.msra.mxu0 0.0
    %800 = vmatpush.msra.mxu0 0.0
    %801 = vmatpush.msra.mxu0 0.0
    %802 = vmatpush.msra.mxu0 0.0
    %803 = vmatpush.msra.mxu0 0.0
    %804 = vmatpush.msra.mxu0 0.0
    %805 = vmatpush.msra.mxu0 0.0
    %806 = vmatpush.msra.mxu0 %v326
    %807 = vmatpush.msra.mxu0 %v325
    %808 = vmatpush.msra.mxu0 %v324
    %809 = vmatpush.msra.mxu0 %v323
    %810 = vmatmul.f32.gmra.mxu0 %v704
    %v811 = vpop.f32.mrf.mxu0
    %v812 = vadd.f32 0.0, %v811
    %813 = vdwg.mxu0
    %v815 = vrot.slane %v812, 4
    %816 = vrot.lane.b32.xlu0 %v815, 64
    %v817 = vpop.permute.xlu0 %816
    %v819 = vadd.f32 %v308, %v817
    %v820 = vtanh.pop %v819
    %821 = vmatpush.msra.mxu0 0.0
    %822 = vmatpush.msra.mxu0 0.0
    %823 = vmatpush.msra.mxu0 0.0
    %824 = vmatpush.msra.mxu0 0.0
    %825 = vmatpush.msra.mxu0 0.0
    %826 = vmatpush.msra.mxu0 0.0
    %827 = vmatpush.msra.mxu0 0.0
    %828 = vmatpush.msra.mxu0 0.0
    %829 = vmatpush.msra.mxu0 0.0
    %830 = vmatpush.msra.mxu0 0.0
    %831 = vmatpush.msra.mxu0 0.0
    %832 = vmatpush.msra.mxu0 0.0
    %833 = vmatpush.msra.mxu0 %v331
    %834 = vmatpush.msra.mxu0 %v330
    %835 = vmatpush.msra.mxu0 %v329
    %836 = vmatpush.msra.mxu0 %v328
    %837 = vmatmul.f32.gmra.mxu0 %v704
    %v838 = vpop.f32.mrf.mxu0
    %v839 = vadd.f32 0.0, %v838
    %840 = vdwg.mxu0
    %v842 = vrot.slane %v839, 4
    %843 = vrot.lane.b32.xlu0 %v842, 96
    %v844 = vpop.permute.xlu0 %843
    %v846 = vadd.f32 %v308, %v844
    %v847 = vxor.u32 %v846, 2147483648
    %v848 = vmul.f32 %v847, 1.442695
    %v849 = vpow.pop %v848
    %v850 = vadd.f32 %v849, 1.0
    %v851 = vrcp.pop %v850
    %v852 = vmul.f32 %v850, %v851
    %v853 = vsub.f32 1.0, %v852
    %v854 = vmul.f32 %v851, %v853
    %v855 = vadd.f32 %v851, %v854
    %vm856 = vweird.f32 %v850
    %vm857 = vweird.f32 %v851
    %vm858 = vmor %vm856, %vm857
    %v859 = vsel %vm858, %v851, %v855
    %v860 = vand.u32 2147483647, %v850
    %vm861 = vcmp.eq.f32.partialorder %v860, 8.507059e+37
    %v862 = vand.u32 %v850, 2147483648
    %v863 = vor.u32 1.1754944e-38, %v862
    %v864 = vsel %vm861, %v863, %v859
    %v865 = vmul.f32 1.0, %v864
    %v867 = vrot.slane %v688, 6
    %v869 = vmul.f32 %v793, %v867
    %871 = vrot.lane.b32.xlu0 %v820, 64
    %v872 = vpop.permute.xlu0 %871
    %v874 = vmul.f32 %v748, %v872
    %876 = vrot.lane.b32.xlu0 %v874, 32
    %v877 = vpop.permute.xlu0 %876
    %v879 = vadd.f32 %v869, %v877
    %v880 = vtanh.pop %v879
    %882 = vrot.lane.b32.xlu0 %v880, 64
    %v883 = vpop.permute.xlu0 %882
    %v885 = vmul.f32 %v865, %v883
    %887 = vrot.lane.b32.xlu0 %v885, 32
    %v888 = vpop.permute.xlu0 %887
    %vm890 = vcmask 259076
    %891 = vst.msk [vmem:[#allocation2] sm:$0x30] %vm890, %v888
    %v892 = vrot.slane %v885, 4
    %893 = vrot.lane.b32.xlu0 %v892, 32
    %v894 = vpop.permute.xlu0 %893
    %v895 = vsel %vm332, %v894, 0
    %897 = vmatpush.msra.mxu0 0.0
    %898 = vmatpush.msra.mxu0 0.0
    %899 = vmatpush.msra.mxu0 0.0
    %900 = vmatpush.msra.mxu0 0.0
    %901 = vmatpush.msra.mxu0 0.0
    %902 = vmatpush.msra.mxu0 0.0
    %903 = vmatpush.msra.mxu0 0.0
    %904 = vmatpush.msra.mxu0 0.0
    %905 = vmatpush.msra.mxu0 0.0
    %906 = vmatpush.msra.mxu0 0.0
    %907 = vmatpush.msra.mxu0 0.0
    %908 = vmatpush.msra.mxu0 0.0
    %909 = vmatpush.msra.mxu0 %v316
    %910 = vmatpush.msra.mxu0 %v315
    %911 = vmatpush.msra.mxu0 %v314
    %912 = vmatpush.msra.mxu0 %v313
    %913 = vmatmul.f32.gmra.mxu0 %v895
    %v914 = vpop.f32.mrf.mxu0
    %v915 = vadd.f32 0.0, %v914
    %916 = vdwg.mxu0
    %v918 = vrot.slane %v915, 2
    %v920 = vadd.f32 %v308, %v918
    %v921 = vxor.u32 %v920, 2147483648
    %v922 = vmul.f32 %v921, 1.442695
    %v923 = vpow.pop %v922
    %v924 = vadd.f32 %v923, 1.0
    %v925 = vrcp.pop %v924
    %v926 = vmul.f32 %v924, %v925
    %v927 = vsub.f32 1.0, %v926
    %v928 = vmul.f32 %v925, %v927
    %v929 = vadd.f32 %v925, %v928
    %vm930 = vweird.f32 %v924
    %vm931 = vweird.f32 %v925
    %vm932 = vmor %vm930, %vm931
    %v933 = vsel %vm932, %v925, %v929
    %v934 = vand.u32 2147483647, %v924
    %vm935 = vcmp.eq.f32.partialorder %v934, 8.507059e+37
    %v936 = vand.u32 %v924, 2147483648
    %v937 = vor.u32 1.1754944e-38, %v936
    %v938 = vsel %vm935, %v937, %v933
    %v939 = vmul.f32 1.0, %v938
    %940 = vmatpush.msra.mxu0 0.0
    %941 = vmatpush.msra.mxu0 0.0
    %942 = vmatpush.msra.mxu0 0.0
    %943 = vmatpush.msra.mxu0 0.0
    %944 = vmatpush.msra.mxu0 0.0
    %945 = vmatpush.msra.mxu0 0.0
    %946 = vmatpush.msra.mxu0 0.0
    %947 = vmatpush.msra.mxu0 0.0
    %948 = vmatpush.msra.mxu0 0.0
    %949 = vmatpush.msra.mxu0 0.0
    %950 = vmatpush.msra.mxu0 0.0
    %951 = vmatpush.msra.mxu0 0.0
    %952 = vmatpush.msra.mxu0 %v321
    %953 = vmatpush.msra.mxu0 %v320
    %954 = vmatpush.msra.mxu0 %v319
    %955 = vmatpush.msra.mxu0 %v318
    %956 = vmatmul.f32.gmra.mxu0 %v895
    %v957 = vpop.f32.mrf.mxu0
    %v958 = vadd.f32 0.0, %v957
    %959 = vdwg.mxu0
    %v961 = vrot.slane %v958, 2
    %962 = vrot.lane.b32.xlu0 %v961, 32
    %v963 = vpop.permute.xlu0 %962
    %v965 = vadd.f32 %v308, %v963
    %v966 = vxor.u32 %v965, 2147483648
    %v967 = vmul.f32 %v966, 1.442695
    %v968 = vpow.pop %v967
    %v969 = vadd.f32 %v968, 1.0
    %v970 = vrcp.pop %v969
    %v971 = vmul.f32 %v969, %v970
    %v972 = vsub.f32 1.0, %v971
    %v973 = vmul.f32 %v970, %v972
    %v974 = vadd.f32 %v970, %v973
    %vm975 = vweird.f32 %v969
    %vm976 = vweird.f32 %v970
    %vm977 = vmor %vm975, %vm976
    %v978 = vsel %vm977, %v970, %v974
    %v979 = vand.u32 2147483647, %v969
    %vm980 = vcmp.eq.f32.partialorder %v979, 8.507059e+37
    %v981 = vand.u32 %v969, 2147483648
    %v982 = vor.u32 1.1754944e-38, %v981
    %v983 = vsel %vm980, %v982, %v978
    %v984 = vmul.f32 1.0, %v983
    %985 = vmatpush.msra.mxu0 0.0
    %986 = vmatpush.msra.mxu0 0.0
    %987 = vmatpush.msra.mxu0 0.0
    %988 = vmatpush.msra.mxu0 0.0
    %989 = vmatpush.msra.mxu0 0.0
    %990 = vmatpush.msra.mxu0 0.0
    %991 = vmatpush.msra.mxu0 0.0
    %992 = vmatpush.msra.mxu0 0.0
    %993 = vmatpush.msra.mxu0 0.0
    %994 = vmatpush.msra.mxu0 0.0
    %995 = vmatpush.msra.mxu0 0.0
    %996 = vmatpush.msra.mxu0 0.0
    %997 = vmatpush.msra.mxu0 %v326
    %998 = vmatpush.msra.mxu0 %v325
    %999 = vmatpush.msra.mxu0 %v324
    %1000 = vmatpush.msra.mxu0 %v323
    %1001 = vmatmul.f32.gmra.mxu0 %v895
    %v1002 = vpop.f32.mrf.mxu0
    %v1003 = vadd.f32 0.0, %v1002
    %1004 = vdwg.mxu0
    %v1006 = vrot.slane %v1003, 2
    %1007 = vrot.lane.b32.xlu0 %v1006, 64
    %v1008 = vpop.permute.xlu0 %1007
    %v1010 = vadd.f32 %v308, %v1008
    %v1011 = vtanh.pop %v1010
    %1012 = vmatpush.msra.mxu0 0.0
    %1013 = vmatpush.msra.mxu0 0.0
    %1014 = vmatpush.msra.mxu0 0.0
    %1015 = vmatpush.msra.mxu0 0.0
    %1016 = vmatpush.msra.mxu0 0.0
    %1017 = vmatpush.msra.mxu0 0.0
    %1018 = vmatpush.msra.mxu0 0.0
    %1019 = vmatpush.msra.mxu0 0.0
    %1020 = vmatpush.msra.mxu0 0.0
    %1021 = vmatpush.msra.mxu0 0.0
    %1022 = vmatpush.msra.mxu0 0.0
    %1023 = vmatpush.msra.mxu0 0.0
    %1024 = vmatpush.msra.mxu0 %v331
    %1025 = vmatpush.msra.mxu0 %v330
    %1026 = vmatpush.msra.mxu0 %v329
    %1027 = vmatpush.msra.mxu0 %v328
    %1028 = vmatmul.f32.gmra.mxu0 %v895
    %v1029 = vpop.f32.mrf.mxu0
    %v1030 = vadd.f32 0.0, %v1029
    %1031 = vdwg.mxu0
    %v1033 = vrot.slane %v1030, 2
    %1034 = vrot.lane.b32.xlu0 %v1033, 96
    %v1035 = vpop.permute.xlu0 %1034
    %v1037 = vadd.f32 %v308, %v1035
    %v1038 = vxor.u32 %v1037, 2147483648
    %v1039 = vmul.f32 %v1038, 1.442695
    %v1040 = vpow.pop %v1039
    %v1041 = vadd.f32 %v1040, 1.0
    %v1042 = vrcp.pop %v1041
    %v1043 = vmul.f32 %v1041, %v1042
    %v1044 = vsub.f32 1.0, %v1043
    %v1045 = vmul.f32 %v1042, %v1044
    %v1046 = vadd.f32 %v1042, %v1045
    %vm1047 = vweird.f32 %v1041
    %vm1048 = vweird.f32 %v1042
    %vm1049 = vmor %vm1047, %vm1048
    %v1050 = vsel %vm1049, %v1042, %v1046
    %v1051 = vand.u32 2147483647, %v1041
    %vm1052 = vcmp.eq.f32.partialorder %v1051, 8.507059e+37
    %v1053 = vand.u32 %v1041, 2147483648
    %v1054 = vor.u32 1.1754944e-38, %v1053
    %v1055 = vsel %vm1052, %v1054, %v1050
    %v1056 = vmul.f32 1.0, %v1055
    %v1058 = vrot.slane %v879, 6
    %v1060 = vmul.f32 %v984, %v1058
    %1062 = vrot.lane.b32.xlu0 %v1011, 64
    %v1063 = vpop.permute.xlu0 %1062
    %v1065 = vmul.f32 %v939, %v1063
    %1067 = vrot.lane.b32.xlu0 %v1065, 32
    %v1068 = vpop.permute.xlu0 %1067
    %v1070 = vadd.f32 %v1060, %v1068
    %v1071 = vtanh.pop %v1070
    %1073 = vrot.lane.b32.xlu0 %v1071, 64
    %v1074 = vpop.permute.xlu0 %1073
    %v1076 = vmul.f32 %v1056, %v1074
    %1078 = vrot.lane.b32.xlu0 %v1076, 32
    %v1079 = vpop.permute.xlu0 %1078
    %vm1081 = vcmask 261126
    %1082 = vst.msk [vmem:[#allocation2] sm:$0xc0] %vm1081, %v1079
    %v1083 = vrot.slane %v1076, 6
    %1084 = vrot.lane.b32.xlu0 %v1083, 32
    %v1085 = vpop.permute.xlu0 %1084
    %v1086 = vsel %vm332, %v1085, 0
    %1088 = vmatpush.msra.mxu0 0.0
    %1089 = vmatpush.msra.mxu0 0.0
    %1090 = vmatpush.msra.mxu0 0.0
    %1091 = vmatpush.msra.mxu0 0.0
    %1092 = vmatpush.msra.mxu0 0.0
    %1093 = vmatpush.msra.mxu0 0.0
    %1094 = vmatpush.msra.mxu0 0.0
    %1095 = vmatpush.msra.mxu0 0.0
    %1096 = vmatpush.msra.mxu0 0.0
    %1097 = vmatpush.msra.mxu0 0.0
    %1098 = vmatpush.msra.mxu0 0.0
    %1099 = vmatpush.msra.mxu0 0.0
    %1100 = vmatpush.msra.mxu0 %v316
    %1101 = vmatpush.msra.mxu0 %v315
    %1102 = vmatpush.msra.mxu0 %v314
    %1103 = vmatpush.msra.mxu0 %v313
    %1104 = vmatmul.f32.gmra.mxu0 %v1086
    %v1105 = vpop.f32.mrf.mxu0
    %v1106 = vadd.f32 0.0, %v1105
    %1107 = vdwg.mxu0
    %v1108 = vadd.f32 %v311, %v1106
    %v1109 = vxor.u32 %v1108, 2147483648
    %v1110 = vmul.f32 %v1109, 1.442695
    %v1111 = vpow.pop %v1110
    %v1112 = vadd.f32 %v1111, 1.0
    %v1113 = vrcp.pop %v1112
    %v1114 = vmul.f32 %v1112, %v1113
    %v1115 = vsub.f32 1.0, %v1114
    %v1116 = vmul.f32 %v1113, %v1115
    %v1117 = vadd.f32 %v1113, %v1116
    %vm1118 = vweird.f32 %v1112
    %vm1119 = vweird.f32 %v1113
    %vm1120 = vmor %vm1118, %vm1119
    %v1121 = vsel %vm1120, %v1113, %v1117
    %v1122 = vand.u32 2147483647, %v1112
    %vm1123 = vcmp.eq.f32.partialorder %v1122, 8.507059e+37
    %v1124 = vand.u32 %v1112, 2147483648
    %v1125 = vor.u32 1.1754944e-38, %v1124
    %v1126 = vsel %vm1123, %v1125, %v1121
    %v1127 = vmul.f32 1.0, %v1126
    %1128 = vmatpush.msra.mxu0 0.0
    %1129 = vmatpush.msra.mxu0 0.0
    %1130 = vmatpush.msra.mxu0 0.0
    %1131 = vmatpush.msra.mxu0 0.0
    %1132 = vmatpush.msra.mxu0 0.0
    %1133 = vmatpush.msra.mxu0 0.0
    %1134 = vmatpush.msra.mxu0 0.0
    %1135 = vmatpush.msra.mxu0 0.0
    %1136 = vmatpush.msra.mxu0 0.0
    %1137 = vmatpush.msra.mxu0 0.0
    %1138 = vmatpush.msra.mxu0 0.0
    %1139 = vmatpush.msra.mxu0 0.0
    %1140 = vmatpush.msra.mxu0 %v321
    %1141 = vmatpush.msra.mxu0 %v320
    %1142 = vmatpush.msra.mxu0 %v319
    %1143 = vmatpush.msra.mxu0 %v318
    %1144 = vmatmul.f32.gmra.mxu0 %v1086
    %v1145 = vpop.f32.mrf.mxu0
    %v1146 = vadd.f32 0.0, %v1145
    %1147 = vdwg.mxu0
    %1149 = vrot.lane.b32.xlu0 %v1146, 32
    %v1150 = vpop.permute.xlu0 %1149
    %v1152 = vadd.f32 %v311, %v1150
    %v1153 = vxor.u32 %v1152, 2147483648
    %v1154 = vmul.f32 %v1153, 1.442695
    %v1155 = vpow.pop %v1154
    %v1156 = vadd.f32 %v1155, 1.0
    %v1157 = vrcp.pop %v1156
    %v1158 = vmul.f32 %v1156, %v1157
    %v1159 = vsub.f32 1.0, %v1158
    %v1160 = vmul.f32 %v1157, %v1159
    %v1161 = vadd.f32 %v1157, %v1160
    %vm1162 = vweird.f32 %v1156
    %vm1163 = vweird.f32 %v1157
    %vm1164 = vmor %vm1162, %vm1163
    %v1165 = vsel %vm1164, %v1157, %v1161
    %v1166 = vand.u32 2147483647, %v1156
    %vm1167 = vcmp.eq.f32.partialorder %v1166, 8.507059e+37
    %v1168 = vand.u32 %v1156, 2147483648
    %v1169 = vor.u32 1.1754944e-38, %v1168
    %v1170 = vsel %vm1167, %v1169, %v1165
    %v1171 = vmul.f32 1.0, %v1170
    %1172 = vmatpush.msra.mxu0 0.0
    %1173 = vmatpush.msra.mxu0 0.0
    %1174 = vmatpush.msra.mxu0 0.0
    %1175 = vmatpush.msra.mxu0 0.0
    %1176 = vmatpush.msra.mxu0 0.0
    %1177 = vmatpush.msra.mxu0 0.0
    %1178 = vmatpush.msra.mxu0 0.0
    %1179 = vmatpush.msra.mxu0 0.0
    %1180 = vmatpush.msra.mxu0 0.0
    %1181 = vmatpush.msra.mxu0 0.0
    %1182 = vmatpush.msra.mxu0 0.0
    %1183 = vmatpush.msra.mxu0 0.0
    %1184 = vmatpush.msra.mxu0 %v326
    %1185 = vmatpush.msra.mxu0 %v325
    %1186 = vmatpush.msra.mxu0 %v324
    %1187 = vmatpush.msra.mxu0 %v323
    %1188 = vmatmul.f32.gmra.mxu0 %v1086
    %v1189 = vpop.f32.mrf.mxu0
    %v1190 = vadd.f32 0.0, %v1189
    %1191 = vdwg.mxu0
    %1193 = vrot.lane.b32.xlu0 %v1190, 64
    %v1194 = vpop.permute.xlu0 %1193
    %v1196 = vadd.f32 %v311, %v1194
    %v1197 = vtanh.pop %v1196
    %1198 = vmatpush.msra.mxu0 0.0
    %1199 = vmatpush.msra.mxu0 0.0
    %1200 = vmatpush.msra.mxu0 0.0
    %1201 = vmatpush.msra.mxu0 0.0
    %1202 = vmatpush.msra.mxu0 0.0
    %1203 = vmatpush.msra.mxu0 0.0
    %1204 = vmatpush.msra.mxu0 0.0
    %1205 = vmatpush.msra.mxu0 0.0
    %1206 = vmatpush.msra.mxu0 0.0
    %1207 = vmatpush.msra.mxu0 0.0
    %1208 = vmatpush.msra.mxu0 0.0
    %1209 = vmatpush.msra.mxu0 0.0
    %1210 = vmatpush.msra.mxu0 %v331
    %1211 = vmatpush.msra.mxu0 %v330
    %1212 = vmatpush.msra.mxu0 %v329
    %1213 = vmatpush.msra.mxu0 %v328
    %1214 = vmatmul.f32.gmra.mxu0 %v1086
    %v1215 = vpop.f32.mrf.mxu0
    %v1216 = vadd.f32 0.0, %v1215
    %1217 = vdwg.mxu0
    %1219 = vrot.lane.b32.xlu0 %v1216, 96
    %v1220 = vpop.permute.xlu0 %1219
    %v1222 = vadd.f32 %v311, %v1220
    %v1223 = vxor.u32 %v1222, 2147483648
    %v1224 = vmul.f32 %v1223, 1.442695
    %v1225 = vpow.pop %v1224
    %v1226 = vadd.f32 %v1225, 1.0
    %v1227 = vrcp.pop %v1226
    %v1228 = vmul.f32 %v1226, %v1227
    %v1229 = vsub.f32 1.0, %v1228
    %v1230 = vmul.f32 %v1227, %v1229
    %v1231 = vadd.f32 %v1227, %v1230
    %vm1232 = vweird.f32 %v1226
    %vm1233 = vweird.f32 %v1227
    %vm1234 = vmor %vm1232, %vm1233
    %v1235 = vsel %vm1234, %v1227, %v1231
    %v1236 = vand.u32 2147483647, %v1226
    %vm1237 = vcmp.eq.f32.partialorder %v1236, 8.507059e+37
    %v1238 = vand.u32 %v1226, 2147483648
    %v1239 = vor.u32 1.1754944e-38, %v1238
    %v1240 = vsel %vm1237, %v1239, %v1235
    %v1241 = vmul.f32 1.0, %v1240
    %v1243 = vrot.slane %v1070, 6
    %v1245 = vmul.f32 %v1171, %v1243
    %1247 = vrot.lane.b32.xlu0 %v1197, 64
    %v1248 = vpop.permute.xlu0 %1247
    %v1250 = vmul.f32 %v1127, %v1248
    %1252 = vrot.lane.b32.xlu0 %v1250, 32
    %v1253 = vpop.permute.xlu0 %1252
    %v1255 = vadd.f32 %v1245, %v1253
    %v1256 = vtanh.pop %v1255
    %1258 = vrot.lane.b32.xlu0 %v1256, 64
    %v1259 = vpop.permute.xlu0 %1258
    %v1261 = vmul.f32 %v1241, %v1259
    %1263 = vrot.lane.b32.xlu0 %v1261, 32
    %v1264 = vpop.permute.xlu0 %1263
    %1266 = vst.msk [vmem:[#allocation2 + $0x8] sm:$0x3] %vm511, %v1264
    %v1267 = vsel %vm332, %v1264, 0
    %1269 = vmatpush.msra.mxu0 0.0
    %1270 = vmatpush.msra.mxu0 0.0
    %1271 = vmatpush.msra.mxu0 0.0
    %1272 = vmatpush.msra.mxu0 0.0
    %1273 = vmatpush.msra.mxu0 0.0
    %1274 = vmatpush.msra.mxu0 0.0
    %1275 = vmatpush.msra.mxu0 0.0
    %1276 = vmatpush.msra.mxu0 0.0
    %1277 = vmatpush.msra.mxu0 0.0
    %1278 = vmatpush.msra.mxu0 0.0
    %1279 = vmatpush.msra.mxu0 0.0
    %1280 = vmatpush.msra.mxu0 0.0
    %1281 = vmatpush.msra.mxu0 %v316
    %1282 = vmatpush.msra.mxu0 %v315
    %1283 = vmatpush.msra.mxu0 %v314
    %1284 = vmatpush.msra.mxu0 %v313
    %1285 = vmatmul.f32.gmra.mxu0 %v1267
    %v1286 = vpop.f32.mrf.mxu0
    %v1287 = vadd.f32 0.0, %v1286
    %1288 = vdwg.mxu0
    %v1290 = vrot.slane %v1287, 6
    %v1292 = vadd.f32 %v311, %v1290
    %v1293 = vxor.u32 %v1292, 2147483648
    %v1294 = vmul.f32 %v1293, 1.442695
    %v1295 = vpow.pop %v1294
    %v1296 = vadd.f32 %v1295, 1.0
    %v1297 = vrcp.pop %v1296
    %v1298 = vmul.f32 %v1296, %v1297
    %v1299 = vsub.f32 1.0, %v1298
    %v1300 = vmul.f32 %v1297, %v1299
    %v1301 = vadd.f32 %v1297, %v1300
    %vm1302 = vweird.f32 %v1296
    %vm1303 = vweird.f32 %v1297
    %vm1304 = vmor %vm1302, %vm1303
    %v1305 = vsel %vm1304, %v1297, %v1301
    %v1306 = vand.u32 2147483647, %v1296
    %vm1307 = vcmp.eq.f32.partialorder %v1306, 8.507059e+37
    %v1308 = vand.u32 %v1296, 2147483648
    %v1309 = vor.u32 1.1754944e-38, %v1308
    %v1310 = vsel %vm1307, %v1309, %v1305
    %v1311 = vmul.f32 1.0, %v1310
    %1312 = vmatpush.msra.mxu0 0.0
    %1313 = vmatpush.msra.mxu0 0.0
    %1314 = vmatpush.msra.mxu0 0.0
    %1315 = vmatpush.msra.mxu0 0.0
    %1316 = vmatpush.msra.mxu0 0.0
    %1317 = vmatpush.msra.mxu0 0.0
    %1318 = vmatpush.msra.mxu0 0.0
    %1319 = vmatpush.msra.mxu0 0.0
    %1320 = vmatpush.msra.mxu0 0.0
    %1321 = vmatpush.msra.mxu0 0.0
    %1322 = vmatpush.msra.mxu0 0.0
    %1323 = vmatpush.msra.mxu0 0.0
    %1324 = vmatpush.msra.mxu0 %v321
    %1325 = vmatpush.msra.mxu0 %v320
    %1326 = vmatpush.msra.mxu0 %v319
    %1327 = vmatpush.msra.mxu0 %v318
    %1328 = vmatmul.f32.gmra.mxu0 %v1267
    %v1329 = vpop.f32.mrf.mxu0
    %v1330 = vadd.f32 0.0, %v1329
    %1331 = vdwg.mxu0
    %v1333 = vrot.slane %v1330, 6
    %1334 = vrot.lane.b32.xlu0 %v1333, 32
    %v1335 = vpop.permute.xlu0 %1334
    %v1337 = vadd.f32 %v311, %v1335
    %v1338 = vxor.u32 %v1337, 2147483648
    %v1339 = vmul.f32 %v1338, 1.442695
    %v1340 = vpow.pop %v1339
    %v1341 = vadd.f32 %v1340, 1.0
    %v1342 = vrcp.pop %v1341
    %v1343 = vmul.f32 %v1341, %v1342
    %v1344 = vsub.f32 1.0, %v1343
    %v1345 = vmul.f32 %v1342, %v1344
    %v1346 = vadd.f32 %v1342, %v1345
    %vm1347 = vweird.f32 %v1341
    %vm1348 = vweird.f32 %v1342
    %vm1349 = vmor %vm1347, %vm1348
    %v1350 = vsel %vm1349, %v1342, %v1346
    %v1351 = vand.u32 2147483647, %v1341
    %vm1352 = vcmp.eq.f32.partialorder %v1351, 8.507059e+37
    %v1353 = vand.u32 %v1341, 2147483648
    %v1354 = vor.u32 1.1754944e-38, %v1353
    %v1355 = vsel %vm1352, %v1354, %v1350
    %v1356 = vmul.f32 1.0, %v1355
    %1357 = vmatpush.msra.mxu0 0.0
    %1358 = vmatpush.msra.mxu0 0.0
    %1359 = vmatpush.msra.mxu0 0.0
    %1360 = vmatpush.msra.mxu0 0.0
    %1361 = vmatpush.msra.mxu0 0.0
    %1362 = vmatpush.msra.mxu0 0.0
    %1363 = vmatpush.msra.mxu0 0.0
    %1364 = vmatpush.msra.mxu0 0.0
    %1365 = vmatpush.msra.mxu0 0.0
    %1366 = vmatpush.msra.mxu0 0.0
    %1367 = vmatpush.msra.mxu0 0.0
    %1368 = vmatpush.msra.mxu0 0.0
    %1369 = vmatpush.msra.mxu0 %v326
    %1370 = vmatpush.msra.mxu0 %v325
    %1371 = vmatpush.msra.mxu0 %v324
    %1372 = vmatpush.msra.mxu0 %v323
    %1373 = vmatmul.f32.gmra.mxu0 %v1267
    %v1374 = vpop.f32.mrf.mxu0
    %v1375 = vadd.f32 0.0, %v1374
    %1376 = vdwg.mxu0
    %v1378 = vrot.slane %v1375, 6
    %1379 = vrot.lane.b32.xlu0 %v1378, 64
    %v1380 = vpop.permute.xlu0 %1379
    %v1382 = vadd.f32 %v311, %v1380
    %v1383 = vtanh.pop %v1382
    %1384 = vmatpush.msra.mxu0 0.0
    %1385 = vmatpush.msra.mxu0 0.0
    %1386 = vmatpush.msra.mxu0 0.0
    %1387 = vmatpush.msra.mxu0 0.0
    %1388 = vmatpush.msra.mxu0 0.0
    %1389 = vmatpush.msra.mxu0 0.0
    %1390 = vmatpush.msra.mxu0 0.0
    %1391 = vmatpush.msra.mxu0 0.0
    %1392 = vmatpush.msra.mxu0 0.0
    %1393 = vmatpush.msra.mxu0 0.0
    %1394 = vmatpush.msra.mxu0 0.0
    %1395 = vmatpush.msra.mxu0 0.0
    %1396 = vmatpush.msra.mxu0 %v331
    %1397 = vmatpush.msra.mxu0 %v330
    %1398 = vmatpush.msra.mxu0 %v329
    %1399 = vmatpush.msra.mxu0 %v328
    %1400 = vmatmul.f32.gmra.mxu0 %v1267
    %v1401 = vpop.f32.mrf.mxu0
    %v1402 = vadd.f32 0.0, %v1401
    %1403 = vdwg.mxu0
    %v1405 = vrot.slane %v1402, 6
    %1406 = vrot.lane.b32.xlu0 %v1405, 96
    %v1407 = vpop.permute.xlu0 %1406
    %v1409 = vadd.f32 %v311, %v1407
    %v1410 = vxor.u32 %v1409, 2147483648
    %v1411 = vmul.f32 %v1410, 1.442695
    %v1412 = vpow.pop %v1411
    %v1413 = vadd.f32 %v1412, 1.0
    %v1414 = vrcp.pop %v1413
    %v1415 = vmul.f32 %v1413, %v1414
    %v1416 = vsub.f32 1.0, %v1415
    %v1417 = vmul.f32 %v1414, %v1416
    %v1418 = vadd.f32 %v1414, %v1417
    %vm1419 = vweird.f32 %v1413
    %vm1420 = vweird.f32 %v1414
    %vm1421 = vmor %vm1419, %vm1420
    %v1422 = vsel %vm1421, %v1414, %v1418
    %v1423 = vand.u32 2147483647, %v1413
    %vm1424 = vcmp.eq.f32.partialorder %v1423, 8.507059e+37
    %v1425 = vand.u32 %v1413, 2147483648
    %v1426 = vor.u32 1.1754944e-38, %v1425
    %v1427 = vsel %vm1424, %v1426, %v1422
    %v1428 = vmul.f32 1.0, %v1427
    %v1430 = vrot.slane %v1255, 6
    %v1432 = vmul.f32 %v1356, %v1430
    %1434 = vrot.lane.b32.xlu0 %v1383, 64
    %v1435 = vpop.permute.xlu0 %1434
    %v1437 = vmul.f32 %v1311, %v1435
    %1439 = vrot.lane.b32.xlu0 %v1437, 32
    %v1440 = vpop.permute.xlu0 %1439
    %v1442 = vadd.f32 %v1432, %v1440
    %v1443 = vtanh.pop %v1442
    %1445 = vrot.lane.b32.xlu0 %v1443, 64
    %v1446 = vpop.permute.xlu0 %1445
    %v1448 = vmul.f32 %v1428, %v1446
    %1450 = vrot.lane.b32.xlu0 %v1448, 32
    %v1451 = vpop.permute.xlu0 %1450
    %1453 = vst.msk [vmem:[#allocation2 + $0x8] sm:$0xc] %vm699, %v1451
    %v1454 = vrot.slane %v1448, 2
    %1455 = vrot.lane.b32.xlu0 %v1454, 32
    %v1456 = vpop.permute.xlu0 %1455
    %v1457 = vsel %vm332, %v1456, 0
    %1459 = vmatpush.msra.mxu0 0.0
    %1460 = vmatpush.msra.mxu0 0.0
    %1461 = vmatpush.msra.mxu0 0.0
    %1462 = vmatpush.msra.mxu0 0.0
    %1463 = vmatpush.msra.mxu0 0.0
    %1464 = vmatpush.msra.mxu0 0.0
    %1465 = vmatpush.msra.mxu0 0.0
    %1466 = vmatpush.msra.mxu0 0.0
    %1467 = vmatpush.msra.mxu0 0.0
    %1468 = vmatpush.msra.mxu0 0.0
    %1469 = vmatpush.msra.mxu0 0.0
    %1470 = vmatpush.msra.mxu0 0.0
    %1471 = vmatpush.msra.mxu0 %v316
    %1472 = vmatpush.msra.mxu0 %v315
    %1473 = vmatpush.msra.mxu0 %v314
    %1474 = vmatpush.msra.mxu0 %v313
    %1475 = vmatmul.f32.gmra.mxu0 %v1457
    %v1476 = vpop.f32.mrf.mxu0
    %v1477 = vadd.f32 0.0, %v1476
    %1478 = vdwg.mxu0
    %v1480 = vrot.slane %v1477, 4
    %v1482 = vadd.f32 %v311, %v1480
    %v1483 = vxor.u32 %v1482, 2147483648
    %v1484 = vmul.f32 %v1483, 1.442695
    %v1485 = vpow.pop %v1484
    %v1486 = vadd.f32 %v1485, 1.0
    %v1487 = vrcp.pop %v1486
    %v1488 = vmul.f32 %v1486, %v1487
    %v1489 = vsub.f32 1.0, %v1488
    %v1490 = vmul.f32 %v1487, %v1489
    %v1491 = vadd.f32 %v1487, %v1490
    %vm1492 = vweird.f32 %v1486
    %vm1493 = vweird.f32 %v1487
    %vm1494 = vmor %vm1492, %vm1493
    %v1495 = vsel %vm1494, %v1487, %v1491
    %v1496 = vand.u32 2147483647, %v1486
    %vm1497 = vcmp.eq.f32.partialorder %v1496, 8.507059e+37
    %v1498 = vand.u32 %v1486, 2147483648
    %v1499 = vor.u32 1.1754944e-38, %v1498
    %v1500 = vsel %vm1497, %v1499, %v1495
    %v1501 = vmul.f32 1.0, %v1500
    %1502 = vmatpush.msra.mxu0 0.0
    %1503 = vmatpush.msra.mxu0 0.0
    %1504 = vmatpush.msra.mxu0 0.0
    %1505 = vmatpush.msra.mxu0 0.0
    %1506 = vmatpush.msra.mxu0 0.0
    %1507 = vmatpush.msra.mxu0 0.0
    %1508 = vmatpush.msra.mxu0 0.0
    %1509 = vmatpush.msra.mxu0 0.0
    %1510 = vmatpush.msra.mxu0 0.0
    %1511 = vmatpush.msra.mxu0 0.0
    %1512 = vmatpush.msra.mxu0 0.0
    %1513 = vmatpush.msra.mxu0 0.0
    %1514 = vmatpush.msra.mxu0 %v321
    %1515 = vmatpush.msra.mxu0 %v320
    %1516 = vmatpush.msra.mxu0 %v319
    %1517 = vmatpush.msra.mxu0 %v318
    %1518 = vmatmul.f32.gmra.mxu0 %v1457
    %v1519 = vpop.f32.mrf.mxu0
    %v1520 = vadd.f32 0.0, %v1519
    %1521 = vdwg.mxu0
    %v1523 = vrot.slane %v1520, 4
    %1524 = vrot.lane.b32.xlu0 %v1523, 32
    %v1525 = vpop.permute.xlu0 %1524
    %v1527 = vadd.f32 %v311, %v1525
    %v1528 = vxor.u32 %v1527, 2147483648
    %v1529 = vmul.f32 %v1528, 1.442695
    %v1530 = vpow.pop %v1529
    %v1531 = vadd.f32 %v1530, 1.0
    %v1532 = vrcp.pop %v1531
    %v1533 = vmul.f32 %v1531, %v1532
    %v1534 = vsub.f32 1.0, %v1533
    %v1535 = vmul.f32 %v1532, %v1534
    %v1536 = vadd.f32 %v1532, %v1535
    %vm1537 = vweird.f32 %v1531
    %vm1538 = vweird.f32 %v1532
    %vm1539 = vmor %vm1537, %vm1538
    %v1540 = vsel %vm1539, %v1532, %v1536
    %v1541 = vand.u32 2147483647, %v1531
    %vm1542 = vcmp.eq.f32.partialorder %v1541, 8.507059e+37
    %v1543 = vand.u32 %v1531, 2147483648
    %v1544 = vor.u32 1.1754944e-38, %v1543
    %v1545 = vsel %vm1542, %v1544, %v1540
    %v1546 = vmul.f32 1.0, %v1545
    %1547 = vmatpush.msra.mxu0 0.0
    %1548 = vmatpush.msra.mxu0 0.0
    %1549 = vmatpush.msra.mxu0 0.0
    %1550 = vmatpush.msra.mxu0 0.0
    %1551 = vmatpush.msra.mxu0 0.0
    %1552 = vmatpush.msra.mxu0 0.0
    %1553 = vmatpush.msra.mxu0 0.0
    %1554 = vmatpush.msra.mxu0 0.0
    %1555 = vmatpush.msra.mxu0 0.0
    %1556 = vmatpush.msra.mxu0 0.0
    %1557 = vmatpush.msra.mxu0 0.0
    %1558 = vmatpush.msra.mxu0 0.0
    %1559 = vmatpush.msra.mxu0 %v326
    %1560 = vmatpush.msra.mxu0 %v325
    %1561 = vmatpush.msra.mxu0 %v324
    %1562 = vmatpush.msra.mxu0 %v323
    %1563 = vmatmul.f32.gmra.mxu0 %v1457
    %v1564 = vpop.f32.mrf.mxu0
    %v1565 = vadd.f32 0.0, %v1564
    %1566 = vdwg.mxu0
    %v1568 = vrot.slane %v1565, 4
    %1569 = vrot.lane.b32.xlu0 %v1568, 64
    %v1570 = vpop.permute.xlu0 %1569
    %v1572 = vadd.f32 %v311, %v1570
    %v1573 = vtanh.pop %v1572
    %1574 = vmatpush.msra.mxu0 0.0
    %1575 = vmatpush.msra.mxu0 0.0
    %1576 = vmatpush.msra.mxu0 0.0
    %1577 = vmatpush.msra.mxu0 0.0
    %1578 = vmatpush.msra.mxu0 0.0
    %1579 = vmatpush.msra.mxu0 0.0
    %1580 = vmatpush.msra.mxu0 0.0
    %1581 = vmatpush.msra.mxu0 0.0
    %1582 = vmatpush.msra.mxu0 0.0
    %1583 = vmatpush.msra.mxu0 0.0
    %1584 = vmatpush.msra.mxu0 0.0
    %1585 = vmatpush.msra.mxu0 0.0
    %1586 = vmatpush.msra.mxu0 %v331
    %1587 = vmatpush.msra.mxu0 %v330
    %1588 = vmatpush.msra.mxu0 %v329
    %1589 = vmatpush.msra.mxu0 %v328
    %1590 = vmatmul.f32.gmra.mxu0 %v1457
    %v1591 = vpop.f32.mrf.mxu0
    %v1592 = vadd.f32 0.0, %v1591
    %1593 = vdwg.mxu0
    %v1595 = vrot.slane %v1592, 4
    %1596 = vrot.lane.b32.xlu0 %v1595, 96
    %v1597 = vpop.permute.xlu0 %1596
    %v1599 = vadd.f32 %v311, %v1597
    %v1600 = vxor.u32 %v1599, 2147483648
    %v1601 = vmul.f32 %v1600, 1.442695
    %v1602 = vpow.pop %v1601
    %v1603 = vadd.f32 %v1602, 1.0
    %v1604 = vrcp.pop %v1603
    %v1605 = vmul.f32 %v1603, %v1604
    %v1606 = vsub.f32 1.0, %v1605
    %v1607 = vmul.f32 %v1604, %v1606
    %v1608 = vadd.f32 %v1604, %v1607
    %vm1609 = vweird.f32 %v1603
    %vm1610 = vweird.f32 %v1604
    %vm1611 = vmor %vm1609, %vm1610
    %v1612 = vsel %vm1611, %v1604, %v1608
    %v1613 = vand.u32 2147483647, %v1603
    %vm1614 = vcmp.eq.f32.partialorder %v1613, 8.507059e+37
    %v1615 = vand.u32 %v1603, 2147483648
    %v1616 = vor.u32 1.1754944e-38, %v1615
    %v1617 = vsel %vm1614, %v1616, %v1612
    %v1618 = vmul.f32 1.0, %v1617
    %v1620 = vrot.slane %v1442, 6
    %v1622 = vmul.f32 %v1546, %v1620
    %1624 = vrot.lane.b32.xlu0 %v1573, 64
    %v1625 = vpop.permute.xlu0 %1624
    %v1627 = vmul.f32 %v1501, %v1625
    %1629 = vrot.lane.b32.xlu0 %v1627, 32
    %v1630 = vpop.permute.xlu0 %1629
    %v1632 = vadd.f32 %v1622, %v1630
    %v1633 = vtanh.pop %v1632
    %1635 = vrot.lane.b32.xlu0 %v1633, 64
    %v1636 = vpop.permute.xlu0 %1635
    %v1638 = vmul.f32 %v1618, %v1636
    %1640 = vrot.lane.b32.xlu0 %v1638, 32
    %v1641 = vpop.permute.xlu0 %1640
    %1643 = vst.msk [vmem:[#allocation2 + $0x8] sm:$0x30] %vm890, %v1641
    %v1644 = vrot.slane %v1638, 4
    %1645 = vrot.lane.b32.xlu0 %v1644, 32
    %v1646 = vpop.permute.xlu0 %1645
    %v1647 = vsel %vm332, %v1646, 0
    %1649 = vmatpush.msra.mxu0 0.0
    %1650 = vmatpush.msra.mxu0 0.0
    %1651 = vmatpush.msra.mxu0 0.0
    %1652 = vmatpush.msra.mxu0 0.0
    %1653 = vmatpush.msra.mxu0 0.0
    %1654 = vmatpush.msra.mxu0 0.0
    %1655 = vmatpush.msra.mxu0 0.0
    %1656 = vmatpush.msra.mxu0 0.0
    %1657 = vmatpush.msra.mxu0 0.0
    %1658 = vmatpush.msra.mxu0 0.0
    %1659 = vmatpush.msra.mxu0 0.0
    %1660 = vmatpush.msra.mxu0 0.0
    %1661 = vmatpush.msra.mxu0 %v316
    %1662 = vmatpush.msra.mxu0 %v315
    %1663 = vmatpush.msra.mxu0 %v314
    %1664 = vmatpush.msra.mxu0 %v313
    %1665 = vmatmul.f32.gmra.mxu0 %v1647
    %v1666 = vpop.f32.mrf.mxu0
    %v1667 = vadd.f32 0.0, %v1666
    %1668 = vdwg.mxu0
    %v1670 = vrot.slane %v1667, 2
    %v1672 = vadd.f32 %v311, %v1670
    %v1673 = vxor.u32 %v1672, 2147483648
    %v1674 = vmul.f32 %v1673, 1.442695
    %v1675 = vpow.pop %v1674
    %v1676 = vadd.f32 %v1675, 1.0
    %v1677 = vrcp.pop %v1676
    %v1678 = vmul.f32 %v1676, %v1677
    %v1679 = vsub.f32 1.0, %v1678
    %v1680 = vmul.f32 %v1677, %v1679
    %v1681 = vadd.f32 %v1677, %v1680
    %vm1682 = vweird.f32 %v1676
    %vm1683 = vweird.f32 %v1677
    %vm1684 = vmor %vm1682, %vm1683
    %v1685 = vsel %vm1684, %v1677, %v1681
    %v1686 = vand.u32 2147483647, %v1676
    %vm1687 = vcmp.eq.f32.partialorder %v1686, 8.507059e+37
    %v1688 = vand.u32 %v1676, 2147483648
    %v1689 = vor.u32 1.1754944e-38, %v1688
    %v1690 = vsel %vm1687, %v1689, %v1685
    %v1691 = vmul.f32 1.0, %v1690
    %1692 = vmatpush.msra.mxu0 0.0
    %1693 = vmatpush.msra.mxu0 0.0
    %1694 = vmatpush.msra.mxu0 0.0
    %1695 = vmatpush.msra.mxu0 0.0
    %1696 = vmatpush.msra.mxu0 0.0
    %1697 = vmatpush.msra.mxu0 0.0
    %1698 = vmatpush.msra.mxu0 0.0
    %1699 = vmatpush.msra.mxu0 0.0
    %1700 = vmatpush.msra.mxu0 0.0
    %1701 = vmatpush.msra.mxu0 0.0
    %1702 = vmatpush.msra.mxu0 0.0
    %1703 = vmatpush.msra.mxu0 0.0
    %1704 = vmatpush.msra.mxu0 %v321
    %1705 = vmatpush.msra.mxu0 %v320
    %1706 = vmatpush.msra.mxu0 %v319
    %1707 = vmatpush.msra.mxu0 %v318
    %1708 = vmatmul.f32.gmra.mxu0 %v1647
    %v1709 = vpop.f32.mrf.mxu0
    %v1710 = vadd.f32 0.0, %v1709
    %1711 = vdwg.mxu0
    %v1713 = vrot.slane %v1710, 2
    %1714 = vrot.lane.b32.xlu0 %v1713, 32
    %v1715 = vpop.permute.xlu0 %1714
    %v1717 = vadd.f32 %v311, %v1715
    %v1718 = vxor.u32 %v1717, 2147483648
    %v1719 = vmul.f32 %v1718, 1.442695
    %v1720 = vpow.pop %v1719
    %v1721 = vadd.f32 %v1720, 1.0
    %v1722 = vrcp.pop %v1721
    %v1723 = vmul.f32 %v1721, %v1722
    %v1724 = vsub.f32 1.0, %v1723
    %v1725 = vmul.f32 %v1722, %v1724
    %v1726 = vadd.f32 %v1722, %v1725
    %vm1727 = vweird.f32 %v1721
    %vm1728 = vweird.f32 %v1722
    %vm1729 = vmor %vm1727, %vm1728
    %v1730 = vsel %vm1729, %v1722, %v1726
    %v1731 = vand.u32 2147483647, %v1721
    %vm1732 = vcmp.eq.f32.partialorder %v1731, 8.507059e+37
    %v1733 = vand.u32 %v1721, 2147483648
    %v1734 = vor.u32 1.1754944e-38, %v1733
    %v1735 = vsel %vm1732, %v1734, %v1730
    %v1736 = vmul.f32 1.0, %v1735
    %1737 = vmatpush.msra.mxu0 0.0
    %1738 = vmatpush.msra.mxu0 0.0
    %1739 = vmatpush.msra.mxu0 0.0
    %1740 = vmatpush.msra.mxu0 0.0
    %1741 = vmatpush.msra.mxu0 0.0
    %1742 = vmatpush.msra.mxu0 0.0
    %1743 = vmatpush.msra.mxu0 0.0
    %1744 = vmatpush.msra.mxu0 0.0
    %1745 = vmatpush.msra.mxu0 0.0
    %1746 = vmatpush.msra.mxu0 0.0
    %1747 = vmatpush.msra.mxu0 0.0
    %1748 = vmatpush.msra.mxu0 0.0
    %1749 = vmatpush.msra.mxu0 %v326
    %1750 = vmatpush.msra.mxu0 %v325
    %1751 = vmatpush.msra.mxu0 %v324
    %1752 = vmatpush.msra.mxu0 %v323
    %1753 = vmatmul.f32.gmra.mxu0 %v1647
    %v1754 = vpop.f32.mrf.mxu0
    %v1755 = vadd.f32 0.0, %v1754
    %1756 = vdwg.mxu0
    %v1758 = vrot.slane %v1755, 2
    %1759 = vrot.lane.b32.xlu0 %v1758, 64
    %v1760 = vpop.permute.xlu0 %1759
    %v1762 = vadd.f32 %v311, %v1760
    %v1763 = vtanh.pop %v1762
    %1764 = vmatpush.msra.mxu0 0.0
    %1765 = vmatpush.msra.mxu0 0.0
    %1766 = vmatpush.msra.mxu0 0.0
    %1767 = vmatpush.msra.mxu0 0.0
    %1768 = vmatpush.msra.mxu0 0.0
    %1769 = vmatpush.msra.mxu0 0.0
    %1770 = vmatpush.msra.mxu0 0.0
    %1771 = vmatpush.msra.mxu0 0.0
    %1772 = vmatpush.msra.mxu0 0.0
    %1773 = vmatpush.msra.mxu0 0.0
    %1774 = vmatpush.msra.mxu0 0.0
    %1775 = vmatpush.msra.mxu0 0.0
    %1776 = vmatpush.msra.mxu0 %v331
    %1777 = vmatpush.msra.mxu0 %v330
    %1778 = vmatpush.msra.mxu0 %v329
    %1779 = vmatpush.msra.mxu0 %v328
    %1780 = vmatmul.f32.gmra.mxu0 %v1647
    %v1781 = vpop.f32.mrf.mxu0
    %v1782 = vadd.f32 0.0, %v1781
    %1783 = vdwg.mxu0
    %v1785 = vrot.slane %v1782, 2
    %1786 = vrot.lane.b32.xlu0 %v1785, 96
    %v1787 = vpop.permute.xlu0 %1786
    %v1789 = vadd.f32 %v311, %v1787
    %v1790 = vxor.u32 %v1789, 2147483648
    %v1791 = vmul.f32 %v1790, 1.442695
    %v1792 = vpow.pop %v1791
    %v1793 = vadd.f32 %v1792, 1.0
    %v1794 = vrcp.pop %v1793
    %v1795 = vmul.f32 %v1793, %v1794
    %v1796 = vsub.f32 1.0, %v1795
    %v1797 = vmul.f32 %v1794, %v1796
    %v1798 = vadd.f32 %v1794, %v1797
    %vm1799 = vweird.f32 %v1793
    %vm1800 = vweird.f32 %v1794
    %vm1801 = vmor %vm1799, %vm1800
    %v1802 = vsel %vm1801, %v1794, %v1798
    %v1803 = vand.u32 2147483647, %v1793
    %vm1804 = vcmp.eq.f32.partialorder %v1803, 8.507059e+37
    %v1805 = vand.u32 %v1793, 2147483648
    %v1806 = vor.u32 1.1754944e-38, %v1805
    %v1807 = vsel %vm1804, %v1806, %v1802
    %v1808 = vmul.f32 1.0, %v1807
    %v1810 = vrot.slane %v1632, 6
    %v1812 = vmul.f32 %v1736, %v1810
    %1814 = vrot.lane.b32.xlu0 %v1763, 64
    %v1815 = vpop.permute.xlu0 %1814
    %v1817 = vmul.f32 %v1691, %v1815
    %1819 = vrot.lane.b32.xlu0 %v1817, 32
    %v1820 = vpop.permute.xlu0 %1819
    %v1822 = vadd.f32 %v1812, %v1820
    %v1823 = vtanh.pop %v1822
    %1825 = vrot.lane.b32.xlu0 %v1823, 64
    %v1826 = vpop.permute.xlu0 %1825
    %v1828 = vmul.f32 %v1808, %v1826
    %1830 = vrot.lane.b32.xlu0 %v1828, 32
    %v1831 = vpop.permute.xlu0 %1830
    %1833 = vst.msk [vmem:[#allocation2 + $0x8] sm:$0xc0] %vm1081, %v1831
    %v1834 = vld [vmem:[#allocation2] sm:$0xff]
    %v1835 = vld [vmem:[#allocation2 + $0x8] sm:$0xff]
    %v1836 = vld [vmem:[#allocation10] sm:$0xff]
    %v1837 = vld [vmem:[#allocation10 + $0x8] sm:$0xff]
    %v1838 = vld [vmem:[#allocation10 + $0x10] sm:$0xff]
    %v1839 = vld [vmem:[#allocation10 + $0x18] sm:$0xff]
    %v1840 = vld [vmem:[%s6] sm:$0x1]
    %v1842 = vperm.slane %v1840, 0
    %v1845 = vsel %vm332, %v1834, 0
    %v1848 = vsel %vm332, %v1835, 0
    %1850 = vmatpush.msra.mxu0 0.0
    %1851 = vmatpush.msra.mxu0 0.0
    %1852 = vmatpush.msra.mxu0 0.0
    %1853 = vmatpush.msra.mxu0 0.0
    %1854 = vmatpush.msra.mxu0 0.0
    %1855 = vmatpush.msra.mxu0 0.0
    %1856 = vmatpush.msra.mxu0 0.0
    %1857 = vmatpush.msra.mxu0 0.0
    %1858 = vmatpush.msra.mxu0 0.0
    %1859 = vmatpush.msra.mxu0 0.0
    %1860 = vmatpush.msra.mxu0 0.0
    %1861 = vmatpush.msra.mxu0 0.0
    %1862 = vmatpush.msra.mxu0 %v1839
    %1863 = vmatpush.msra.mxu0 %v1838
    %1864 = vmatpush.msra.mxu0 %v1837
    %1865 = vmatpush.msra.mxu0 %v1836
    %1866 = vmatmul.f32.gmra.mxu0 %v1845
    %v1867 = vpop.f32.mrf.mxu0
    %v1868 = vadd.f32 %v1842, %v1867
    %1869 = vmatmul.f32.gmra.mxu0 %v1848
    %v1870 = vpop.f32.mrf.mxu0
    %v1871 = vadd.f32 %v1842, %v1870
    %1872 = vdwg.mxu0
    %v1873 = vld [vmem:[#allocation12] sm:$0xff]
    %v1874 = vld [vmem:[#allocation12 + $0x8] sm:$0xff]
    %v1875 = vld [vmem:[#allocation12 + $0x10] sm:$0xff]
    %v1876 = vld [vmem:[#allocation12 + $0x18] sm:$0xff]
    %s1877 = scalar_lea.vmem [#allocation12], 32
    %v1878 = vld [vmem:[%s1877] sm:$0xff]
    %v1879 = vld [vmem:[%s1877 + $0x8] sm:$0xff]
    %v1880 = vld [vmem:[%s1877 + $0x10] sm:$0xff]
    %v1881 = vld [vmem:[%s1877 + $0x18] sm:$0xff]
    %s1882 = scalar_lea.vmem [#allocation12], 64
    %v1883 = vld [vmem:[%s1882] sm:$0xff]
    %v1884 = vld [vmem:[%s1882 + $0x8] sm:$0xff]
    %v1885 = vld [vmem:[%s1882 + $0x10] sm:$0xff]
    %v1886 = vld [vmem:[%s1882 + $0x18] sm:$0xff]
    %s1887 = scalar_lea.vmem [#allocation12], 96
    %v1888 = vld [vmem:[%s1887] sm:$0xff]
    %v1889 = vld [vmem:[%s1887 + $0x8] sm:$0xff]
    %v1890 = vld [vmem:[%s1887 + $0x10] sm:$0xff]
    %v1891 = vld [vmem:[%s1887 + $0x18] sm:$0xff]
    %1892 = vmatpush.msra.mxu0 0.0
    %1893 = vmatpush.msra.mxu0 0.0
    %1894 = vmatpush.msra.mxu0 0.0
    %1895 = vmatpush.msra.mxu0 0.0
    %1896 = vmatpush.msra.mxu0 0.0
    %1897 = vmatpush.msra.mxu0 0.0
    %1898 = vmatpush.msra.mxu0 0.0
    %1899 = vmatpush.msra.mxu0 0.0
    %1900 = vmatpush.msra.mxu0 0.0
    %1901 = vmatpush.msra.mxu0 0.0
    %1902 = vmatpush.msra.mxu0 0.0
    %1903 = vmatpush.msra.mxu0 0.0
    %1904 = vmatpush.msra.mxu0 %v1876
    %1905 = vmatpush.msra.mxu0 %v1875
    %1906 = vmatpush.msra.mxu0 %v1874
    %1907 = vmatpush.msra.mxu0 %v1873
    %1908 = vmatmul.f32.gmra.mxu0 %v334
    %v1909 = vpop.f32.mrf.mxu0
    %v1910 = vadd.f32 0.0, %v1909
    %1911 = vdwg.mxu0
    %v1912 = vadd.f32 %v1868, %v1910
    %v1913 = vxor.u32 %v1912, 2147483648
    %v1914 = vmul.f32 %v1913, 1.442695
    %v1915 = vpow.pop %v1914
    %v1916 = vadd.f32 %v1915, 1.0
    %v1917 = vrcp.pop %v1916
    %v1918 = vmul.f32 %v1916, %v1917
    %v1919 = vsub.f32 1.0, %v1918
    %v1920 = vmul.f32 %v1917, %v1919
    %v1921 = vadd.f32 %v1917, %v1920
    %vm1922 = vweird.f32 %v1916
    %vm1923 = vweird.f32 %v1917
    %vm1924 = vmor %vm1922, %vm1923
    %v1925 = vsel %vm1924, %v1917, %v1921
    %v1926 = vand.u32 2147483647, %v1916
    %vm1927 = vcmp.eq.f32.partialorder %v1926, 8.507059e+37
    %v1928 = vand.u32 %v1916, 2147483648
    %v1929 = vor.u32 1.1754944e-38, %v1928
    %v1930 = vsel %vm1927, %v1929, %v1925
    %v1931 = vmul.f32 1.0, %v1930
    %1932 = vmatpush.msra.mxu0 0.0
    %1933 = vmatpush.msra.mxu0 0.0
    %1934 = vmatpush.msra.mxu0 0.0
    %1935 = vmatpush.msra.mxu0 0.0
    %1936 = vmatpush.msra.mxu0 0.0
    %1937 = vmatpush.msra.mxu0 0.0
    %1938 = vmatpush.msra.mxu0 0.0
    %1939 = vmatpush.msra.mxu0 0.0
    %1940 = vmatpush.msra.mxu0 0.0
    %1941 = vmatpush.msra.mxu0 0.0
    %1942 = vmatpush.msra.mxu0 0.0
    %1943 = vmatpush.msra.mxu0 0.0
    %1944 = vmatpush.msra.mxu0 %v1881
    %1945 = vmatpush.msra.mxu0 %v1880
    %1946 = vmatpush.msra.mxu0 %v1879
    %1947 = vmatpush.msra.mxu0 %v1878
    %1948 = vmatmul.f32.gmra.mxu0 %v334
    %v1949 = vpop.f32.mrf.mxu0
    %v1950 = vadd.f32 0.0, %v1949
    %1951 = vdwg.mxu0
    %1953 = vrot.lane.b32.xlu0 %v1950, 32
    %v1954 = vpop.permute.xlu0 %1953
    %v1956 = vadd.f32 %v1868, %v1954
    %v1957 = vxor.u32 %v1956, 2147483648
    %v1958 = vmul.f32 %v1957, 1.442695
    %v1959 = vpow.pop %v1958
    %v1960 = vadd.f32 %v1959, 1.0
    %v1961 = vrcp.pop %v1960
    %v1962 = vmul.f32 %v1960, %v1961
    %v1963 = vsub.f32 1.0, %v1962
    %v1964 = vmul.f32 %v1961, %v1963
    %v1965 = vadd.f32 %v1961, %v1964
    %vm1966 = vweird.f32 %v1960
    %vm1967 = vweird.f32 %v1961
    %vm1968 = vmor %vm1966, %vm1967
    %v1969 = vsel %vm1968, %v1961, %v1965
    %v1970 = vand.u32 2147483647, %v1960
    %vm1971 = vcmp.eq.f32.partialorder %v1970, 8.507059e+37
    %v1972 = vand.u32 %v1960, 2147483648
    %v1973 = vor.u32 1.1754944e-38, %v1972
    %v1974 = vsel %vm1971, %v1973, %v1969
    %v1975 = vmul.f32 1.0, %v1974
    %1976 = vmatpush.msra.mxu0 0.0
    %1977 = vmatpush.msra.mxu0 0.0
    %1978 = vmatpush.msra.mxu0 0.0
    %1979 = vmatpush.msra.mxu0 0.0
    %1980 = vmatpush.msra.mxu0 0.0
    %1981 = vmatpush.msra.mxu0 0.0
    %1982 = vmatpush.msra.mxu0 0.0
    %1983 = vmatpush.msra.mxu0 0.0
    %1984 = vmatpush.msra.mxu0 0.0
    %1985 = vmatpush.msra.mxu0 0.0
    %1986 = vmatpush.msra.mxu0 0.0
    %1987 = vmatpush.msra.mxu0 0.0
    %1988 = vmatpush.msra.mxu0 %v1886
    %1989 = vmatpush.msra.mxu0 %v1885
    %1990 = vmatpush.msra.mxu0 %v1884
    %1991 = vmatpush.msra.mxu0 %v1883
    %1992 = vmatmul.f32.gmra.mxu0 %v334
    %v1993 = vpop.f32.mrf.mxu0
    %v1994 = vadd.f32 0.0, %v1993
    %1995 = vdwg.mxu0
    %1997 = vrot.lane.b32.xlu0 %v1994, 64
    %v1998 = vpop.permute.xlu0 %1997
    %v2000 = vadd.f32 %v1868, %v1998
    %v2001 = vtanh.pop %v2000
    %2002 = vmatpush.msra.mxu0 0.0
    %2003 = vmatpush.msra.mxu0 0.0
    %2004 = vmatpush.msra.mxu0 0.0
    %2005 = vmatpush.msra.mxu0 0.0
    %2006 = vmatpush.msra.mxu0 0.0
    %2007 = vmatpush.msra.mxu0 0.0
    %2008 = vmatpush.msra.mxu0 0.0
    %2009 = vmatpush.msra.mxu0 0.0
    %2010 = vmatpush.msra.mxu0 0.0
    %2011 = vmatpush.msra.mxu0 0.0
    %2012 = vmatpush.msra.mxu0 0.0
    %2013 = vmatpush.msra.mxu0 0.0
    %2014 = vmatpush.msra.mxu0 %v1891
    %2015 = vmatpush.msra.mxu0 %v1890
    %2016 = vmatpush.msra.mxu0 %v1889
    %2017 = vmatpush.msra.mxu0 %v1888
    %2018 = vmatmul.f32.gmra.mxu0 %v334
    %v2019 = vpop.f32.mrf.mxu0
    %v2020 = vadd.f32 0.0, %v2019
    %2021 = vdwg.mxu0
    %2023 = vrot.lane.b32.xlu0 %v2020, 96
    %v2024 = vpop.permute.xlu0 %2023
    %v2026 = vadd.f32 %v1868, %v2024
    %v2027 = vxor.u32 %v2026, 2147483648
    %v2028 = vmul.f32 %v2027, 1.442695
    %v2029 = vpow.pop %v2028
    %v2030 = vadd.f32 %v2029, 1.0
    %v2031 = vrcp.pop %v2030
    %v2032 = vmul.f32 %v2030, %v2031
    %v2033 = vsub.f32 1.0, %v2032
    %v2034 = vmul.f32 %v2031, %v2033
    %v2035 = vadd.f32 %v2031, %v2034
    %vm2036 = vweird.f32 %v2030
    %vm2037 = vweird.f32 %v2031
    %vm2038 = vmor %vm2036, %vm2037
    %v2039 = vsel %vm2038, %v2031, %v2035
    %v2040 = vand.u32 2147483647, %v2030
    %vm2041 = vcmp.eq.f32.partialorder %v2040, 8.507059e+37
    %v2042 = vand.u32 %v2030, 2147483648
    %v2043 = vor.u32 1.1754944e-38, %v2042
    %v2044 = vsel %vm2041, %v2043, %v2039
    %v2045 = vmul.f32 1.0, %v2044
    %v2046 = vmul.f32 %v1975, 0.0
    %2048 = vrot.lane.b32.xlu0 %v2001, 64
    %v2049 = vpop.permute.xlu0 %2048
    %v2051 = vmul.f32 %v1931, %v2049
    %2053 = vrot.lane.b32.xlu0 %v2051, 32
    %v2054 = vpop.permute.xlu0 %2053
    %v2056 = vadd.f32 %v2046, %v2054
    %v2057 = vtanh.pop %v2056
    %2059 = vrot.lane.b32.xlu0 %v2057, 64
    %v2060 = vpop.permute.xlu0 %2059
    %v2062 = vmul.f32 %v2045, %v2060
    %2064 = vrot.lane.b32.xlu0 %v2062, 32
    %v2065 = vpop.permute.xlu0 %2064
    %2067 = vst.msk [vmem:[#allocation3] sm:$0x3] %vm511, %v2065
    %v2068 = vsel %vm332, %v2065, 0
    %2070 = vmatpush.msra.mxu0 0.0
    %2071 = vmatpush.msra.mxu0 0.0
    %2072 = vmatpush.msra.mxu0 0.0
    %2073 = vmatpush.msra.mxu0 0.0
    %2074 = vmatpush.msra.mxu0 0.0
    %2075 = vmatpush.msra.mxu0 0.0
    %2076 = vmatpush.msra.mxu0 0.0
    %2077 = vmatpush.msra.mxu0 0.0
    %2078 = vmatpush.msra.mxu0 0.0
    %2079 = vmatpush.msra.mxu0 0.0
    %2080 = vmatpush.msra.mxu0 0.0
    %2081 = vmatpush.msra.mxu0 0.0
    %2082 = vmatpush.msra.mxu0 %v1876
    %2083 = vmatpush.msra.mxu0 %v1875
    %2084 = vmatpush.msra.mxu0 %v1874
    %2085 = vmatpush.msra.mxu0 %v1873
    %2086 = vmatmul.f32.gmra.mxu0 %v2068
    %v2087 = vpop.f32.mrf.mxu0
    %v2088 = vadd.f32 0.0, %v2087
    %2089 = vdwg.mxu0
    %v2091 = vrot.slane %v2088, 6
    %v2093 = vadd.f32 %v1868, %v2091
    %v2094 = vxor.u32 %v2093, 2147483648
    %v2095 = vmul.f32 %v2094, 1.442695
    %v2096 = vpow.pop %v2095
    %v2097 = vadd.f32 %v2096, 1.0
    %v2098 = vrcp.pop %v2097
    %v2099 = vmul.f32 %v2097, %v2098
    %v2100 = vsub.f32 1.0, %v2099
    %v2101 = vmul.f32 %v2098, %v2100
    %v2102 = vadd.f32 %v2098, %v2101
    %vm2103 = vweird.f32 %v2097
    %vm2104 = vweird.f32 %v2098
    %vm2105 = vmor %vm2103, %vm2104
    %v2106 = vsel %vm2105, %v2098, %v2102
    %v2107 = vand.u32 2147483647, %v2097
    %vm2108 = vcmp.eq.f32.partialorder %v2107, 8.507059e+37
    %v2109 = vand.u32 %v2097, 2147483648
    %v2110 = vor.u32 1.1754944e-38, %v2109
    %v2111 = vsel %vm2108, %v2110, %v2106
    %v2112 = vmul.f32 1.0, %v2111
    %2113 = vmatpush.msra.mxu0 0.0
    %2114 = vmatpush.msra.mxu0 0.0
    %2115 = vmatpush.msra.mxu0 0.0
    %2116 = vmatpush.msra.mxu0 0.0
    %2117 = vmatpush.msra.mxu0 0.0
    %2118 = vmatpush.msra.mxu0 0.0
    %2119 = vmatpush.msra.mxu0 0.0
    %2120 = vmatpush.msra.mxu0 0.0
    %2121 = vmatpush.msra.mxu0 0.0
    %2122 = vmatpush.msra.mxu0 0.0
    %2123 = vmatpush.msra.mxu0 0.0
    %2124 = vmatpush.msra.mxu0 0.0
    %2125 = vmatpush.msra.mxu0 %v1881
    %2126 = vmatpush.msra.mxu0 %v1880
    %2127 = vmatpush.msra.mxu0 %v1879
    %2128 = vmatpush.msra.mxu0 %v1878
    %2129 = vmatmul.f32.gmra.mxu0 %v2068
    %v2130 = vpop.f32.mrf.mxu0
    %v2131 = vadd.f32 0.0, %v2130
    %2132 = vdwg.mxu0
    %v2134 = vrot.slane %v2131, 6
    %2135 = vrot.lane.b32.xlu0 %v2134, 32
    %v2136 = vpop.permute.xlu0 %2135
    %v2138 = vadd.f32 %v1868, %v2136
    %v2139 = vxor.u32 %v2138, 2147483648
    %v2140 = vmul.f32 %v2139, 1.442695
    %v2141 = vpow.pop %v2140
    %v2142 = vadd.f32 %v2141, 1.0
    %v2143 = vrcp.pop %v2142
    %v2144 = vmul.f32 %v2142, %v2143
    %v2145 = vsub.f32 1.0, %v2144
    %v2146 = vmul.f32 %v2143, %v2145
    %v2147 = vadd.f32 %v2143, %v2146
    %vm2148 = vweird.f32 %v2142
    %vm2149 = vweird.f32 %v2143
    %vm2150 = vmor %vm2148, %vm2149
    %v2151 = vsel %vm2150, %v2143, %v2147
    %v2152 = vand.u32 2147483647, %v2142
    %vm2153 = vcmp.eq.f32.partialorder %v2152, 8.507059e+37
    %v2154 = vand.u32 %v2142, 2147483648
    %v2155 = vor.u32 1.1754944e-38, %v2154
    %v2156 = vsel %vm2153, %v2155, %v2151
    %v2157 = vmul.f32 1.0, %v2156
    %2158 = vmatpush.msra.mxu0 0.0
    %2159 = vmatpush.msra.mxu0 0.0
    %2160 = vmatpush.msra.mxu0 0.0
    %2161 = vmatpush.msra.mxu0 0.0
    %2162 = vmatpush.msra.mxu0 0.0
    %2163 = vmatpush.msra.mxu0 0.0
    %2164 = vmatpush.msra.mxu0 0.0
    %2165 = vmatpush.msra.mxu0 0.0
    %2166 = vmatpush.msra.mxu0 0.0
    %2167 = vmatpush.msra.mxu0 0.0
    %2168 = vmatpush.msra.mxu0 0.0
    %2169 = vmatpush.msra.mxu0 0.0
    %2170 = vmatpush.msra.mxu0 %v1886
    %2171 = vmatpush.msra.mxu0 %v1885
    %2172 = vmatpush.msra.mxu0 %v1884
    %2173 = vmatpush.msra.mxu0 %v1883
    %2174 = vmatmul.f32.gmra.mxu0 %v2068
    %v2175 = vpop.f32.mrf.mxu0
    %v2176 = vadd.f32 0.0, %v2175
    %2177 = vdwg.mxu0
    %v2179 = vrot.slane %v2176, 6
    %2180 = vrot.lane.b32.xlu0 %v2179, 64
    %v2181 = vpop.permute.xlu0 %2180
    %v2183 = vadd.f32 %v1868, %v2181
    %v2184 = vtanh.pop %v2183
    %2185 = vmatpush.msra.mxu0 0.0
    %2186 = vmatpush.msra.mxu0 0.0
    %2187 = vmatpush.msra.mxu0 0.0
    %2188 = vmatpush.msra.mxu0 0.0
    %2189 = vmatpush.msra.mxu0 0.0
    %2190 = vmatpush.msra.mxu0 0.0
    %2191 = vmatpush.msra.mxu0 0.0
    %2192 = vmatpush.msra.mxu0 0.0
    %2193 = vmatpush.msra.mxu0 0.0
    %2194 = vmatpush.msra.mxu0 0.0
    %2195 = vmatpush.msra.mxu0 0.0
    %2196 = vmatpush.msra.mxu0 0.0
    %2197 = vmatpush.msra.mxu0 %v1891
    %2198 = vmatpush.msra.mxu0 %v1890
    %2199 = vmatpush.msra.mxu0 %v1889
    %2200 = vmatpush.msra.mxu0 %v1888
    %2201 = vmatmul.f32.gmra.mxu0 %v2068
    %v2202 = vpop.f32.mrf.mxu0
    %v2203 = vadd.f32 0.0, %v2202
    %2204 = vdwg.mxu0
    %v2206 = vrot.slane %v2203, 6
    %2207 = vrot.lane.b32.xlu0 %v2206, 96
    %v2208 = vpop.permute.xlu0 %2207
    %v2210 = vadd.f32 %v1868, %v2208
    %v2211 = vxor.u32 %v2210, 2147483648
    %v2212 = vmul.f32 %v2211, 1.442695
    %v2213 = vpow.pop %v2212
    %v2214 = vadd.f32 %v2213, 1.0
    %v2215 = vrcp.pop %v2214
    %v2216 = vmul.f32 %v2214, %v2215
    %v2217 = vsub.f32 1.0, %v2216
    %v2218 = vmul.f32 %v2215, %v2217
    %v2219 = vadd.f32 %v2215, %v2218
    %vm2220 = vweird.f32 %v2214
    %vm2221 = vweird.f32 %v2215
    %vm2222 = vmor %vm2220, %vm2221
    %v2223 = vsel %vm2222, %v2215, %v2219
    %v2224 = vand.u32 2147483647, %v2214
    %vm2225 = vcmp.eq.f32.partialorder %v2224, 8.507059e+37
    %v2226 = vand.u32 %v2214, 2147483648
    %v2227 = vor.u32 1.1754944e-38, %v2226
    %v2228 = vsel %vm2225, %v2227, %v2223
    %v2229 = vmul.f32 1.0, %v2228
    %v2231 = vrot.slane %v2056, 6
    %v2233 = vmul.f32 %v2157, %v2231
    %2235 = vrot.lane.b32.xlu0 %v2184, 64
    %v2236 = vpop.permute.xlu0 %2235
    %v2238 = vmul.f32 %v2112, %v2236
    %2240 = vrot.lane.b32.xlu0 %v2238, 32
    %v2241 = vpop.permute.xlu0 %2240
    %v2243 = vadd.f32 %v2233, %v2241
    %v2244 = vtanh.pop %v2243
    %2246 = vrot.lane.b32.xlu0 %v2244, 64
    %v2247 = vpop.permute.xlu0 %2246
    %v2249 = vmul.f32 %v2229, %v2247
    %2251 = vrot.lane.b32.xlu0 %v2249, 32
    %v2252 = vpop.permute.xlu0 %2251
    %2254 = vst.msk [vmem:[#allocation3] sm:$0xc] %vm699, %v2252
    %v2255 = vrot.slane %v2249, 2
    %2256 = vrot.lane.b32.xlu0 %v2255, 32
    %v2257 = vpop.permute.xlu0 %2256
    %v2258 = vsel %vm332, %v2257, 0
    %2260 = vmatpush.msra.mxu0 0.0
    %2261 = vmatpush.msra.mxu0 0.0
    %2262 = vmatpush.msra.mxu0 0.0
    %2263 = vmatpush.msra.mxu0 0.0
    %2264 = vmatpush.msra.mxu0 0.0
    %2265 = vmatpush.msra.mxu0 0.0
    %2266 = vmatpush.msra.mxu0 0.0
    %2267 = vmatpush.msra.mxu0 0.0
    %2268 = vmatpush.msra.mxu0 0.0
    %2269 = vmatpush.msra.mxu0 0.0
    %2270 = vmatpush.msra.mxu0 0.0
    %2271 = vmatpush.msra.mxu0 0.0
    %2272 = vmatpush.msra.mxu0 %v1876
    %2273 = vmatpush.msra.mxu0 %v1875
    %2274 = vmatpush.msra.mxu0 %v1874
    %2275 = vmatpush.msra.mxu0 %v1873
    %2276 = vmatmul.f32.gmra.mxu0 %v2258
    %v2277 = vpop.f32.mrf.mxu0
    %v2278 = vadd.f32 0.0, %v2277
    %2279 = vdwg.mxu0
    %v2281 = vrot.slane %v2278, 4
    %v2283 = vadd.f32 %v1868, %v2281
    %v2284 = vxor.u32 %v2283, 2147483648
    %v2285 = vmul.f32 %v2284, 1.442695
    %v2286 = vpow.pop %v2285
    %v2287 = vadd.f32 %v2286, 1.0
    %v2288 = vrcp.pop %v2287
    %v2289 = vmul.f32 %v2287, %v2288
    %v2290 = vsub.f32 1.0, %v2289
    %v2291 = vmul.f32 %v2288, %v2290
    %v2292 = vadd.f32 %v2288, %v2291
    %vm2293 = vweird.f32 %v2287
    %vm2294 = vweird.f32 %v2288
    %vm2295 = vmor %vm2293, %vm2294
    %v2296 = vsel %vm2295, %v2288, %v2292
    %v2297 = vand.u32 2147483647, %v2287
    %vm2298 = vcmp.eq.f32.partialorder %v2297, 8.507059e+37
    %v2299 = vand.u32 %v2287, 2147483648
    %v2300 = vor.u32 1.1754944e-38, %v2299
    %v2301 = vsel %vm2298, %v2300, %v2296
    %v2302 = vmul.f32 1.0, %v2301
    %2303 = vmatpush.msra.mxu0 0.0
    %2304 = vmatpush.msra.mxu0 0.0
    %2305 = vmatpush.msra.mxu0 0.0
    %2306 = vmatpush.msra.mxu0 0.0
    %2307 = vmatpush.msra.mxu0 0.0
    %2308 = vmatpush.msra.mxu0 0.0
    %2309 = vmatpush.msra.mxu0 0.0
    %2310 = vmatpush.msra.mxu0 0.0
    %2311 = vmatpush.msra.mxu0 0.0
    %2312 = vmatpush.msra.mxu0 0.0
    %2313 = vmatpush.msra.mxu0 0.0
    %2314 = vmatpush.msra.mxu0 0.0
    %2315 = vmatpush.msra.mxu0 %v1881
    %2316 = vmatpush.msra.mxu0 %v1880
    %2317 = vmatpush.msra.mxu0 %v1879
    %2318 = vmatpush.msra.mxu0 %v1878
    %2319 = vmatmul.f32.gmra.mxu0 %v2258
    %v2320 = vpop.f32.mrf.mxu0
    %v2321 = vadd.f32 0.0, %v2320
    %2322 = vdwg.mxu0
    %v2324 = vrot.slane %v2321, 4
    %2325 = vrot.lane.b32.xlu0 %v2324, 32
    %v2326 = vpop.permute.xlu0 %2325
    %v2328 = vadd.f32 %v1868, %v2326
    %v2329 = vxor.u32 %v2328, 2147483648
    %v2330 = vmul.f32 %v2329, 1.442695
    %v2331 = vpow.pop %v2330
    %v2332 = vadd.f32 %v2331, 1.0
    %v2333 = vrcp.pop %v2332
    %v2334 = vmul.f32 %v2332, %v2333
    %v2335 = vsub.f32 1.0, %v2334
    %v2336 = vmul.f32 %v2333, %v2335
    %v2337 = vadd.f32 %v2333, %v2336
    %vm2338 = vweird.f32 %v2332
    %vm2339 = vweird.f32 %v2333
    %vm2340 = vmor %vm2338, %vm2339
    %v2341 = vsel %vm2340, %v2333, %v2337
    %v2342 = vand.u32 2147483647, %v2332
    %vm2343 = vcmp.eq.f32.partialorder %v2342, 8.507059e+37
    %v2344 = vand.u32 %v2332, 2147483648
    %v2345 = vor.u32 1.1754944e-38, %v2344
    %v2346 = vsel %vm2343, %v2345, %v2341
    %v2347 = vmul.f32 1.0, %v2346
    %2348 = vmatpush.msra.mxu0 0.0
    %2349 = vmatpush.msra.mxu0 0.0
    %2350 = vmatpush.msra.mxu0 0.0
    %2351 = vmatpush.msra.mxu0 0.0
    %2352 = vmatpush.msra.mxu0 0.0
    %2353 = vmatpush.msra.mxu0 0.0
    %2354 = vmatpush.msra.mxu0 0.0
    %2355 = vmatpush.msra.mxu0 0.0
    %2356 = vmatpush.msra.mxu0 0.0
    %2357 = vmatpush.msra.mxu0 0.0
    %2358 = vmatpush.msra.mxu0 0.0
    %2359 = vmatpush.msra.mxu0 0.0
    %2360 = vmatpush.msra.mxu0 %v1886
    %2361 = vmatpush.msra.mxu0 %v1885
    %2362 = vmatpush.msra.mxu0 %v1884
    %2363 = vmatpush.msra.mxu0 %v1883
    %2364 = vmatmul.f32.gmra.mxu0 %v2258
    %v2365 = vpop.f32.mrf.mxu0
    %v2366 = vadd.f32 0.0, %v2365
    %2367 = vdwg.mxu0
    %v2369 = vrot.slane %v2366, 4
    %2370 = vrot.lane.b32.xlu0 %v2369, 64
    %v2371 = vpop.permute.xlu0 %2370
    %v2373 = vadd.f32 %v1868, %v2371
    %v2374 = vtanh.pop %v2373
    %2375 = vmatpush.msra.mxu0 0.0
    %2376 = vmatpush.msra.mxu0 0.0
    %2377 = vmatpush.msra.mxu0 0.0
    %2378 = vmatpush.msra.mxu0 0.0
    %2379 = vmatpush.msra.mxu0 0.0
    %2380 = vmatpush.msra.mxu0 0.0
    %2381 = vmatpush.msra.mxu0 0.0
    %2382 = vmatpush.msra.mxu0 0.0
    %2383 = vmatpush.msra.mxu0 0.0
    %2384 = vmatpush.msra.mxu0 0.0
    %2385 = vmatpush.msra.mxu0 0.0
    %2386 = vmatpush.msra.mxu0 0.0
    %2387 = vmatpush.msra.mxu0 %v1891
    %2388 = vmatpush.msra.mxu0 %v1890
    %2389 = vmatpush.msra.mxu0 %v1889
    %2390 = vmatpush.msra.mxu0 %v1888
    %2391 = vmatmul.f32.gmra.mxu0 %v2258
    %v2392 = vpop.f32.mrf.mxu0
    %v2393 = vadd.f32 0.0, %v2392
    %2394 = vdwg.mxu0
    %v2396 = vrot.slane %v2393, 4
    %2397 = vrot.lane.b32.xlu0 %v2396, 96
    %v2398 = vpop.permute.xlu0 %2397
    %v2400 = vadd.f32 %v1868, %v2398
    %v2401 = vxor.u32 %v2400, 2147483648
    %v2402 = vmul.f32 %v2401, 1.442695
    %v2403 = vpow.pop %v2402
    %v2404 = vadd.f32 %v2403, 1.0
    %v2405 = vrcp.pop %v2404
    %v2406 = vmul.f32 %v2404, %v2405
    %v2407 = vsub.f32 1.0, %v2406
    %v2408 = vmul.f32 %v2405, %v2407
    %v2409 = vadd.f32 %v2405, %v2408
    %vm2410 = vweird.f32 %v2404
    %vm2411 = vweird.f32 %v2405
    %vm2412 = vmor %vm2410, %vm2411
    %v2413 = vsel %vm2412, %v2405, %v2409
    %v2414 = vand.u32 2147483647, %v2404
    %vm2415 = vcmp.eq.f32.partialorder %v2414, 8.507059e+37
    %v2416 = vand.u32 %v2404, 2147483648
    %v2417 = vor.u32 1.1754944e-38, %v2416
    %v2418 = vsel %vm2415, %v2417, %v2413
    %v2419 = vmul.f32 1.0, %v2418
    %v2421 = vrot.slane %v2243, 6
    %v2423 = vmul.f32 %v2347, %v2421
    %2425 = vrot.lane.b32.xlu0 %v2374, 64
    %v2426 = vpop.permute.xlu0 %2425
    %v2428 = vmul.f32 %v2302, %v2426
    %2430 = vrot.lane.b32.xlu0 %v2428, 32
    %v2431 = vpop.permute.xlu0 %2430
    %v2433 = vadd.f32 %v2423, %v2431
    %v2434 = vtanh.pop %v2433
    %2436 = vrot.lane.b32.xlu0 %v2434, 64
    %v2437 = vpop.permute.xlu0 %2436
    %v2439 = vmul.f32 %v2419, %v2437
    %2441 = vrot.lane.b32.xlu0 %v2439, 32
    %v2442 = vpop.permute.xlu0 %2441
    %2444 = vst.msk [vmem:[#allocation3] sm:$0x30] %vm890, %v2442
    %v2445 = vrot.slane %v2439, 4
    %2446 = vrot.lane.b32.xlu0 %v2445, 32
    %v2447 = vpop.permute.xlu0 %2446
    %v2448 = vsel %vm332, %v2447, 0
    %2450 = vmatpush.msra.mxu0 0.0
    %2451 = vmatpush.msra.mxu0 0.0
    %2452 = vmatpush.msra.mxu0 0.0
    %2453 = vmatpush.msra.mxu0 0.0
    %2454 = vmatpush.msra.mxu0 0.0
    %2455 = vmatpush.msra.mxu0 0.0
    %2456 = vmatpush.msra.mxu0 0.0
    %2457 = vmatpush.msra.mxu0 0.0
    %2458 = vmatpush.msra.mxu0 0.0
    %2459 = vmatpush.msra.mxu0 0.0
    %2460 = vmatpush.msra.mxu0 0.0
    %2461 = vmatpush.msra.mxu0 0.0
    %2462 = vmatpush.msra.mxu0 %v1876
    %2463 = vmatpush.msra.mxu0 %v1875
    %2464 = vmatpush.msra.mxu0 %v1874
    %2465 = vmatpush.msra.mxu0 %v1873
    %2466 = vmatmul.f32.gmra.mxu0 %v2448
    %v2467 = vpop.f32.mrf.mxu0
    %v2468 = vadd.f32 0.0, %v2467
    %2469 = vdwg.mxu0
    %v2471 = vrot.slane %v2468, 2
    %v2473 = vadd.f32 %v1868, %v2471
    %v2474 = vxor.u32 %v2473, 2147483648
    %v2475 = vmul.f32 %v2474, 1.442695
    %v2476 = vpow.pop %v2475
    %v2477 = vadd.f32 %v2476, 1.0
    %v2478 = vrcp.pop %v2477
    %v2479 = vmul.f32 %v2477, %v2478
    %v2480 = vsub.f32 1.0, %v2479
    %v2481 = vmul.f32 %v2478, %v2480
    %v2482 = vadd.f32 %v2478, %v2481
    %vm2483 = vweird.f32 %v2477
    %vm2484 = vweird.f32 %v2478
    %vm2485 = vmor %vm2483, %vm2484
    %v2486 = vsel %vm2485, %v2478, %v2482
    %v2487 = vand.u32 2147483647, %v2477
    %vm2488 = vcmp.eq.f32.partialorder %v2487, 8.507059e+37
    %v2489 = vand.u32 %v2477, 2147483648
    %v2490 = vor.u32 1.1754944e-38, %v2489
    %v2491 = vsel %vm2488, %v2490, %v2486
    %v2492 = vmul.f32 1.0, %v2491
    %2493 = vmatpush.msra.mxu0 0.0
    %2494 = vmatpush.msra.mxu0 0.0
    %2495 = vmatpush.msra.mxu0 0.0
    %2496 = vmatpush.msra.mxu0 0.0
    %2497 = vmatpush.msra.mxu0 0.0
    %2498 = vmatpush.msra.mxu0 0.0
    %2499 = vmatpush.msra.mxu0 0.0
    %2500 = vmatpush.msra.mxu0 0.0
    %2501 = vmatpush.msra.mxu0 0.0
    %2502 = vmatpush.msra.mxu0 0.0
    %2503 = vmatpush.msra.mxu0 0.0
    %2504 = vmatpush.msra.mxu0 0.0
    %2505 = vmatpush.msra.mxu0 %v1881
    %2506 = vmatpush.msra.mxu0 %v1880
    %2507 = vmatpush.msra.mxu0 %v1879
    %2508 = vmatpush.msra.mxu0 %v1878
    %2509 = vmatmul.f32.gmra.mxu0 %v2448
    %v2510 = vpop.f32.mrf.mxu0
    %v2511 = vadd.f32 0.0, %v2510
    %2512 = vdwg.mxu0
    %v2514 = vrot.slane %v2511, 2
    %2515 = vrot.lane.b32.xlu0 %v2514, 32
    %v2516 = vpop.permute.xlu0 %2515
    %v2518 = vadd.f32 %v1868, %v2516
    %v2519 = vxor.u32 %v2518, 2147483648
    %v2520 = vmul.f32 %v2519, 1.442695
    %v2521 = vpow.pop %v2520
    %v2522 = vadd.f32 %v2521, 1.0
    %v2523 = vrcp.pop %v2522
    %v2524 = vmul.f32 %v2522, %v2523
    %v2525 = vsub.f32 1.0, %v2524
    %v2526 = vmul.f32 %v2523, %v2525
    %v2527 = vadd.f32 %v2523, %v2526
    %vm2528 = vweird.f32 %v2522
    %vm2529 = vweird.f32 %v2523
    %vm2530 = vmor %vm2528, %vm2529
    %v2531 = vsel %vm2530, %v2523, %v2527
    %v2532 = vand.u32 2147483647, %v2522
    %vm2533 = vcmp.eq.f32.partialorder %v2532, 8.507059e+37
    %v2534 = vand.u32 %v2522, 2147483648
    %v2535 = vor.u32 1.1754944e-38, %v2534
    %v2536 = vsel %vm2533, %v2535, %v2531
    %v2537 = vmul.f32 1.0, %v2536
    %2538 = vmatpush.msra.mxu0 0.0
    %2539 = vmatpush.msra.mxu0 0.0
    %2540 = vmatpush.msra.mxu0 0.0
    %2541 = vmatpush.msra.mxu0 0.0
    %2542 = vmatpush.msra.mxu0 0.0
    %2543 = vmatpush.msra.mxu0 0.0
    %2544 = vmatpush.msra.mxu0 0.0
    %2545 = vmatpush.msra.mxu0 0.0
    %2546 = vmatpush.msra.mxu0 0.0
    %2547 = vmatpush.msra.mxu0 0.0
    %2548 = vmatpush.msra.mxu0 0.0
    %2549 = vmatpush.msra.mxu0 0.0
    %2550 = vmatpush.msra.mxu0 %v1886
    %2551 = vmatpush.msra.mxu0 %v1885
    %2552 = vmatpush.msra.mxu0 %v1884
    %2553 = vmatpush.msra.mxu0 %v1883
    %2554 = vmatmul.f32.gmra.mxu0 %v2448
    %v2555 = vpop.f32.mrf.mxu0
    %v2556 = vadd.f32 0.0, %v2555
    %2557 = vdwg.mxu0
    %v2559 = vrot.slane %v2556, 2
    %2560 = vrot.lane.b32.xlu0 %v2559, 64
    %v2561 = vpop.permute.xlu0 %2560
    %v2563 = vadd.f32 %v1868, %v2561
    %v2564 = vtanh.pop %v2563
    %2565 = vmatpush.msra.mxu0 0.0
    %2566 = vmatpush.msra.mxu0 0.0
    %2567 = vmatpush.msra.mxu0 0.0
    %2568 = vmatpush.msra.mxu0 0.0
    %2569 = vmatpush.msra.mxu0 0.0
    %2570 = vmatpush.msra.mxu0 0.0
    %2571 = vmatpush.msra.mxu0 0.0
    %2572 = vmatpush.msra.mxu0 0.0
    %2573 = vmatpush.msra.mxu0 0.0
    %2574 = vmatpush.msra.mxu0 0.0
    %2575 = vmatpush.msra.mxu0 0.0
    %2576 = vmatpush.msra.mxu0 0.0
    %2577 = vmatpush.msra.mxu0 %v1891
    %2578 = vmatpush.msra.mxu0 %v1890
    %2579 = vmatpush.msra.mxu0 %v1889
    %2580 = vmatpush.msra.mxu0 %v1888
    %2581 = vmatmul.f32.gmra.mxu0 %v2448
    %v2582 = vpop.f32.mrf.mxu0
    %v2583 = vadd.f32 0.0, %v2582
    %2584 = vdwg.mxu0
    %v2586 = vrot.slane %v2583, 2
    %2587 = vrot.lane.b32.xlu0 %v2586, 96
    %v2588 = vpop.permute.xlu0 %2587
    %v2590 = vadd.f32 %v1868, %v2588
    %v2591 = vxor.u32 %v2590, 2147483648
    %v2592 = vmul.f32 %v2591, 1.442695
    %v2593 = vpow.pop %v2592
    %v2594 = vadd.f32 %v2593, 1.0
    %v2595 = vrcp.pop %v2594
    %v2596 = vmul.f32 %v2594, %v2595
    %v2597 = vsub.f32 1.0, %v2596
    %v2598 = vmul.f32 %v2595, %v2597
    %v2599 = vadd.f32 %v2595, %v2598
    %vm2600 = vweird.f32 %v2594
    %vm2601 = vweird.f32 %v2595
    %vm2602 = vmor %vm2600, %vm2601
    %v2603 = vsel %vm2602, %v2595, %v2599
    %v2604 = vand.u32 2147483647, %v2594
    %vm2605 = vcmp.eq.f32.partialorder %v2604, 8.507059e+37
    %v2606 = vand.u32 %v2594, 2147483648
    %v2607 = vor.u32 1.1754944e-38, %v2606
    %v2608 = vsel %vm2605, %v2607, %v2603
    %v2609 = vmul.f32 1.0, %v2608
    %v2611 = vrot.slane %v2433, 6
    %v2613 = vmul.f32 %v2537, %v2611
    %2615 = vrot.lane.b32.xlu0 %v2564, 64
    %v2616 = vpop.permute.xlu0 %2615
    %v2618 = vmul.f32 %v2492, %v2616
    %2620 = vrot.lane.b32.xlu0 %v2618, 32
    %v2621 = vpop.permute.xlu0 %2620
    %v2623 = vadd.f32 %v2613, %v2621
    %v2624 = vtanh.pop %v2623
    %2626 = vrot.lane.b32.xlu0 %v2624, 64
    %v2627 = vpop.permute.xlu0 %2626
    %v2629 = vmul.f32 %v2609, %v2627
    %2631 = vrot.lane.b32.xlu0 %v2629, 32
    %v2632 = vpop.permute.xlu0 %2631
    %2634 = vst.msk [vmem:[#allocation3] sm:$0xc0] %vm1081, %v2632
    %v2635 = vrot.slane %v2629, 6
    %2636 = vrot.lane.b32.xlu0 %v2635, 32
    %v2637 = vpop.permute.xlu0 %2636
    %v2638 = vsel %vm332, %v2637, 0
    %2640 = vmatpush.msra.mxu0 0.0
    %2641 = vmatpush.msra.mxu0 0.0
    %2642 = vmatpush.msra.mxu0 0.0
    %2643 = vmatpush.msra.mxu0 0.0
    %2644 = vmatpush.msra.mxu0 0.0
    %2645 = vmatpush.msra.mxu0 0.0
    %2646 = vmatpush.msra.mxu0 0.0
    %2647 = vmatpush.msra.mxu0 0.0
    %2648 = vmatpush.msra.mxu0 0.0
    %2649 = vmatpush.msra.mxu0 0.0
    %2650 = vmatpush.msra.mxu0 0.0
    %2651 = vmatpush.msra.mxu0 0.0
    %2652 = vmatpush.msra.mxu0 %v1876
    %2653 = vmatpush.msra.mxu0 %v1875
    %2654 = vmatpush.msra.mxu0 %v1874
    %2655 = vmatpush.msra.mxu0 %v1873
    %2656 = vmatmul.f32.gmra.mxu0 %v2638
    %v2657 = vpop.f32.mrf.mxu0
    %v2658 = vadd.f32 0.0, %v2657
    %2659 = vdwg.mxu0
    %v2660 = vadd.f32 %v1871, %v2658
    %v2661 = vxor.u32 %v2660, 2147483648
    %v2662 = vmul.f32 %v2661, 1.442695
    %v2663 = vpow.pop %v2662
    %v2664 = vadd.f32 %v2663, 1.0
    %v2665 = vrcp.pop %v2664
    %v2666 = vmul.f32 %v2664, %v2665
    %v2667 = vsub.f32 1.0, %v2666
    %v2668 = vmul.f32 %v2665, %v2667
    %v2669 = vadd.f32 %v2665, %v2668
    %vm2670 = vweird.f32 %v2664
    %vm2671 = vweird.f32 %v2665
    %vm2672 = vmor %vm2670, %vm2671
    %v2673 = vsel %vm2672, %v2665, %v2669
    %v2674 = vand.u32 2147483647, %v2664
    %vm2675 = vcmp.eq.f32.partialorder %v2674, 8.507059e+37
    %v2676 = vand.u32 %v2664, 2147483648
    %v2677 = vor.u32 1.1754944e-38, %v2676
    %v2678 = vsel %vm2675, %v2677, %v2673
    %v2679 = vmul.f32 1.0, %v2678
    %2680 = vmatpush.msra.mxu0 0.0
    %2681 = vmatpush.msra.mxu0 0.0
    %2682 = vmatpush.msra.mxu0 0.0
    %2683 = vmatpush.msra.mxu0 0.0
    %2684 = vmatpush.msra.mxu0 0.0
    %2685 = vmatpush.msra.mxu0 0.0
    %2686 = vmatpush.msra.mxu0 0.0
    %2687 = vmatpush.msra.mxu0 0.0
    %2688 = vmatpush.msra.mxu0 0.0
    %2689 = vmatpush.msra.mxu0 0.0
    %2690 = vmatpush.msra.mxu0 0.0
    %2691 = vmatpush.msra.mxu0 0.0
    %2692 = vmatpush.msra.mxu0 %v1881
    %2693 = vmatpush.msra.mxu0 %v1880
    %2694 = vmatpush.msra.mxu0 %v1879
    %2695 = vmatpush.msra.mxu0 %v1878
    %2696 = vmatmul.f32.gmra.mxu0 %v2638
    %v2697 = vpop.f32.mrf.mxu0
    %v2698 = vadd.f32 0.0, %v2697
    %2699 = vdwg.mxu0
    %2701 = vrot.lane.b32.xlu0 %v2698, 32
    %v2702 = vpop.permute.xlu0 %2701
    %v2704 = vadd.f32 %v1871, %v2702
    %v2705 = vxor.u32 %v2704, 2147483648
    %v2706 = vmul.f32 %v2705, 1.442695
    %v2707 = vpow.pop %v2706
    %v2708 = vadd.f32 %v2707, 1.0
    %v2709 = vrcp.pop %v2708
    %v2710 = vmul.f32 %v2708, %v2709
    %v2711 = vsub.f32 1.0, %v2710
    %v2712 = vmul.f32 %v2709, %v2711
    %v2713 = vadd.f32 %v2709, %v2712
    %vm2714 = vweird.f32 %v2708
    %vm2715 = vweird.f32 %v2709
    %vm2716 = vmor %vm2714, %vm2715
    %v2717 = vsel %vm2716, %v2709, %v2713
    %v2718 = vand.u32 2147483647, %v2708
    %vm2719 = vcmp.eq.f32.partialorder %v2718, 8.507059e+37
    %v2720 = vand.u32 %v2708, 2147483648
    %v2721 = vor.u32 1.1754944e-38, %v2720
    %v2722 = vsel %vm2719, %v2721, %v2717
    %v2723 = vmul.f32 1.0, %v2722
    %2724 = vmatpush.msra.mxu0 0.0
    %2725 = vmatpush.msra.mxu0 0.0
    %2726 = vmatpush.msra.mxu0 0.0
    %2727 = vmatpush.msra.mxu0 0.0
    %2728 = vmatpush.msra.mxu0 0.0
    %2729 = vmatpush.msra.mxu0 0.0
    %2730 = vmatpush.msra.mxu0 0.0
    %2731 = vmatpush.msra.mxu0 0.0
    %2732 = vmatpush.msra.mxu0 0.0
    %2733 = vmatpush.msra.mxu0 0.0
    %2734 = vmatpush.msra.mxu0 0.0
    %2735 = vmatpush.msra.mxu0 0.0
    %2736 = vmatpush.msra.mxu0 %v1886
    %2737 = vmatpush.msra.mxu0 %v1885
    %2738 = vmatpush.msra.mxu0 %v1884
    %2739 = vmatpush.msra.mxu0 %v1883
    %2740 = vmatmul.f32.gmra.mxu0 %v2638
    %v2741 = vpop.f32.mrf.mxu0
    %v2742 = vadd.f32 0.0, %v2741
    %2743 = vdwg.mxu0
    %2745 = vrot.lane.b32.xlu0 %v2742, 64
    %v2746 = vpop.permute.xlu0 %2745
    %v2748 = vadd.f32 %v1871, %v2746
    %v2749 = vtanh.pop %v2748
    %2750 = vmatpush.msra.mxu0 0.0
    %2751 = vmatpush.msra.mxu0 0.0
    %2752 = vmatpush.msra.mxu0 0.0
    %2753 = vmatpush.msra.mxu0 0.0
    %2754 = vmatpush.msra.mxu0 0.0
    %2755 = vmatpush.msra.mxu0 0.0
    %2756 = vmatpush.msra.mxu0 0.0
    %2757 = vmatpush.msra.mxu0 0.0
    %2758 = vmatpush.msra.mxu0 0.0
    %2759 = vmatpush.msra.mxu0 0.0
    %2760 = vmatpush.msra.mxu0 0.0
    %2761 = vmatpush.msra.mxu0 0.0
    %2762 = vmatpush.msra.mxu0 %v1891
    %2763 = vmatpush.msra.mxu0 %v1890
    %2764 = vmatpush.msra.mxu0 %v1889
    %2765 = vmatpush.msra.mxu0 %v1888
    %2766 = vmatmul.f32.gmra.mxu0 %v2638
    %v2767 = vpop.f32.mrf.mxu0
    %v2768 = vadd.f32 0.0, %v2767
    %2769 = vdwg.mxu0
    %2771 = vrot.lane.b32.xlu0 %v2768, 96
    %v2772 = vpop.permute.xlu0 %2771
    %v2774 = vadd.f32 %v1871, %v2772
    %v2775 = vxor.u32 %v2774, 2147483648
    %v2776 = vmul.f32 %v2775, 1.442695
    %v2777 = vpow.pop %v2776
    %v2778 = vadd.f32 %v2777, 1.0
    %v2779 = vrcp.pop %v2778
    %v2780 = vmul.f32 %v2778, %v2779
    %v2781 = vsub.f32 1.0, %v2780
    %v2782 = vmul.f32 %v2779, %v2781
    %v2783 = vadd.f32 %v2779, %v2782
    %vm2784 = vweird.f32 %v2778
    %vm2785 = vweird.f32 %v2779
    %vm2786 = vmor %vm2784, %vm2785
    %v2787 = vsel %vm2786, %v2779, %v2783
    %v2788 = vand.u32 2147483647, %v2778
    %vm2789 = vcmp.eq.f32.partialorder %v2788, 8.507059e+37
    %v2790 = vand.u32 %v2778, 2147483648
    %v2791 = vor.u32 1.1754944e-38, %v2790
    %v2792 = vsel %vm2789, %v2791, %v2787
    %v2793 = vmul.f32 1.0, %v2792
    %v2795 = vrot.slane %v2623, 6
    %v2797 = vmul.f32 %v2723, %v2795
    %2799 = vrot.lane.b32.xlu0 %v2749, 64
    %v2800 = vpop.permute.xlu0 %2799
    %v2802 = vmul.f32 %v2679, %v2800
    %2804 = vrot.lane.b32.xlu0 %v2802, 32
    %v2805 = vpop.permute.xlu0 %2804
    %v2807 = vadd.f32 %v2797, %v2805
    %v2808 = vtanh.pop %v2807
    %2810 = vrot.lane.b32.xlu0 %v2808, 64
    %v2811 = vpop.permute.xlu0 %2810
    %v2813 = vmul.f32 %v2793, %v2811
    %2815 = vrot.lane.b32.xlu0 %v2813, 32
    %v2816 = vpop.permute.xlu0 %2815
    %2818 = vst.msk [vmem:[#allocation3 + $0x8] sm:$0x3] %vm511, %v2816
    %v2819 = vsel %vm332, %v2816, 0
    %2821 = vmatpush.msra.mxu0 0.0
    %2822 = vmatpush.msra.mxu0 0.0
    %2823 = vmatpush.msra.mxu0 0.0
    %2824 = vmatpush.msra.mxu0 0.0
    %2825 = vmatpush.msra.mxu0 0.0
    %2826 = vmatpush.msra.mxu0 0.0
    %2827 = vmatpush.msra.mxu0 0.0
    %2828 = vmatpush.msra.mxu0 0.0
    %2829 = vmatpush.msra.mxu0 0.0
    %2830 = vmatpush.msra.mxu0 0.0
    %2831 = vmatpush.msra.mxu0 0.0
    %2832 = vmatpush.msra.mxu0 0.0
    %2833 = vmatpush.msra.mxu0 %v1876
    %2834 = vmatpush.msra.mxu0 %v1875
    %2835 = vmatpush.msra.mxu0 %v1874
    %2836 = vmatpush.msra.mxu0 %v1873
    %2837 = vmatmul.f32.gmra.mxu0 %v2819
    %v2838 = vpop.f32.mrf.mxu0
    %v2839 = vadd.f32 0.0, %v2838
    %2840 = vdwg.mxu0
    %v2842 = vrot.slane %v2839, 6
    %v2844 = vadd.f32 %v1871, %v2842
    %v2845 = vxor.u32 %v2844, 2147483648
    %v2846 = vmul.f32 %v2845, 1.442695
    %v2847 = vpow.pop %v2846
    %v2848 = vadd.f32 %v2847, 1.0
    %v2849 = vrcp.pop %v2848
    %v2850 = vmul.f32 %v2848, %v2849
    %v2851 = vsub.f32 1.0, %v2850
    %v2852 = vmul.f32 %v2849, %v2851
    %v2853 = vadd.f32 %v2849, %v2852
    %vm2854 = vweird.f32 %v2848
    %vm2855 = vweird.f32 %v2849
    %vm2856 = vmor %vm2854, %vm2855
    %v2857 = vsel %vm2856, %v2849, %v2853
    %v2858 = vand.u32 2147483647, %v2848
    %vm2859 = vcmp.eq.f32.partialorder %v2858, 8.507059e+37
    %v2860 = vand.u32 %v2848, 2147483648
    %v2861 = vor.u32 1.1754944e-38, %v2860
    %v2862 = vsel %vm2859, %v2861, %v2857
    %v2863 = vmul.f32 1.0, %v2862
    %2864 = vmatpush.msra.mxu0 0.0
    %2865 = vmatpush.msra.mxu0 0.0
    %2866 = vmatpush.msra.mxu0 0.0
    %2867 = vmatpush.msra.mxu0 0.0
    %2868 = vmatpush.msra.mxu0 0.0
    %2869 = vmatpush.msra.mxu0 0.0
    %2870 = vmatpush.msra.mxu0 0.0
    %2871 = vmatpush.msra.mxu0 0.0
    %2872 = vmatpush.msra.mxu0 0.0
    %2873 = vmatpush.msra.mxu0 0.0
    %2874 = vmatpush.msra.mxu0 0.0
    %2875 = vmatpush.msra.mxu0 0.0
    %2876 = vmatpush.msra.mxu0 %v1881
    %2877 = vmatpush.msra.mxu0 %v1880
    %2878 = vmatpush.msra.mxu0 %v1879
    %2879 = vmatpush.msra.mxu0 %v1878
    %2880 = vmatmul.f32.gmra.mxu0 %v2819
    %v2881 = vpop.f32.mrf.mxu0
    %v2882 = vadd.f32 0.0, %v2881
    %2883 = vdwg.mxu0
    %v2885 = vrot.slane %v2882, 6
    %2886 = vrot.lane.b32.xlu0 %v2885, 32
    %v2887 = vpop.permute.xlu0 %2886
    %v2889 = vadd.f32 %v1871, %v2887
    %v2890 = vxor.u32 %v2889, 2147483648
    %v2891 = vmul.f32 %v2890, 1.442695
    %v2892 = vpow.pop %v2891
    %v2893 = vadd.f32 %v2892, 1.0
    %v2894 = vrcp.pop %v2893
    %v2895 = vmul.f32 %v2893, %v2894
    %v2896 = vsub.f32 1.0, %v2895
    %v2897 = vmul.f32 %v2894, %v2896
    %v2898 = vadd.f32 %v2894, %v2897
    %vm2899 = vweird.f32 %v2893
    %vm2900 = vweird.f32 %v2894
    %vm2901 = vmor %vm2899, %vm2900
    %v2902 = vsel %vm2901, %v2894, %v2898
    %v2903 = vand.u32 2147483647, %v2893
    %vm2904 = vcmp.eq.f32.partialorder %v2903, 8.507059e+37
    %v2905 = vand.u32 %v2893, 2147483648
    %v2906 = vor.u32 1.1754944e-38, %v2905
    %v2907 = vsel %vm2904, %v2906, %v2902
    %v2908 = vmul.f32 1.0, %v2907
    %2909 = vmatpush.msra.mxu0 0.0
    %2910 = vmatpush.msra.mxu0 0.0
    %2911 = vmatpush.msra.mxu0 0.0
    %2912 = vmatpush.msra.mxu0 0.0
    %2913 = vmatpush.msra.mxu0 0.0
    %2914 = vmatpush.msra.mxu0 0.0
    %2915 = vmatpush.msra.mxu0 0.0
    %2916 = vmatpush.msra.mxu0 0.0
    %2917 = vmatpush.msra.mxu0 0.0
    %2918 = vmatpush.msra.mxu0 0.0
    %2919 = vmatpush.msra.mxu0 0.0
    %2920 = vmatpush.msra.mxu0 0.0
    %2921 = vmatpush.msra.mxu0 %v1886
    %2922 = vmatpush.msra.mxu0 %v1885
    %2923 = vmatpush.msra.mxu0 %v1884
    %2924 = vmatpush.msra.mxu0 %v1883
    %2925 = vmatmul.f32.gmra.mxu0 %v2819
    %v2926 = vpop.f32.mrf.mxu0
    %v2927 = vadd.f32 0.0, %v2926
    %2928 = vdwg.mxu0
    %v2930 = vrot.slane %v2927, 6
    %2931 = vrot.lane.b32.xlu0 %v2930, 64
    %v2932 = vpop.permute.xlu0 %2931
    %v2934 = vadd.f32 %v1871, %v2932
    %v2935 = vtanh.pop %v2934
    %2936 = vmatpush.msra.mxu0 0.0
    %2937 = vmatpush.msra.mxu0 0.0
    %2938 = vmatpush.msra.mxu0 0.0
    %2939 = vmatpush.msra.mxu0 0.0
    %2940 = vmatpush.msra.mxu0 0.0
    %2941 = vmatpush.msra.mxu0 0.0
    %2942 = vmatpush.msra.mxu0 0.0
    %2943 = vmatpush.msra.mxu0 0.0
    %2944 = vmatpush.msra.mxu0 0.0
    %2945 = vmatpush.msra.mxu0 0.0
    %2946 = vmatpush.msra.mxu0 0.0
    %2947 = vmatpush.msra.mxu0 0.0
    %2948 = vmatpush.msra.mxu0 %v1891
    %2949 = vmatpush.msra.mxu0 %v1890
    %2950 = vmatpush.msra.mxu0 %v1889
    %2951 = vmatpush.msra.mxu0 %v1888
    %2952 = vmatmul.f32.gmra.mxu0 %v2819
    %v2953 = vpop.f32.mrf.mxu0
    %v2954 = vadd.f32 0.0, %v2953
    %2955 = vdwg.mxu0
    %v2957 = vrot.slane %v2954, 6
    %2958 = vrot.lane.b32.xlu0 %v2957, 96
    %v2959 = vpop.permute.xlu0 %2958
    %v2961 = vadd.f32 %v1871, %v2959
    %v2962 = vxor.u32 %v2961, 2147483648
    %v2963 = vmul.f32 %v2962, 1.442695
    %v2964 = vpow.pop %v2963
    %v2965 = vadd.f32 %v2964, 1.0
    %v2966 = vrcp.pop %v2965
    %v2967 = vmul.f32 %v2965, %v2966
    %v2968 = vsub.f32 1.0, %v2967
    %v2969 = vmul.f32 %v2966, %v2968
    %v2970 = vadd.f32 %v2966, %v2969
    %vm2971 = vweird.f32 %v2965
    %vm2972 = vweird.f32 %v2966
    %vm2973 = vmor %vm2971, %vm2972
    %v2974 = vsel %vm2973, %v2966, %v2970
    %v2975 = vand.u32 2147483647, %v2965
    %vm2976 = vcmp.eq.f32.partialorder %v2975, 8.507059e+37
    %v2977 = vand.u32 %v2965, 2147483648
    %v2978 = vor.u32 1.1754944e-38, %v2977
    %v2979 = vsel %vm2976, %v2978, %v2974
    %v2980 = vmul.f32 1.0, %v2979
    %v2982 = vrot.slane %v2807, 6
    %v2984 = vmul.f32 %v2908, %v2982
    %2986 = vrot.lane.b32.xlu0 %v2935, 64
    %v2987 = vpop.permute.xlu0 %2986
    %v2989 = vmul.f32 %v2863, %v2987
    %2991 = vrot.lane.b32.xlu0 %v2989, 32
    %v2992 = vpop.permute.xlu0 %2991
    %v2994 = vadd.f32 %v2984, %v2992
    %v2995 = vtanh.pop %v2994
    %2997 = vrot.lane.b32.xlu0 %v2995, 64
    %v2998 = vpop.permute.xlu0 %2997
    %v3000 = vmul.f32 %v2980, %v2998
    %3002 = vrot.lane.b32.xlu0 %v3000, 32
    %v3003 = vpop.permute.xlu0 %3002
    %3005 = vst.msk [vmem:[#allocation3 + $0x8] sm:$0xc] %vm699, %v3003
    %v3006 = vrot.slane %v3000, 2
    %3007 = vrot.lane.b32.xlu0 %v3006, 32
    %v3008 = vpop.permute.xlu0 %3007
    %v3009 = vsel %vm332, %v3008, 0
    %3011 = vmatpush.msra.mxu0 0.0
    %3012 = vmatpush.msra.mxu0 0.0
    %3013 = vmatpush.msra.mxu0 0.0
    %3014 = vmatpush.msra.mxu0 0.0
    %3015 = vmatpush.msra.mxu0 0.0
    %3016 = vmatpush.msra.mxu0 0.0
    %3017 = vmatpush.msra.mxu0 0.0
    %3018 = vmatpush.msra.mxu0 0.0
    %3019 = vmatpush.msra.mxu0 0.0
    %3020 = vmatpush.msra.mxu0 0.0
    %3021 = vmatpush.msra.mxu0 0.0
    %3022 = vmatpush.msra.mxu0 0.0
    %3023 = vmatpush.msra.mxu0 %v1876
    %3024 = vmatpush.msra.mxu0 %v1875
    %3025 = vmatpush.msra.mxu0 %v1874
    %3026 = vmatpush.msra.mxu0 %v1873
    %3027 = vmatmul.f32.gmra.mxu0 %v3009
    %v3028 = vpop.f32.mrf.mxu0
    %v3029 = vadd.f32 0.0, %v3028
    %3030 = vdwg.mxu0
    %v3032 = vrot.slane %v3029, 4
    %v3034 = vadd.f32 %v1871, %v3032
    %v3035 = vxor.u32 %v3034, 2147483648
    %v3036 = vmul.f32 %v3035, 1.442695
    %v3037 = vpow.pop %v3036
    %v3038 = vadd.f32 %v3037, 1.0
    %v3039 = vrcp.pop %v3038
    %v3040 = vmul.f32 %v3038, %v3039
    %v3041 = vsub.f32 1.0, %v3040
    %v3042 = vmul.f32 %v3039, %v3041
    %v3043 = vadd.f32 %v3039, %v3042
    %vm3044 = vweird.f32 %v3038
    %vm3045 = vweird.f32 %v3039
    %vm3046 = vmor %vm3044, %vm3045
    %v3047 = vsel %vm3046, %v3039, %v3043
    %v3048 = vand.u32 2147483647, %v3038
    %vm3049 = vcmp.eq.f32.partialorder %v3048, 8.507059e+37
    %v3050 = vand.u32 %v3038, 2147483648
    %v3051 = vor.u32 1.1754944e-38, %v3050
    %v3052 = vsel %vm3049, %v3051, %v3047
    %v3053 = vmul.f32 1.0, %v3052
    %3054 = vmatpush.msra.mxu0 0.0
    %3055 = vmatpush.msra.mxu0 0.0
    %3056 = vmatpush.msra.mxu0 0.0
    %3057 = vmatpush.msra.mxu0 0.0
    %3058 = vmatpush.msra.mxu0 0.0
    %3059 = vmatpush.msra.mxu0 0.0
    %3060 = vmatpush.msra.mxu0 0.0
    %3061 = vmatpush.msra.mxu0 0.0
    %3062 = vmatpush.msra.mxu0 0.0
    %3063 = vmatpush.msra.mxu0 0.0
    %3064 = vmatpush.msra.mxu0 0.0
    %3065 = vmatpush.msra.mxu0 0.0
    %3066 = vmatpush.msra.mxu0 %v1881
    %3067 = vmatpush.msra.mxu0 %v1880
    %3068 = vmatpush.msra.mxu0 %v1879
    %3069 = vmatpush.msra.mxu0 %v1878
    %3070 = vmatmul.f32.gmra.mxu0 %v3009
    %v3071 = vpop.f32.mrf.mxu0
    %v3072 = vadd.f32 0.0, %v3071
    %3073 = vdwg.mxu0
    %v3075 = vrot.slane %v3072, 4
    %3076 = vrot.lane.b32.xlu0 %v3075, 32
    %v3077 = vpop.permute.xlu0 %3076
    %v3079 = vadd.f32 %v1871, %v3077
    %v3080 = vxor.u32 %v3079, 2147483648
    %v3081 = vmul.f32 %v3080, 1.442695
    %v3082 = vpow.pop %v3081
    %v3083 = vadd.f32 %v3082, 1.0
    %v3084 = vrcp.pop %v3083
    %v3085 = vmul.f32 %v3083, %v3084
    %v3086 = vsub.f32 1.0, %v3085
    %v3087 = vmul.f32 %v3084, %v3086
    %v3088 = vadd.f32 %v3084, %v3087
    %vm3089 = vweird.f32 %v3083
    %vm3090 = vweird.f32 %v3084
    %vm3091 = vmor %vm3089, %vm3090
    %v3092 = vsel %vm3091, %v3084, %v3088
    %v3093 = vand.u32 2147483647, %v3083
    %vm3094 = vcmp.eq.f32.partialorder %v3093, 8.507059e+37
    %v3095 = vand.u32 %v3083, 2147483648
    %v3096 = vor.u32 1.1754944e-38, %v3095
    %v3097 = vsel %vm3094, %v3096, %v3092
    %v3098 = vmul.f32 1.0, %v3097
    %3099 = vmatpush.msra.mxu0 0.0
    %3100 = vmatpush.msra.mxu0 0.0
    %3101 = vmatpush.msra.mxu0 0.0
    %3102 = vmatpush.msra.mxu0 0.0
    %3103 = vmatpush.msra.mxu0 0.0
    %3104 = vmatpush.msra.mxu0 0.0
    %3105 = vmatpush.msra.mxu0 0.0
    %3106 = vmatpush.msra.mxu0 0.0
    %3107 = vmatpush.msra.mxu0 0.0
    %3108 = vmatpush.msra.mxu0 0.0
    %3109 = vmatpush.msra.mxu0 0.0
    %3110 = vmatpush.msra.mxu0 0.0
    %3111 = vmatpush.msra.mxu0 %v1886
    %3112 = vmatpush.msra.mxu0 %v1885
    %3113 = vmatpush.msra.mxu0 %v1884
    %3114 = vmatpush.msra.mxu0 %v1883
    %3115 = vmatmul.f32.gmra.mxu0 %v3009
    %v3116 = vpop.f32.mrf.mxu0
    %v3117 = vadd.f32 0.0, %v3116
    %3118 = vdwg.mxu0
    %v3120 = vrot.slane %v3117, 4
    %3121 = vrot.lane.b32.xlu0 %v3120, 64
    %v3122 = vpop.permute.xlu0 %3121
    %v3124 = vadd.f32 %v1871, %v3122
    %v3125 = vtanh.pop %v3124
    %3126 = vmatpush.msra.mxu0 0.0
    %3127 = vmatpush.msra.mxu0 0.0
    %3128 = vmatpush.msra.mxu0 0.0
    %3129 = vmatpush.msra.mxu0 0.0
    %3130 = vmatpush.msra.mxu0 0.0
    %3131 = vmatpush.msra.mxu0 0.0
    %3132 = vmatpush.msra.mxu0 0.0
    %3133 = vmatpush.msra.mxu0 0.0
    %3134 = vmatpush.msra.mxu0 0.0
    %3135 = vmatpush.msra.mxu0 0.0
    %3136 = vmatpush.msra.mxu0 0.0
    %3137 = vmatpush.msra.mxu0 0.0
    %3138 = vmatpush.msra.mxu0 %v1891
    %3139 = vmatpush.msra.mxu0 %v1890
    %3140 = vmatpush.msra.mxu0 %v1889
    %3141 = vmatpush.msra.mxu0 %v1888
    %3142 = vmatmul.f32.gmra.mxu0 %v3009
    %v3143 = vpop.f32.mrf.mxu0
    %v3144 = vadd.f32 0.0, %v3143
    %3145 = vdwg.mxu0
    %v3147 = vrot.slane %v3144, 4
    %3148 = vrot.lane.b32.xlu0 %v3147, 96
    %v3149 = vpop.permute.xlu0 %3148
    %v3151 = vadd.f32 %v1871, %v3149
    %v3152 = vxor.u32 %v3151, 2147483648
    %v3153 = vmul.f32 %v3152, 1.442695
    %v3154 = vpow.pop %v3153
    %v3155 = vadd.f32 %v3154, 1.0
    %v3156 = vrcp.pop %v3155
    %v3157 = vmul.f32 %v3155, %v3156
    %v3158 = vsub.f32 1.0, %v3157
    %v3159 = vmul.f32 %v3156, %v3158
    %v3160 = vadd.f32 %v3156, %v3159
    %vm3161 = vweird.f32 %v3155
    %vm3162 = vweird.f32 %v3156
    %vm3163 = vmor %vm3161, %vm3162
    %v3164 = vsel %vm3163, %v3156, %v3160
    %v3165 = vand.u32 2147483647, %v3155
    %vm3166 = vcmp.eq.f32.partialorder %v3165, 8.507059e+37
    %v3167 = vand.u32 %v3155, 2147483648
    %v3168 = vor.u32 1.1754944e-38, %v3167
    %v3169 = vsel %vm3166, %v3168, %v3164
    %v3170 = vmul.f32 1.0, %v3169
    %v3172 = vrot.slane %v2994, 6
    %v3174 = vmul.f32 %v3098, %v3172
    %3176 = vrot.lane.b32.xlu0 %v3125, 64
    %v3177 = vpop.permute.xlu0 %3176
    %v3179 = vmul.f32 %v3053, %v3177
    %3181 = vrot.lane.b32.xlu0 %v3179, 32
    %v3182 = vpop.permute.xlu0 %3181
    %v3184 = vadd.f32 %v3174, %v3182
    %v3185 = vtanh.pop %v3184
    %3187 = vrot.lane.b32.xlu0 %v3185, 64
    %v3188 = vpop.permute.xlu0 %3187
    %v3190 = vmul.f32 %v3170, %v3188
    %3192 = vrot.lane.b32.xlu0 %v3190, 32
    %v3193 = vpop.permute.xlu0 %3192
    %3195 = vst.msk [vmem:[#allocation3 + $0x8] sm:$0x30] %vm890, %v3193
    %v3196 = vrot.slane %v3190, 4
    %3197 = vrot.lane.b32.xlu0 %v3196, 32
    %v3198 = vpop.permute.xlu0 %3197
    %v3199 = vsel %vm332, %v3198, 0
    %3201 = vmatpush.msra.mxu0 0.0
    %3202 = vmatpush.msra.mxu0 0.0
    %3203 = vmatpush.msra.mxu0 0.0
    %3204 = vmatpush.msra.mxu0 0.0
    %3205 = vmatpush.msra.mxu0 0.0
    %3206 = vmatpush.msra.mxu0 0.0
    %3207 = vmatpush.msra.mxu0 0.0
    %3208 = vmatpush.msra.mxu0 0.0
    %3209 = vmatpush.msra.mxu0 0.0
    %3210 = vmatpush.msra.mxu0 0.0
    %3211 = vmatpush.msra.mxu0 0.0
    %3212 = vmatpush.msra.mxu0 0.0
    %3213 = vmatpush.msra.mxu0 %v1876
    %3214 = vmatpush.msra.mxu0 %v1875
    %3215 = vmatpush.msra.mxu0 %v1874
    %3216 = vmatpush.msra.mxu0 %v1873
    %3217 = vmatmul.f32.gmra.mxu0 %v3199
    %v3218 = vpop.f32.mrf.mxu0
    %v3219 = vadd.f32 0.0, %v3218
    %3220 = vdwg.mxu0
    %v3222 = vrot.slane %v3219, 2
    %v3224 = vadd.f32 %v1871, %v3222
    %v3225 = vxor.u32 %v3224, 2147483648
    %v3226 = vmul.f32 %v3225, 1.442695
    %v3227 = vpow.pop %v3226
    %v3228 = vadd.f32 %v3227, 1.0
    %v3229 = vrcp.pop %v3228
    %v3230 = vmul.f32 %v3228, %v3229
    %v3231 = vsub.f32 1.0, %v3230
    %v3232 = vmul.f32 %v3229, %v3231
    %v3233 = vadd.f32 %v3229, %v3232
    %vm3234 = vweird.f32 %v3228
    %vm3235 = vweird.f32 %v3229
    %vm3236 = vmor %vm3234, %vm3235
    %v3237 = vsel %vm3236, %v3229, %v3233
    %v3238 = vand.u32 2147483647, %v3228
    %vm3239 = vcmp.eq.f32.partialorder %v3238, 8.507059e+37
    %v3240 = vand.u32 %v3228, 2147483648
    %v3241 = vor.u32 1.1754944e-38, %v3240
    %v3242 = vsel %vm3239, %v3241, %v3237
    %v3243 = vmul.f32 1.0, %v3242
    %3244 = vmatpush.msra.mxu0 0.0
    %3245 = vmatpush.msra.mxu0 0.0
    %3246 = vmatpush.msra.mxu0 0.0
    %3247 = vmatpush.msra.mxu0 0.0
    %3248 = vmatpush.msra.mxu0 0.0
    %3249 = vmatpush.msra.mxu0 0.0
    %3250 = vmatpush.msra.mxu0 0.0
    %3251 = vmatpush.msra.mxu0 0.0
    %3252 = vmatpush.msra.mxu0 0.0
    %3253 = vmatpush.msra.mxu0 0.0
    %3254 = vmatpush.msra.mxu0 0.0
    %3255 = vmatpush.msra.mxu0 0.0
    %3256 = vmatpush.msra.mxu0 %v1881
    %3257 = vmatpush.msra.mxu0 %v1880
    %3258 = vmatpush.msra.mxu0 %v1879
    %3259 = vmatpush.msra.mxu0 %v1878
    %3260 = vmatmul.f32.gmra.mxu0 %v3199
    %v3261 = vpop.f32.mrf.mxu0
    %v3262 = vadd.f32 0.0, %v3261
    %3263 = vdwg.mxu0
    %v3265 = vrot.slane %v3262, 2
    %3266 = vrot.lane.b32.xlu0 %v3265, 32
    %v3267 = vpop.permute.xlu0 %3266
    %v3269 = vadd.f32 %v1871, %v3267
    %v3270 = vxor.u32 %v3269, 2147483648
    %v3271 = vmul.f32 %v3270, 1.442695
    %v3272 = vpow.pop %v3271
    %v3273 = vadd.f32 %v3272, 1.0
    %v3274 = vrcp.pop %v3273
    %v3275 = vmul.f32 %v3273, %v3274
    %v3276 = vsub.f32 1.0, %v3275
    %v3277 = vmul.f32 %v3274, %v3276
    %v3278 = vadd.f32 %v3274, %v3277
    %vm3279 = vweird.f32 %v3273
    %vm3280 = vweird.f32 %v3274
    %vm3281 = vmor %vm3279, %vm3280
    %v3282 = vsel %vm3281, %v3274, %v3278
    %v3283 = vand.u32 2147483647, %v3273
    %vm3284 = vcmp.eq.f32.partialorder %v3283, 8.507059e+37
    %v3285 = vand.u32 %v3273, 2147483648
    %v3286 = vor.u32 1.1754944e-38, %v3285
    %v3287 = vsel %vm3284, %v3286, %v3282
    %v3288 = vmul.f32 1.0, %v3287
    %3289 = vmatpush.msra.mxu0 0.0
    %3290 = vmatpush.msra.mxu0 0.0
    %3291 = vmatpush.msra.mxu0 0.0
    %3292 = vmatpush.msra.mxu0 0.0
    %3293 = vmatpush.msra.mxu0 0.0
    %3294 = vmatpush.msra.mxu0 0.0
    %3295 = vmatpush.msra.mxu0 0.0
    %3296 = vmatpush.msra.mxu0 0.0
    %3297 = vmatpush.msra.mxu0 0.0
    %3298 = vmatpush.msra.mxu0 0.0
    %3299 = vmatpush.msra.mxu0 0.0
    %3300 = vmatpush.msra.mxu0 0.0
    %3301 = vmatpush.msra.mxu0 %v1886
    %3302 = vmatpush.msra.mxu0 %v1885
    %3303 = vmatpush.msra.mxu0 %v1884
    %3304 = vmatpush.msra.mxu0 %v1883
    %3305 = vmatmul.f32.gmra.mxu0 %v3199
    %v3306 = vpop.f32.mrf.mxu0
    %v3307 = vadd.f32 0.0, %v3306
    %3308 = vdwg.mxu0
    %v3310 = vrot.slane %v3307, 2
    %3311 = vrot.lane.b32.xlu0 %v3310, 64
    %v3312 = vpop.permute.xlu0 %3311
    %v3314 = vadd.f32 %v1871, %v3312
    %v3315 = vtanh.pop %v3314
    %3316 = vmatpush.msra.mxu0 0.0
    %3317 = vmatpush.msra.mxu0 0.0
    %3318 = vmatpush.msra.mxu0 0.0
    %3319 = vmatpush.msra.mxu0 0.0
    %3320 = vmatpush.msra.mxu0 0.0
    %3321 = vmatpush.msra.mxu0 0.0
    %3322 = vmatpush.msra.mxu0 0.0
    %3323 = vmatpush.msra.mxu0 0.0
    %3324 = vmatpush.msra.mxu0 0.0
    %3325 = vmatpush.msra.mxu0 0.0
    %3326 = vmatpush.msra.mxu0 0.0
    %3327 = vmatpush.msra.mxu0 0.0
    %3328 = vmatpush.msra.mxu0 %v1891
    %3329 = vmatpush.msra.mxu0 %v1890
    %3330 = vmatpush.msra.mxu0 %v1889
    %3331 = vmatpush.msra.mxu0 %v1888
    %3332 = vmatmul.f32.gmra.mxu0 %v3199
    %v3333 = vpop.f32.mrf.mxu0
    %v3334 = vadd.f32 0.0, %v3333
    %3335 = vdwg.mxu0
    %v3337 = vrot.slane %v3334, 2
    %3338 = vrot.lane.b32.xlu0 %v3337, 96
    %v3339 = vpop.permute.xlu0 %3338
    %v3341 = vadd.f32 %v1871, %v3339
    %v3342 = vxor.u32 %v3341, 2147483648
    %v3343 = vmul.f32 %v3342, 1.442695
    %v3344 = vpow.pop %v3343
    %v3345 = vadd.f32 %v3344, 1.0
    %v3346 = vrcp.pop %v3345
    %v3347 = vmul.f32 %v3345, %v3346
    %v3348 = vsub.f32 1.0, %v3347
    %v3349 = vmul.f32 %v3346, %v3348
    %v3350 = vadd.f32 %v3346, %v3349
    %vm3351 = vweird.f32 %v3345
    %vm3352 = vweird.f32 %v3346
    %vm3353 = vmor %vm3351, %vm3352
    %v3354 = vsel %vm3353, %v3346, %v3350
    %v3355 = vand.u32 2147483647, %v3345
    %vm3356 = vcmp.eq.f32.partialorder %v3355, 8.507059e+37
    %v3357 = vand.u32 %v3345, 2147483648
    %v3358 = vor.u32 1.1754944e-38, %v3357
    %v3359 = vsel %vm3356, %v3358, %v3354
    %v3360 = vmul.f32 1.0, %v3359
    %v3362 = vrot.slane %v3184, 6
    %v3364 = vmul.f32 %v3288, %v3362
    %3366 = vrot.lane.b32.xlu0 %v3315, 64
    %v3367 = vpop.permute.xlu0 %3366
    %v3369 = vmul.f32 %v3243, %v3367
    %3371 = vrot.lane.b32.xlu0 %v3369, 32
    %v3372 = vpop.permute.xlu0 %3371
    %v3374 = vadd.f32 %v3364, %v3372
    %v3375 = vtanh.pop %v3374
    %3377 = vrot.lane.b32.xlu0 %v3375, 64
    %v3378 = vpop.permute.xlu0 %3377
    %v3380 = vmul.f32 %v3360, %v3378
    %3382 = vrot.lane.b32.xlu0 %v3380, 32
    %v3383 = vpop.permute.xlu0 %3382
    %3385 = vst.msk [vmem:[#allocation3 + $0x8] sm:$0xc0] %vm1081, %v3383
    %v3386 = vld [vmem:[#allocation3] sm:$0xff]
    %v3387 = vld [vmem:[#allocation3 + $0x8] sm:$0xff]
    %v3388 = vld [vmem:[#allocation13] sm:$0xff]
    %v3389 = vld [vmem:[#allocation13 + $0x8] sm:$0xff]
    %v3390 = vld [vmem:[#allocation13 + $0x10] sm:$0xff]
    %v3391 = vld [vmem:[#allocation13 + $0x18] sm:$0xff]
    %v3392 = vld [vmem:[%s9] sm:$0x1]
    %v3394 = vperm.slane %v3392, 0
    %v3397 = vsel %vm332, %v3386, 0
    %v3400 = vsel %vm332, %v3387, 0
    %3402 = vmatpush.msra.mxu0 0.0
    %3403 = vmatpush.msra.mxu0 0.0
    %3404 = vmatpush.msra.mxu0 0.0
    %3405 = vmatpush.msra.mxu0 0.0
    %3406 = vmatpush.msra.mxu0 0.0
    %3407 = vmatpush.msra.mxu0 0.0
    %3408 = vmatpush.msra.mxu0 0.0
    %3409 = vmatpush.msra.mxu0 0.0
    %3410 = vmatpush.msra.mxu0 0.0
    %3411 = vmatpush.msra.mxu0 0.0
    %3412 = vmatpush.msra.mxu0 0.0
    %3413 = vmatpush.msra.mxu0 0.0
    %3414 = vmatpush.msra.mxu0 %v3391
    %3415 = vmatpush.msra.mxu0 %v3390
    %3416 = vmatpush.msra.mxu0 %v3389
    %3417 = vmatpush.msra.mxu0 %v3388
    %3418 = vmatmul.f32.gmra.mxu0 %v3397
    %v3419 = vpop.f32.mrf.mxu0
    %v3420 = vadd.f32 %v3394, %v3419
    %3421 = vmatmul.f32.gmra.mxu0 %v3400
    %v3422 = vpop.f32.mrf.mxu0
    %v3423 = vadd.f32 %v3394, %v3422
    %3424 = vdwg.mxu0
    %v3425 = vld [vmem:[#allocation15] sm:$0xff]
    %v3426 = vld [vmem:[#allocation15 + $0x8] sm:$0xff]
    %v3427 = vld [vmem:[#allocation15 + $0x10] sm:$0xff]
    %v3428 = vld [vmem:[#allocation15 + $0x18] sm:$0xff]
    %s3429 = scalar_lea.vmem [#allocation15], 32
    %v3430 = vld [vmem:[%s3429] sm:$0xff]
    %v3431 = vld [vmem:[%s3429 + $0x8] sm:$0xff]
    %v3432 = vld [vmem:[%s3429 + $0x10] sm:$0xff]
    %v3433 = vld [vmem:[%s3429 + $0x18] sm:$0xff]
    %s3434 = scalar_lea.vmem [#allocation15], 64
    %v3435 = vld [vmem:[%s3434] sm:$0xff]
    %v3436 = vld [vmem:[%s3434 + $0x8] sm:$0xff]
    %v3437 = vld [vmem:[%s3434 + $0x10] sm:$0xff]
    %v3438 = vld [vmem:[%s3434 + $0x18] sm:$0xff]
    %s3439 = scalar_lea.vmem [#allocation15], 96
    %v3440 = vld [vmem:[%s3439] sm:$0xff]
    %v3441 = vld [vmem:[%s3439 + $0x8] sm:$0xff]
    %v3442 = vld [vmem:[%s3439 + $0x10] sm:$0xff]
    %v3443 = vld [vmem:[%s3439 + $0x18] sm:$0xff]
    %3444 = vmatpush.msra.mxu0 0.0
    %3445 = vmatpush.msra.mxu0 0.0
    %3446 = vmatpush.msra.mxu0 0.0
    %3447 = vmatpush.msra.mxu0 0.0
    %3448 = vmatpush.msra.mxu0 0.0
    %3449 = vmatpush.msra.mxu0 0.0
    %3450 = vmatpush.msra.mxu0 0.0
    %3451 = vmatpush.msra.mxu0 0.0
    %3452 = vmatpush.msra.mxu0 0.0
    %3453 = vmatpush.msra.mxu0 0.0
    %3454 = vmatpush.msra.mxu0 0.0
    %3455 = vmatpush.msra.mxu0 0.0
    %3456 = vmatpush.msra.mxu0 %v3428
    %3457 = vmatpush.msra.mxu0 %v3427
    %3458 = vmatpush.msra.mxu0 %v3426
    %3459 = vmatpush.msra.mxu0 %v3425
    %3460 = vmatmul.f32.gmra.mxu0 %v334
    %v3461 = vpop.f32.mrf.mxu0
    %v3462 = vadd.f32 0.0, %v3461
    %3463 = vdwg.mxu0
    %v3464 = vadd.f32 %v3420, %v3462
    %v3465 = vxor.u32 %v3464, 2147483648
    %v3466 = vmul.f32 %v3465, 1.442695
    %v3467 = vpow.pop %v3466
    %v3468 = vadd.f32 %v3467, 1.0
    %v3469 = vrcp.pop %v3468
    %v3470 = vmul.f32 %v3468, %v3469
    %v3471 = vsub.f32 1.0, %v3470
    %v3472 = vmul.f32 %v3469, %v3471
    %v3473 = vadd.f32 %v3469, %v3472
    %vm3474 = vweird.f32 %v3468
    %vm3475 = vweird.f32 %v3469
    %vm3476 = vmor %vm3474, %vm3475
    %v3477 = vsel %vm3476, %v3469, %v3473
    %v3478 = vand.u32 2147483647, %v3468
    %vm3479 = vcmp.eq.f32.partialorder %v3478, 8.507059e+37
    %v3480 = vand.u32 %v3468, 2147483648
    %v3481 = vor.u32 1.1754944e-38, %v3480
    %v3482 = vsel %vm3479, %v3481, %v3477
    %v3483 = vmul.f32 1.0, %v3482
    %3484 = vmatpush.msra.mxu0 0.0
    %3485 = vmatpush.msra.mxu0 0.0
    %3486 = vmatpush.msra.mxu0 0.0
    %3487 = vmatpush.msra.mxu0 0.0
    %3488 = vmatpush.msra.mxu0 0.0
    %3489 = vmatpush.msra.mxu0 0.0
    %3490 = vmatpush.msra.mxu0 0.0
    %3491 = vmatpush.msra.mxu0 0.0
    %3492 = vmatpush.msra.mxu0 0.0
    %3493 = vmatpush.msra.mxu0 0.0
    %3494 = vmatpush.msra.mxu0 0.0
    %3495 = vmatpush.msra.mxu0 0.0
    %3496 = vmatpush.msra.mxu0 %v3433
    %3497 = vmatpush.msra.mxu0 %v3432
    %3498 = vmatpush.msra.mxu0 %v3431
    %3499 = vmatpush.msra.mxu0 %v3430
    %3500 = vmatmul.f32.gmra.mxu0 %v334
    %v3501 = vpop.f32.mrf.mxu0
    %v3502 = vadd.f32 0.0, %v3501
    %3503 = vdwg.mxu0
    %3505 = vrot.lane.b32.xlu0 %v3502, 32
    %v3506 = vpop.permute.xlu0 %3505
    %v3508 = vadd.f32 %v3420, %v3506
    %v3509 = vxor.u32 %v3508, 2147483648
    %v3510 = vmul.f32 %v3509, 1.442695
    %v3511 = vpow.pop %v3510
    %v3512 = vadd.f32 %v3511, 1.0
    %v3513 = vrcp.pop %v3512
    %v3514 = vmul.f32 %v3512, %v3513
    %v3515 = vsub.f32 1.0, %v3514
    %v3516 = vmul.f32 %v3513, %v3515
    %v3517 = vadd.f32 %v3513, %v3516
    %vm3518 = vweird.f32 %v3512
    %vm3519 = vweird.f32 %v3513
    %vm3520 = vmor %vm3518, %vm3519
    %v3521 = vsel %vm3520, %v3513, %v3517
    %v3522 = vand.u32 2147483647, %v3512
    %vm3523 = vcmp.eq.f32.partialorder %v3522, 8.507059e+37
    %v3524 = vand.u32 %v3512, 2147483648
    %v3525 = vor.u32 1.1754944e-38, %v3524
    %v3526 = vsel %vm3523, %v3525, %v3521
    %v3527 = vmul.f32 1.0, %v3526
    %3528 = vmatpush.msra.mxu0 0.0
    %3529 = vmatpush.msra.mxu0 0.0
    %3530 = vmatpush.msra.mxu0 0.0
    %3531 = vmatpush.msra.mxu0 0.0
    %3532 = vmatpush.msra.mxu0 0.0
    %3533 = vmatpush.msra.mxu0 0.0
    %3534 = vmatpush.msra.mxu0 0.0
    %3535 = vmatpush.msra.mxu0 0.0
    %3536 = vmatpush.msra.mxu0 0.0
    %3537 = vmatpush.msra.mxu0 0.0
    %3538 = vmatpush.msra.mxu0 0.0
    %3539 = vmatpush.msra.mxu0 0.0
    %3540 = vmatpush.msra.mxu0 %v3438
    %3541 = vmatpush.msra.mxu0 %v3437
    %3542 = vmatpush.msra.mxu0 %v3436
    %3543 = vmatpush.msra.mxu0 %v3435
    %3544 = vmatmul.f32.gmra.mxu0 %v334
    %v3545 = vpop.f32.mrf.mxu0
    %v3546 = vadd.f32 0.0, %v3545
    %3547 = vdwg.mxu0
    %3549 = vrot.lane.b32.xlu0 %v3546, 64
    %v3550 = vpop.permute.xlu0 %3549
    %v3552 = vadd.f32 %v3420, %v3550
    %v3553 = vtanh.pop %v3552
    %3554 = vmatpush.msra.mxu0 0.0
    %3555 = vmatpush.msra.mxu0 0.0
    %3556 = vmatpush.msra.mxu0 0.0
    %3557 = vmatpush.msra.mxu0 0.0
    %3558 = vmatpush.msra.mxu0 0.0
    %3559 = vmatpush.msra.mxu0 0.0
    %3560 = vmatpush.msra.mxu0 0.0
    %3561 = vmatpush.msra.mxu0 0.0
    %3562 = vmatpush.msra.mxu0 0.0
    %3563 = vmatpush.msra.mxu0 0.0
    %3564 = vmatpush.msra.mxu0 0.0
    %3565 = vmatpush.msra.mxu0 0.0
    %3566 = vmatpush.msra.mxu0 %v3443
    %3567 = vmatpush.msra.mxu0 %v3442
    %3568 = vmatpush.msra.mxu0 %v3441
    %3569 = vmatpush.msra.mxu0 %v3440
    %3570 = vmatmul.f32.gmra.mxu0 %v334
    %v3571 = vpop.f32.mrf.mxu0
    %v3572 = vadd.f32 0.0, %v3571
    %3573 = vdwg.mxu0
    %3575 = vrot.lane.b32.xlu0 %v3572, 96
    %v3576 = vpop.permute.xlu0 %3575
    %v3578 = vadd.f32 %v3420, %v3576
    %v3579 = vxor.u32 %v3578, 2147483648
    %v3580 = vmul.f32 %v3579, 1.442695
    %v3581 = vpow.pop %v3580
    %v3582 = vadd.f32 %v3581, 1.0
    %v3583 = vrcp.pop %v3582
    %v3584 = vmul.f32 %v3582, %v3583
    %v3585 = vsub.f32 1.0, %v3584
    %v3586 = vmul.f32 %v3583, %v3585
    %v3587 = vadd.f32 %v3583, %v3586
    %vm3588 = vweird.f32 %v3582
    %vm3589 = vweird.f32 %v3583
    %vm3590 = vmor %vm3588, %vm3589
    %v3591 = vsel %vm3590, %v3583, %v3587
    %v3592 = vand.u32 2147483647, %v3582
    %vm3593 = vcmp.eq.f32.partialorder %v3592, 8.507059e+37
    %v3594 = vand.u32 %v3582, 2147483648
    %v3595 = vor.u32 1.1754944e-38, %v3594
    %v3596 = vsel %vm3593, %v3595, %v3591
    %v3597 = vmul.f32 1.0, %v3596
    %v3598 = vmul.f32 %v3527, 0.0
    %3600 = vrot.lane.b32.xlu0 %v3553, 64
    %v3601 = vpop.permute.xlu0 %3600
    %v3603 = vmul.f32 %v3483, %v3601
    %3605 = vrot.lane.b32.xlu0 %v3603, 32
    %v3606 = vpop.permute.xlu0 %3605
    %v3608 = vadd.f32 %v3598, %v3606
    %v3609 = vtanh.pop %v3608
    %3611 = vrot.lane.b32.xlu0 %v3609, 64
    %v3612 = vpop.permute.xlu0 %3611
    %v3614 = vmul.f32 %v3597, %v3612
    %3616 = vrot.lane.b32.xlu0 %v3614, 32
    %v3617 = vpop.permute.xlu0 %3616
    %3619 = vst.msk [vmem:[#allocation16] sm:$0x3] %vm511, %v3617
    %v3620 = vsel %vm332, %v3617, 0
    %3622 = vmatpush.msra.mxu0 0.0
    %3623 = vmatpush.msra.mxu0 0.0
    %3624 = vmatpush.msra.mxu0 0.0
    %3625 = vmatpush.msra.mxu0 0.0
    %3626 = vmatpush.msra.mxu0 0.0
    %3627 = vmatpush.msra.mxu0 0.0
    %3628 = vmatpush.msra.mxu0 0.0
    %3629 = vmatpush.msra.mxu0 0.0
    %3630 = vmatpush.msra.mxu0 0.0
    %3631 = vmatpush.msra.mxu0 0.0
    %3632 = vmatpush.msra.mxu0 0.0
    %3633 = vmatpush.msra.mxu0 0.0
    %3634 = vmatpush.msra.mxu0 %v3428
    %3635 = vmatpush.msra.mxu0 %v3427
    %3636 = vmatpush.msra.mxu0 %v3426
    %3637 = vmatpush.msra.mxu0 %v3425
    %3638 = vmatmul.f32.gmra.mxu0 %v3620
    %v3639 = vpop.f32.mrf.mxu0
    %v3640 = vadd.f32 0.0, %v3639
    %3641 = vdwg.mxu0
    %v3643 = vrot.slane %v3640, 6
    %v3645 = vadd.f32 %v3420, %v3643
    %v3646 = vxor.u32 %v3645, 2147483648
    %v3647 = vmul.f32 %v3646, 1.442695
    %v3648 = vpow.pop %v3647
    %v3649 = vadd.f32 %v3648, 1.0
    %v3650 = vrcp.pop %v3649
    %v3651 = vmul.f32 %v3649, %v3650
    %v3652 = vsub.f32 1.0, %v3651
    %v3653 = vmul.f32 %v3650, %v3652
    %v3654 = vadd.f32 %v3650, %v3653
    %vm3655 = vweird.f32 %v3649
    %vm3656 = vweird.f32 %v3650
    %vm3657 = vmor %vm3655, %vm3656
    %v3658 = vsel %vm3657, %v3650, %v3654
    %v3659 = vand.u32 2147483647, %v3649
    %vm3660 = vcmp.eq.f32.partialorder %v3659, 8.507059e+37
    %v3661 = vand.u32 %v3649, 2147483648
    %v3662 = vor.u32 1.1754944e-38, %v3661
    %v3663 = vsel %vm3660, %v3662, %v3658
    %v3664 = vmul.f32 1.0, %v3663
    %3665 = vmatpush.msra.mxu0 0.0
    %3666 = vmatpush.msra.mxu0 0.0
    %3667 = vmatpush.msra.mxu0 0.0
    %3668 = vmatpush.msra.mxu0 0.0
    %3669 = vmatpush.msra.mxu0 0.0
    %3670 = vmatpush.msra.mxu0 0.0
    %3671 = vmatpush.msra.mxu0 0.0
    %3672 = vmatpush.msra.mxu0 0.0
    %3673 = vmatpush.msra.mxu0 0.0
    %3674 = vmatpush.msra.mxu0 0.0
    %3675 = vmatpush.msra.mxu0 0.0
    %3676 = vmatpush.msra.mxu0 0.0
    %3677 = vmatpush.msra.mxu0 %v3433
    %3678 = vmatpush.msra.mxu0 %v3432
    %3679 = vmatpush.msra.mxu0 %v3431
    %3680 = vmatpush.msra.mxu0 %v3430
    %3681 = vmatmul.f32.gmra.mxu0 %v3620
    %v3682 = vpop.f32.mrf.mxu0
    %v3683 = vadd.f32 0.0, %v3682
    %3684 = vdwg.mxu0
    %v3686 = vrot.slane %v3683, 6
    %3687 = vrot.lane.b32.xlu0 %v3686, 32
    %v3688 = vpop.permute.xlu0 %3687
    %v3690 = vadd.f32 %v3420, %v3688
    %v3691 = vxor.u32 %v3690, 2147483648
    %v3692 = vmul.f32 %v3691, 1.442695
    %v3693 = vpow.pop %v3692
    %v3694 = vadd.f32 %v3693, 1.0
    %v3695 = vrcp.pop %v3694
    %v3696 = vmul.f32 %v3694, %v3695
    %v3697 = vsub.f32 1.0, %v3696
    %v3698 = vmul.f32 %v3695, %v3697
    %v3699 = vadd.f32 %v3695, %v3698
    %vm3700 = vweird.f32 %v3694
    %vm3701 = vweird.f32 %v3695
    %vm3702 = vmor %vm3700, %vm3701
    %v3703 = vsel %vm3702, %v3695, %v3699
    %v3704 = vand.u32 2147483647, %v3694
    %vm3705 = vcmp.eq.f32.partialorder %v3704, 8.507059e+37
    %v3706 = vand.u32 %v3694, 2147483648
    %v3707 = vor.u32 1.1754944e-38, %v3706
    %v3708 = vsel %vm3705, %v3707, %v3703
    %v3709 = vmul.f32 1.0, %v3708
    %3710 = vmatpush.msra.mxu0 0.0
    %3711 = vmatpush.msra.mxu0 0.0
    %3712 = vmatpush.msra.mxu0 0.0
    %3713 = vmatpush.msra.mxu0 0.0
    %3714 = vmatpush.msra.mxu0 0.0
    %3715 = vmatpush.msra.mxu0 0.0
    %3716 = vmatpush.msra.mxu0 0.0
    %3717 = vmatpush.msra.mxu0 0.0
    %3718 = vmatpush.msra.mxu0 0.0
    %3719 = vmatpush.msra.mxu0 0.0
    %3720 = vmatpush.msra.mxu0 0.0
    %3721 = vmatpush.msra.mxu0 0.0
    %3722 = vmatpush.msra.mxu0 %v3438
    %3723 = vmatpush.msra.mxu0 %v3437
    %3724 = vmatpush.msra.mxu0 %v3436
    %3725 = vmatpush.msra.mxu0 %v3435
    %3726 = vmatmul.f32.gmra.mxu0 %v3620
    %v3727 = vpop.f32.mrf.mxu0
    %v3728 = vadd.f32 0.0, %v3727
    %3729 = vdwg.mxu0
    %v3731 = vrot.slane %v3728, 6
    %3732 = vrot.lane.b32.xlu0 %v3731, 64
    %v3733 = vpop.permute.xlu0 %3732
    %v3735 = vadd.f32 %v3420, %v3733
    %v3736 = vtanh.pop %v3735
    %3737 = vmatpush.msra.mxu0 0.0
    %3738 = vmatpush.msra.mxu0 0.0
    %3739 = vmatpush.msra.mxu0 0.0
    %3740 = vmatpush.msra.mxu0 0.0
    %3741 = vmatpush.msra.mxu0 0.0
    %3742 = vmatpush.msra.mxu0 0.0
    %3743 = vmatpush.msra.mxu0 0.0
    %3744 = vmatpush.msra.mxu0 0.0
    %3745 = vmatpush.msra.mxu0 0.0
    %3746 = vmatpush.msra.mxu0 0.0
    %3747 = vmatpush.msra.mxu0 0.0
    %3748 = vmatpush.msra.mxu0 0.0
    %3749 = vmatpush.msra.mxu0 %v3443
    %3750 = vmatpush.msra.mxu0 %v3442
    %3751 = vmatpush.msra.mxu0 %v3441
    %3752 = vmatpush.msra.mxu0 %v3440
    %3753 = vmatmul.f32.gmra.mxu0 %v3620
    %v3754 = vpop.f32.mrf.mxu0
    %v3755 = vadd.f32 0.0, %v3754
    %3756 = vdwg.mxu0
    %v3758 = vrot.slane %v3755, 6
    %3759 = vrot.lane.b32.xlu0 %v3758, 96
    %v3760 = vpop.permute.xlu0 %3759
    %v3762 = vadd.f32 %v3420, %v3760
    %v3763 = vxor.u32 %v3762, 2147483648
    %v3764 = vmul.f32 %v3763, 1.442695
    %v3765 = vpow.pop %v3764
    %v3766 = vadd.f32 %v3765, 1.0
    %v3767 = vrcp.pop %v3766
    %v3768 = vmul.f32 %v3766, %v3767
    %v3769 = vsub.f32 1.0, %v3768
    %v3770 = vmul.f32 %v3767, %v3769
    %v3771 = vadd.f32 %v3767, %v3770
    %vm3772 = vweird.f32 %v3766
    %vm3773 = vweird.f32 %v3767
    %vm3774 = vmor %vm3772, %vm3773
    %v3775 = vsel %vm3774, %v3767, %v3771
    %v3776 = vand.u32 2147483647, %v3766
    %vm3777 = vcmp.eq.f32.partialorder %v3776, 8.507059e+37
    %v3778 = vand.u32 %v3766, 2147483648
    %v3779 = vor.u32 1.1754944e-38, %v3778
    %v3780 = vsel %vm3777, %v3779, %v3775
    %v3781 = vmul.f32 1.0, %v3780
    %v3783 = vrot.slane %v3608, 6
    %v3785 = vmul.f32 %v3709, %v3783
    %3787 = vrot.lane.b32.xlu0 %v3736, 64
    %v3788 = vpop.permute.xlu0 %3787
    %v3790 = vmul.f32 %v3664, %v3788
    %3792 = vrot.lane.b32.xlu0 %v3790, 32
    %v3793 = vpop.permute.xlu0 %3792
    %v3795 = vadd.f32 %v3785, %v3793
    %v3796 = vtanh.pop %v3795
    %3798 = vrot.lane.b32.xlu0 %v3796, 64
    %v3799 = vpop.permute.xlu0 %3798
    %v3801 = vmul.f32 %v3781, %v3799
    %3803 = vrot.lane.b32.xlu0 %v3801, 32
    %v3804 = vpop.permute.xlu0 %3803
    %3806 = vst.msk [vmem:[#allocation16] sm:$0xc] %vm699, %v3804
    %v3807 = vrot.slane %v3801, 2
    %3808 = vrot.lane.b32.xlu0 %v3807, 32
    %v3809 = vpop.permute.xlu0 %3808
    %v3810 = vsel %vm332, %v3809, 0
    %3812 = vmatpush.msra.mxu0 0.0
    %3813 = vmatpush.msra.mxu0 0.0
    %3814 = vmatpush.msra.mxu0 0.0
    %3815 = vmatpush.msra.mxu0 0.0
    %3816 = vmatpush.msra.mxu0 0.0
    %3817 = vmatpush.msra.mxu0 0.0
    %3818 = vmatpush.msra.mxu0 0.0
    %3819 = vmatpush.msra.mxu0 0.0
    %3820 = vmatpush.msra.mxu0 0.0
    %3821 = vmatpush.msra.mxu0 0.0
    %3822 = vmatpush.msra.mxu0 0.0
    %3823 = vmatpush.msra.mxu0 0.0
    %3824 = vmatpush.msra.mxu0 %v3428
    %3825 = vmatpush.msra.mxu0 %v3427
    %3826 = vmatpush.msra.mxu0 %v3426
    %3827 = vmatpush.msra.mxu0 %v3425
    %3828 = vmatmul.f32.gmra.mxu0 %v3810
    %v3829 = vpop.f32.mrf.mxu0
    %v3830 = vadd.f32 0.0, %v3829
    %3831 = vdwg.mxu0
    %v3833 = vrot.slane %v3830, 4
    %v3835 = vadd.f32 %v3420, %v3833
    %v3836 = vxor.u32 %v3835, 2147483648
    %v3837 = vmul.f32 %v3836, 1.442695
    %v3838 = vpow.pop %v3837
    %v3839 = vadd.f32 %v3838, 1.0
    %v3840 = vrcp.pop %v3839
    %v3841 = vmul.f32 %v3839, %v3840
    %v3842 = vsub.f32 1.0, %v3841
    %v3843 = vmul.f32 %v3840, %v3842
    %v3844 = vadd.f32 %v3840, %v3843
    %vm3845 = vweird.f32 %v3839
    %vm3846 = vweird.f32 %v3840
    %vm3847 = vmor %vm3845, %vm3846
    %v3848 = vsel %vm3847, %v3840, %v3844
    %v3849 = vand.u32 2147483647, %v3839
    %vm3850 = vcmp.eq.f32.partialorder %v3849, 8.507059e+37
    %v3851 = vand.u32 %v3839, 2147483648
    %v3852 = vor.u32 1.1754944e-38, %v3851
    %v3853 = vsel %vm3850, %v3852, %v3848
    %v3854 = vmul.f32 1.0, %v3853
    %3855 = vmatpush.msra.mxu0 0.0
    %3856 = vmatpush.msra.mxu0 0.0
    %3857 = vmatpush.msra.mxu0 0.0
    %3858 = vmatpush.msra.mxu0 0.0
    %3859 = vmatpush.msra.mxu0 0.0
    %3860 = vmatpush.msra.mxu0 0.0
    %3861 = vmatpush.msra.mxu0 0.0
    %3862 = vmatpush.msra.mxu0 0.0
    %3863 = vmatpush.msra.mxu0 0.0
    %3864 = vmatpush.msra.mxu0 0.0
    %3865 = vmatpush.msra.mxu0 0.0
    %3866 = vmatpush.msra.mxu0 0.0
    %3867 = vmatpush.msra.mxu0 %v3433
    %3868 = vmatpush.msra.mxu0 %v3432
    %3869 = vmatpush.msra.mxu0 %v3431
    %3870 = vmatpush.msra.mxu0 %v3430
    %3871 = vmatmul.f32.gmra.mxu0 %v3810
    %v3872 = vpop.f32.mrf.mxu0
    %v3873 = vadd.f32 0.0, %v3872
    %3874 = vdwg.mxu0
    %v3876 = vrot.slane %v3873, 4
    %3877 = vrot.lane.b32.xlu0 %v3876, 32
    %v3878 = vpop.permute.xlu0 %3877
    %v3880 = vadd.f32 %v3420, %v3878
    %v3881 = vxor.u32 %v3880, 2147483648
    %v3882 = vmul.f32 %v3881, 1.442695
    %v3883 = vpow.pop %v3882
    %v3884 = vadd.f32 %v3883, 1.0
    %v3885 = vrcp.pop %v3884
    %v3886 = vmul.f32 %v3884, %v3885
    %v3887 = vsub.f32 1.0, %v3886
    %v3888 = vmul.f32 %v3885, %v3887
    %v3889 = vadd.f32 %v3885, %v3888
    %vm3890 = vweird.f32 %v3884
    %vm3891 = vweird.f32 %v3885
    %vm3892 = vmor %vm3890, %vm3891
    %v3893 = vsel %vm3892, %v3885, %v3889
    %v3894 = vand.u32 2147483647, %v3884
    %vm3895 = vcmp.eq.f32.partialorder %v3894, 8.507059e+37
    %v3896 = vand.u32 %v3884, 2147483648
    %v3897 = vor.u32 1.1754944e-38, %v3896
    %v3898 = vsel %vm3895, %v3897, %v3893
    %v3899 = vmul.f32 1.0, %v3898
    %3900 = vmatpush.msra.mxu0 0.0
    %3901 = vmatpush.msra.mxu0 0.0
    %3902 = vmatpush.msra.mxu0 0.0
    %3903 = vmatpush.msra.mxu0 0.0
    %3904 = vmatpush.msra.mxu0 0.0
    %3905 = vmatpush.msra.mxu0 0.0
    %3906 = vmatpush.msra.mxu0 0.0
    %3907 = vmatpush.msra.mxu0 0.0
    %3908 = vmatpush.msra.mxu0 0.0
    %3909 = vmatpush.msra.mxu0 0.0
    %3910 = vmatpush.msra.mxu0 0.0
    %3911 = vmatpush.msra.mxu0 0.0
    %3912 = vmatpush.msra.mxu0 %v3438
    %3913 = vmatpush.msra.mxu0 %v3437
    %3914 = vmatpush.msra.mxu0 %v3436
    %3915 = vmatpush.msra.mxu0 %v3435
    %3916 = vmatmul.f32.gmra.mxu0 %v3810
    %v3917 = vpop.f32.mrf.mxu0
    %v3918 = vadd.f32 0.0, %v3917
    %3919 = vdwg.mxu0
    %v3921 = vrot.slane %v3918, 4
    %3922 = vrot.lane.b32.xlu0 %v3921, 64
    %v3923 = vpop.permute.xlu0 %3922
    %v3925 = vadd.f32 %v3420, %v3923
    %v3926 = vtanh.pop %v3925
    %3927 = vmatpush.msra.mxu0 0.0
    %3928 = vmatpush.msra.mxu0 0.0
    %3929 = vmatpush.msra.mxu0 0.0
    %3930 = vmatpush.msra.mxu0 0.0
    %3931 = vmatpush.msra.mxu0 0.0
    %3932 = vmatpush.msra.mxu0 0.0
    %3933 = vmatpush.msra.mxu0 0.0
    %3934 = vmatpush.msra.mxu0 0.0
    %3935 = vmatpush.msra.mxu0 0.0
    %3936 = vmatpush.msra.mxu0 0.0
    %3937 = vmatpush.msra.mxu0 0.0
    %3938 = vmatpush.msra.mxu0 0.0
    %3939 = vmatpush.msra.mxu0 %v3443
    %3940 = vmatpush.msra.mxu0 %v3442
    %3941 = vmatpush.msra.mxu0 %v3441
    %3942 = vmatpush.msra.mxu0 %v3440
    %3943 = vmatmul.f32.gmra.mxu0 %v3810
    %v3944 = vpop.f32.mrf.mxu0
    %v3945 = vadd.f32 0.0, %v3944
    %3946 = vdwg.mxu0
    %v3948 = vrot.slane %v3945, 4
    %3949 = vrot.lane.b32.xlu0 %v3948, 96
    %v3950 = vpop.permute.xlu0 %3949
    %v3952 = vadd.f32 %v3420, %v3950
    %v3953 = vxor.u32 %v3952, 2147483648
    %v3954 = vmul.f32 %v3953, 1.442695
    %v3955 = vpow.pop %v3954
    %v3956 = vadd.f32 %v3955, 1.0
    %v3957 = vrcp.pop %v3956
    %v3958 = vmul.f32 %v3956, %v3957
    %v3959 = vsub.f32 1.0, %v3958
    %v3960 = vmul.f32 %v3957, %v3959
    %v3961 = vadd.f32 %v3957, %v3960
    %vm3962 = vweird.f32 %v3956
    %vm3963 = vweird.f32 %v3957
    %vm3964 = vmor %vm3962, %vm3963
    %v3965 = vsel %vm3964, %v3957, %v3961
    %v3966 = vand.u32 2147483647, %v3956
    %vm3967 = vcmp.eq.f32.partialorder %v3966, 8.507059e+37
    %v3968 = vand.u32 %v3956, 2147483648
    %v3969 = vor.u32 1.1754944e-38, %v3968
    %v3970 = vsel %vm3967, %v3969, %v3965
    %v3971 = vmul.f32 1.0, %v3970
    %v3973 = vrot.slane %v3795, 6
    %v3975 = vmul.f32 %v3899, %v3973
    %3977 = vrot.lane.b32.xlu0 %v3926, 64
    %v3978 = vpop.permute.xlu0 %3977
    %v3980 = vmul.f32 %v3854, %v3978
    %3982 = vrot.lane.b32.xlu0 %v3980, 32
    %v3983 = vpop.permute.xlu0 %3982
    %v3985 = vadd.f32 %v3975, %v3983
    %v3986 = vtanh.pop %v3985
    %3988 = vrot.lane.b32.xlu0 %v3986, 64
    %v3989 = vpop.permute.xlu0 %3988
    %v3991 = vmul.f32 %v3971, %v3989
    %3993 = vrot.lane.b32.xlu0 %v3991, 32
    %v3994 = vpop.permute.xlu0 %3993
    %3996 = vst.msk [vmem:[#allocation16] sm:$0x30] %vm890, %v3994
    %v3997 = vrot.slane %v3991, 4
    %3998 = vrot.lane.b32.xlu0 %v3997, 32
    %v3999 = vpop.permute.xlu0 %3998
    %v4000 = vsel %vm332, %v3999, 0
    %4002 = vmatpush.msra.mxu0 0.0
    %4003 = vmatpush.msra.mxu0 0.0
    %4004 = vmatpush.msra.mxu0 0.0
    %4005 = vmatpush.msra.mxu0 0.0
    %4006 = vmatpush.msra.mxu0 0.0
    %4007 = vmatpush.msra.mxu0 0.0
    %4008 = vmatpush.msra.mxu0 0.0
    %4009 = vmatpush.msra.mxu0 0.0
    %4010 = vmatpush.msra.mxu0 0.0
    %4011 = vmatpush.msra.mxu0 0.0
    %4012 = vmatpush.msra.mxu0 0.0
    %4013 = vmatpush.msra.mxu0 0.0
    %4014 = vmatpush.msra.mxu0 %v3428
    %4015 = vmatpush.msra.mxu0 %v3427
    %4016 = vmatpush.msra.mxu0 %v3426
    %4017 = vmatpush.msra.mxu0 %v3425
    %4018 = vmatmul.f32.gmra.mxu0 %v4000
    %v4019 = vpop.f32.mrf.mxu0
    %v4020 = vadd.f32 0.0, %v4019
    %4021 = vdwg.mxu0
    %v4023 = vrot.slane %v4020, 2
    %v4025 = vadd.f32 %v3420, %v4023
    %v4026 = vxor.u32 %v4025, 2147483648
    %v4027 = vmul.f32 %v4026, 1.442695
    %v4028 = vpow.pop %v4027
    %v4029 = vadd.f32 %v4028, 1.0
    %v4030 = vrcp.pop %v4029
    %v4031 = vmul.f32 %v4029, %v4030
    %v4032 = vsub.f32 1.0, %v4031
    %v4033 = vmul.f32 %v4030, %v4032
    %v4034 = vadd.f32 %v4030, %v4033
    %vm4035 = vweird.f32 %v4029
    %vm4036 = vweird.f32 %v4030
    %vm4037 = vmor %vm4035, %vm4036
    %v4038 = vsel %vm4037, %v4030, %v4034
    %v4039 = vand.u32 2147483647, %v4029
    %vm4040 = vcmp.eq.f32.partialorder %v4039, 8.507059e+37
    %v4041 = vand.u32 %v4029, 2147483648
    %v4042 = vor.u32 1.1754944e-38, %v4041
    %v4043 = vsel %vm4040, %v4042, %v4038
    %v4044 = vmul.f32 1.0, %v4043
    %4045 = vmatpush.msra.mxu0 0.0
    %4046 = vmatpush.msra.mxu0 0.0
    %4047 = vmatpush.msra.mxu0 0.0
    %4048 = vmatpush.msra.mxu0 0.0
    %4049 = vmatpush.msra.mxu0 0.0
    %4050 = vmatpush.msra.mxu0 0.0
    %4051 = vmatpush.msra.mxu0 0.0
    %4052 = vmatpush.msra.mxu0 0.0
    %4053 = vmatpush.msra.mxu0 0.0
    %4054 = vmatpush.msra.mxu0 0.0
    %4055 = vmatpush.msra.mxu0 0.0
    %4056 = vmatpush.msra.mxu0 0.0
    %4057 = vmatpush.msra.mxu0 %v3433
    %4058 = vmatpush.msra.mxu0 %v3432
    %4059 = vmatpush.msra.mxu0 %v3431
    %4060 = vmatpush.msra.mxu0 %v3430
    %4061 = vmatmul.f32.gmra.mxu0 %v4000
    %v4062 = vpop.f32.mrf.mxu0
    %v4063 = vadd.f32 0.0, %v4062
    %4064 = vdwg.mxu0
    %v4066 = vrot.slane %v4063, 2
    %4067 = vrot.lane.b32.xlu0 %v4066, 32
    %v4068 = vpop.permute.xlu0 %4067
    %v4070 = vadd.f32 %v3420, %v4068
    %v4071 = vxor.u32 %v4070, 2147483648
    %v4072 = vmul.f32 %v4071, 1.442695
    %v4073 = vpow.pop %v4072
    %v4074 = vadd.f32 %v4073, 1.0
    %v4075 = vrcp.pop %v4074
    %v4076 = vmul.f32 %v4074, %v4075
    %v4077 = vsub.f32 1.0, %v4076
    %v4078 = vmul.f32 %v4075, %v4077
    %v4079 = vadd.f32 %v4075, %v4078
    %vm4080 = vweird.f32 %v4074
    %vm4081 = vweird.f32 %v4075
    %vm4082 = vmor %vm4080, %vm4081
    %v4083 = vsel %vm4082, %v4075, %v4079
    %v4084 = vand.u32 2147483647, %v4074
    %vm4085 = vcmp.eq.f32.partialorder %v4084, 8.507059e+37
    %v4086 = vand.u32 %v4074, 2147483648
    %v4087 = vor.u32 1.1754944e-38, %v4086
    %v4088 = vsel %vm4085, %v4087, %v4083
    %v4089 = vmul.f32 1.0, %v4088
    %4090 = vmatpush.msra.mxu0 0.0
    %4091 = vmatpush.msra.mxu0 0.0
    %4092 = vmatpush.msra.mxu0 0.0
    %4093 = vmatpush.msra.mxu0 0.0
    %4094 = vmatpush.msra.mxu0 0.0
    %4095 = vmatpush.msra.mxu0 0.0
    %4096 = vmatpush.msra.mxu0 0.0
    %4097 = vmatpush.msra.mxu0 0.0
    %4098 = vmatpush.msra.mxu0 0.0
    %4099 = vmatpush.msra.mxu0 0.0
    %4100 = vmatpush.msra.mxu0 0.0
    %4101 = vmatpush.msra.mxu0 0.0
    %4102 = vmatpush.msra.mxu0 %v3438
    %4103 = vmatpush.msra.mxu0 %v3437
    %4104 = vmatpush.msra.mxu0 %v3436
    %4105 = vmatpush.msra.mxu0 %v3435
    %4106 = vmatmul.f32.gmra.mxu0 %v4000
    %v4107 = vpop.f32.mrf.mxu0
    %v4108 = vadd.f32 0.0, %v4107
    %4109 = vdwg.mxu0
    %v4111 = vrot.slane %v4108, 2
    %4112 = vrot.lane.b32.xlu0 %v4111, 64
    %v4113 = vpop.permute.xlu0 %4112
    %v4115 = vadd.f32 %v3420, %v4113
    %v4116 = vtanh.pop %v4115
    %4117 = vmatpush.msra.mxu0 0.0
    %4118 = vmatpush.msra.mxu0 0.0
    %4119 = vmatpush.msra.mxu0 0.0
    %4120 = vmatpush.msra.mxu0 0.0
    %4121 = vmatpush.msra.mxu0 0.0
    %4122 = vmatpush.msra.mxu0 0.0
    %4123 = vmatpush.msra.mxu0 0.0
    %4124 = vmatpush.msra.mxu0 0.0
    %4125 = vmatpush.msra.mxu0 0.0
    %4126 = vmatpush.msra.mxu0 0.0
    %4127 = vmatpush.msra.mxu0 0.0
    %4128 = vmatpush.msra.mxu0 0.0
    %4129 = vmatpush.msra.mxu0 %v3443
    %4130 = vmatpush.msra.mxu0 %v3442
    %4131 = vmatpush.msra.mxu0 %v3441
    %4132 = vmatpush.msra.mxu0 %v3440
    %4133 = vmatmul.f32.gmra.mxu0 %v4000
    %v4134 = vpop.f32.mrf.mxu0
    %v4135 = vadd.f32 0.0, %v4134
    %4136 = vdwg.mxu0
    %v4138 = vrot.slane %v4135, 2
    %4139 = vrot.lane.b32.xlu0 %v4138, 96
    %v4140 = vpop.permute.xlu0 %4139
    %v4142 = vadd.f32 %v3420, %v4140
    %v4143 = vxor.u32 %v4142, 2147483648
    %v4144 = vmul.f32 %v4143, 1.442695
    %v4145 = vpow.pop %v4144
    %v4146 = vadd.f32 %v4145, 1.0
    %v4147 = vrcp.pop %v4146
    %v4148 = vmul.f32 %v4146, %v4147
    %v4149 = vsub.f32 1.0, %v4148
    %v4150 = vmul.f32 %v4147, %v4149
    %v4151 = vadd.f32 %v4147, %v4150
    %vm4152 = vweird.f32 %v4146
    %vm4153 = vweird.f32 %v4147
    %vm4154 = vmor %vm4152, %vm4153
    %v4155 = vsel %vm4154, %v4147, %v4151
    %v4156 = vand.u32 2147483647, %v4146
    %vm4157 = vcmp.eq.f32.partialorder %v4156, 8.507059e+37
    %v4158 = vand.u32 %v4146, 2147483648
    %v4159 = vor.u32 1.1754944e-38, %v4158
    %v4160 = vsel %vm4157, %v4159, %v4155
    %v4161 = vmul.f32 1.0, %v4160
    %v4163 = vrot.slane %v3985, 6
    %v4165 = vmul.f32 %v4089, %v4163
    %4167 = vrot.lane.b32.xlu0 %v4116, 64
    %v4168 = vpop.permute.xlu0 %4167
    %v4170 = vmul.f32 %v4044, %v4168
    %4172 = vrot.lane.b32.xlu0 %v4170, 32
    %v4173 = vpop.permute.xlu0 %4172
    %v4175 = vadd.f32 %v4165, %v4173
    %v4176 = vtanh.pop %v4175
    %4178 = vrot.lane.b32.xlu0 %v4176, 64
    %v4179 = vpop.permute.xlu0 %4178
    %v4181 = vmul.f32 %v4161, %v4179
    %4183 = vrot.lane.b32.xlu0 %v4181, 32
    %v4184 = vpop.permute.xlu0 %4183
    %4186 = vst.msk [vmem:[#allocation16] sm:$0xc0] %vm1081, %v4184
    %v4187 = vrot.slane %v4181, 6
    %4188 = vrot.lane.b32.xlu0 %v4187, 32
    %v4189 = vpop.permute.xlu0 %4188
    %v4190 = vsel %vm332, %v4189, 0
    %4192 = vmatpush.msra.mxu0 0.0
    %4193 = vmatpush.msra.mxu0 0.0
    %4194 = vmatpush.msra.mxu0 0.0
    %4195 = vmatpush.msra.mxu0 0.0
    %4196 = vmatpush.msra.mxu0 0.0
    %4197 = vmatpush.msra.mxu0 0.0
    %4198 = vmatpush.msra.mxu0 0.0
    %4199 = vmatpush.msra.mxu0 0.0
    %4200 = vmatpush.msra.mxu0 0.0
    %4201 = vmatpush.msra.mxu0 0.0
    %4202 = vmatpush.msra.mxu0 0.0
    %4203 = vmatpush.msra.mxu0 0.0
    %4204 = vmatpush.msra.mxu0 %v3428
    %4205 = vmatpush.msra.mxu0 %v3427
    %4206 = vmatpush.msra.mxu0 %v3426
    %4207 = vmatpush.msra.mxu0 %v3425
    %4208 = vmatmul.f32.gmra.mxu0 %v4190
    %v4209 = vpop.f32.mrf.mxu0
    %v4210 = vadd.f32 0.0, %v4209
    %4211 = vdwg.mxu0
    %v4212 = vadd.f32 %v3423, %v4210
    %v4213 = vxor.u32 %v4212, 2147483648
    %v4214 = vmul.f32 %v4213, 1.442695
    %v4215 = vpow.pop %v4214
    %v4216 = vadd.f32 %v4215, 1.0
    %v4217 = vrcp.pop %v4216
    %v4218 = vmul.f32 %v4216, %v4217
    %v4219 = vsub.f32 1.0, %v4218
    %v4220 = vmul.f32 %v4217, %v4219
    %v4221 = vadd.f32 %v4217, %v4220
    %vm4222 = vweird.f32 %v4216
    %vm4223 = vweird.f32 %v4217
    %vm4224 = vmor %vm4222, %vm4223
    %v4225 = vsel %vm4224, %v4217, %v4221
    %v4226 = vand.u32 2147483647, %v4216
    %vm4227 = vcmp.eq.f32.partialorder %v4226, 8.507059e+37
    %v4228 = vand.u32 %v4216, 2147483648
    %v4229 = vor.u32 1.1754944e-38, %v4228
    %v4230 = vsel %vm4227, %v4229, %v4225
    %v4231 = vmul.f32 1.0, %v4230
    %4232 = vmatpush.msra.mxu0 0.0
    %4233 = vmatpush.msra.mxu0 0.0
    %4234 = vmatpush.msra.mxu0 0.0
    %4235 = vmatpush.msra.mxu0 0.0
    %4236 = vmatpush.msra.mxu0 0.0
    %4237 = vmatpush.msra.mxu0 0.0
    %4238 = vmatpush.msra.mxu0 0.0
    %4239 = vmatpush.msra.mxu0 0.0
    %4240 = vmatpush.msra.mxu0 0.0
    %4241 = vmatpush.msra.mxu0 0.0
    %4242 = vmatpush.msra.mxu0 0.0
    %4243 = vmatpush.msra.mxu0 0.0
    %4244 = vmatpush.msra.mxu0 %v3433
    %4245 = vmatpush.msra.mxu0 %v3432
    %4246 = vmatpush.msra.mxu0 %v3431
    %4247 = vmatpush.msra.mxu0 %v3430
    %4248 = vmatmul.f32.gmra.mxu0 %v4190
    %v4249 = vpop.f32.mrf.mxu0
    %v4250 = vadd.f32 0.0, %v4249
    %4251 = vdwg.mxu0
    %4253 = vrot.lane.b32.xlu0 %v4250, 32
    %v4254 = vpop.permute.xlu0 %4253
    %v4256 = vadd.f32 %v3423, %v4254
    %v4257 = vxor.u32 %v4256, 2147483648
    %v4258 = vmul.f32 %v4257, 1.442695
    %v4259 = vpow.pop %v4258
    %v4260 = vadd.f32 %v4259, 1.0
    %v4261 = vrcp.pop %v4260
    %v4262 = vmul.f32 %v4260, %v4261
    %v4263 = vsub.f32 1.0, %v4262
    %v4264 = vmul.f32 %v4261, %v4263
    %v4265 = vadd.f32 %v4261, %v4264
    %vm4266 = vweird.f32 %v4260
    %vm4267 = vweird.f32 %v4261
    %vm4268 = vmor %vm4266, %vm4267
    %v4269 = vsel %vm4268, %v4261, %v4265
    %v4270 = vand.u32 2147483647, %v4260
    %vm4271 = vcmp.eq.f32.partialorder %v4270, 8.507059e+37
    %v4272 = vand.u32 %v4260, 2147483648
    %v4273 = vor.u32 1.1754944e-38, %v4272
    %v4274 = vsel %vm4271, %v4273, %v4269
    %v4275 = vmul.f32 1.0, %v4274
    %4276 = vmatpush.msra.mxu0 0.0
    %4277 = vmatpush.msra.mxu0 0.0
    %4278 = vmatpush.msra.mxu0 0.0
    %4279 = vmatpush.msra.mxu0 0.0
    %4280 = vmatpush.msra.mxu0 0.0
    %4281 = vmatpush.msra.mxu0 0.0
    %4282 = vmatpush.msra.mxu0 0.0
    %4283 = vmatpush.msra.mxu0 0.0
    %4284 = vmatpush.msra.mxu0 0.0
    %4285 = vmatpush.msra.mxu0 0.0
    %4286 = vmatpush.msra.mxu0 0.0
    %4287 = vmatpush.msra.mxu0 0.0
    %4288 = vmatpush.msra.mxu0 %v3438
    %4289 = vmatpush.msra.mxu0 %v3437
    %4290 = vmatpush.msra.mxu0 %v3436
    %4291 = vmatpush.msra.mxu0 %v3435
    %4292 = vmatmul.f32.gmra.mxu0 %v4190
    %v4293 = vpop.f32.mrf.mxu0
    %v4294 = vadd.f32 0.0, %v4293
    %4295 = vdwg.mxu0
    %4297 = vrot.lane.b32.xlu0 %v4294, 64
    %v4298 = vpop.permute.xlu0 %4297
    %v4300 = vadd.f32 %v3423, %v4298
    %v4301 = vtanh.pop %v4300
    %4302 = vmatpush.msra.mxu0 0.0
    %4303 = vmatpush.msra.mxu0 0.0
    %4304 = vmatpush.msra.mxu0 0.0
    %4305 = vmatpush.msra.mxu0 0.0
    %4306 = vmatpush.msra.mxu0 0.0
    %4307 = vmatpush.msra.mxu0 0.0
    %4308 = vmatpush.msra.mxu0 0.0
    %4309 = vmatpush.msra.mxu0 0.0
    %4310 = vmatpush.msra.mxu0 0.0
    %4311 = vmatpush.msra.mxu0 0.0
    %4312 = vmatpush.msra.mxu0 0.0
    %4313 = vmatpush.msra.mxu0 0.0
    %4314 = vmatpush.msra.mxu0 %v3443
    %4315 = vmatpush.msra.mxu0 %v3442
    %4316 = vmatpush.msra.mxu0 %v3441
    %4317 = vmatpush.msra.mxu0 %v3440
    %4318 = vmatmul.f32.gmra.mxu0 %v4190
    %v4319 = vpop.f32.mrf.mxu0
    %v4320 = vadd.f32 0.0, %v4319
    %4321 = vdwg.mxu0
    %4323 = vrot.lane.b32.xlu0 %v4320, 96
    %v4324 = vpop.permute.xlu0 %4323
    %v4326 = vadd.f32 %v3423, %v4324
    %v4327 = vxor.u32 %v4326, 2147483648
    %v4328 = vmul.f32 %v4327, 1.442695
    %v4329 = vpow.pop %v4328
    %v4330 = vadd.f32 %v4329, 1.0
    %v4331 = vrcp.pop %v4330
    %v4332 = vmul.f32 %v4330, %v4331
    %v4333 = vsub.f32 1.0, %v4332
    %v4334 = vmul.f32 %v4331, %v4333
    %v4335 = vadd.f32 %v4331, %v4334
    %vm4336 = vweird.f32 %v4330
    %vm4337 = vweird.f32 %v4331
    %vm4338 = vmor %vm4336, %vm4337
    %v4339 = vsel %vm4338, %v4331, %v4335
    %v4340 = vand.u32 2147483647, %v4330
    %vm4341 = vcmp.eq.f32.partialorder %v4340, 8.507059e+37
    %v4342 = vand.u32 %v4330, 2147483648
    %v4343 = vor.u32 1.1754944e-38, %v4342
    %v4344 = vsel %vm4341, %v4343, %v4339
    %v4345 = vmul.f32 1.0, %v4344
    %v4347 = vrot.slane %v4175, 6
    %v4349 = vmul.f32 %v4275, %v4347
    %4351 = vrot.lane.b32.xlu0 %v4301, 64
    %v4352 = vpop.permute.xlu0 %4351
    %v4354 = vmul.f32 %v4231, %v4352
    %4356 = vrot.lane.b32.xlu0 %v4354, 32
    %v4357 = vpop.permute.xlu0 %4356
    %v4359 = vadd.f32 %v4349, %v4357
    %v4360 = vtanh.pop %v4359
    %4362 = vrot.lane.b32.xlu0 %v4360, 64
    %v4363 = vpop.permute.xlu0 %4362
    %v4365 = vmul.f32 %v4345, %v4363
    %4367 = vrot.lane.b32.xlu0 %v4365, 32
    %v4368 = vpop.permute.xlu0 %4367
    %4370 = vst.msk [vmem:[#allocation16 + $0x8] sm:$0x3] %vm511, %v4368
    %v4371 = vsel %vm332, %v4368, 0
    %4373 = vmatpush.msra.mxu0 0.0
    %4374 = vmatpush.msra.mxu0 0.0
    %4375 = vmatpush.msra.mxu0 0.0
    %4376 = vmatpush.msra.mxu0 0.0
    %4377 = vmatpush.msra.mxu0 0.0
    %4378 = vmatpush.msra.mxu0 0.0
    %4379 = vmatpush.msra.mxu0 0.0
    %4380 = vmatpush.msra.mxu0 0.0
    %4381 = vmatpush.msra.mxu0 0.0
    %4382 = vmatpush.msra.mxu0 0.0
    %4383 = vmatpush.msra.mxu0 0.0
    %4384 = vmatpush.msra.mxu0 0.0
    %4385 = vmatpush.msra.mxu0 %v3428
    %4386 = vmatpush.msra.mxu0 %v3427
    %4387 = vmatpush.msra.mxu0 %v3426
    %4388 = vmatpush.msra.mxu0 %v3425
    %4389 = vmatmul.f32.gmra.mxu0 %v4371
    %v4390 = vpop.f32.mrf.mxu0
    %v4391 = vadd.f32 0.0, %v4390
    %4392 = vdwg.mxu0
    %v4394 = vrot.slane %v4391, 6
    %v4396 = vadd.f32 %v3423, %v4394
    %v4397 = vxor.u32 %v4396, 2147483648
    %v4398 = vmul.f32 %v4397, 1.442695
    %v4399 = vpow.pop %v4398
    %v4400 = vadd.f32 %v4399, 1.0
    %v4401 = vrcp.pop %v4400
    %v4402 = vmul.f32 %v4400, %v4401
    %v4403 = vsub.f32 1.0, %v4402
    %v4404 = vmul.f32 %v4401, %v4403
    %v4405 = vadd.f32 %v4401, %v4404
    %vm4406 = vweird.f32 %v4400
    %vm4407 = vweird.f32 %v4401
    %vm4408 = vmor %vm4406, %vm4407
    %v4409 = vsel %vm4408, %v4401, %v4405
    %v4410 = vand.u32 2147483647, %v4400
    %vm4411 = vcmp.eq.f32.partialorder %v4410, 8.507059e+37
    %v4412 = vand.u32 %v4400, 2147483648
    %v4413 = vor.u32 1.1754944e-38, %v4412
    %v4414 = vsel %vm4411, %v4413, %v4409
    %v4415 = vmul.f32 1.0, %v4414
    %4416 = vmatpush.msra.mxu0 0.0
    %4417 = vmatpush.msra.mxu0 0.0
    %4418 = vmatpush.msra.mxu0 0.0
    %4419 = vmatpush.msra.mxu0 0.0
    %4420 = vmatpush.msra.mxu0 0.0
    %4421 = vmatpush.msra.mxu0 0.0
    %4422 = vmatpush.msra.mxu0 0.0
    %4423 = vmatpush.msra.mxu0 0.0
    %4424 = vmatpush.msra.mxu0 0.0
    %4425 = vmatpush.msra.mxu0 0.0
    %4426 = vmatpush.msra.mxu0 0.0
    %4427 = vmatpush.msra.mxu0 0.0
    %4428 = vmatpush.msra.mxu0 %v3433
    %4429 = vmatpush.msra.mxu0 %v3432
    %4430 = vmatpush.msra.mxu0 %v3431
    %4431 = vmatpush.msra.mxu0 %v3430
    %4432 = vmatmul.f32.gmra.mxu0 %v4371
    %v4433 = vpop.f32.mrf.mxu0
    %v4434 = vadd.f32 0.0, %v4433
    %4435 = vdwg.mxu0
    %v4437 = vrot.slane %v4434, 6
    %4438 = vrot.lane.b32.xlu0 %v4437, 32
    %v4439 = vpop.permute.xlu0 %4438
    %v4441 = vadd.f32 %v3423, %v4439
    %v4442 = vxor.u32 %v4441, 2147483648
    %v4443 = vmul.f32 %v4442, 1.442695
    %v4444 = vpow.pop %v4443
    %v4445 = vadd.f32 %v4444, 1.0
    %v4446 = vrcp.pop %v4445
    %v4447 = vmul.f32 %v4445, %v4446
    %v4448 = vsub.f32 1.0, %v4447
    %v4449 = vmul.f32 %v4446, %v4448
    %v4450 = vadd.f32 %v4446, %v4449
    %vm4451 = vweird.f32 %v4445
    %vm4452 = vweird.f32 %v4446
    %vm4453 = vmor %vm4451, %vm4452
    %v4454 = vsel %vm4453, %v4446, %v4450
    %v4455 = vand.u32 2147483647, %v4445
    %vm4456 = vcmp.eq.f32.partialorder %v4455, 8.507059e+37
    %v4457 = vand.u32 %v4445, 2147483648
    %v4458 = vor.u32 1.1754944e-38, %v4457
    %v4459 = vsel %vm4456, %v4458, %v4454
    %v4460 = vmul.f32 1.0, %v4459
    %4461 = vmatpush.msra.mxu0 0.0
    %4462 = vmatpush.msra.mxu0 0.0
    %4463 = vmatpush.msra.mxu0 0.0
    %4464 = vmatpush.msra.mxu0 0.0
    %4465 = vmatpush.msra.mxu0 0.0
    %4466 = vmatpush.msra.mxu0 0.0
    %4467 = vmatpush.msra.mxu0 0.0
    %4468 = vmatpush.msra.mxu0 0.0
    %4469 = vmatpush.msra.mxu0 0.0
    %4470 = vmatpush.msra.mxu0 0.0
    %4471 = vmatpush.msra.mxu0 0.0
    %4472 = vmatpush.msra.mxu0 0.0
    %4473 = vmatpush.msra.mxu0 %v3438
    %4474 = vmatpush.msra.mxu0 %v3437
    %4475 = vmatpush.msra.mxu0 %v3436
    %4476 = vmatpush.msra.mxu0 %v3435
    %4477 = vmatmul.f32.gmra.mxu0 %v4371
    %v4478 = vpop.f32.mrf.mxu0
    %v4479 = vadd.f32 0.0, %v4478
    %4480 = vdwg.mxu0
    %v4482 = vrot.slane %v4479, 6
    %4483 = vrot.lane.b32.xlu0 %v4482, 64
    %v4484 = vpop.permute.xlu0 %4483
    %v4486 = vadd.f32 %v3423, %v4484
    %v4487 = vtanh.pop %v4486
    %4488 = vmatpush.msra.mxu0 0.0
    %4489 = vmatpush.msra.mxu0 0.0
    %4490 = vmatpush.msra.mxu0 0.0
    %4491 = vmatpush.msra.mxu0 0.0
    %4492 = vmatpush.msra.mxu0 0.0
    %4493 = vmatpush.msra.mxu0 0.0
    %4494 = vmatpush.msra.mxu0 0.0
    %4495 = vmatpush.msra.mxu0 0.0
    %4496 = vmatpush.msra.mxu0 0.0
    %4497 = vmatpush.msra.mxu0 0.0
    %4498 = vmatpush.msra.mxu0 0.0
    %4499 = vmatpush.msra.mxu0 0.0
    %4500 = vmatpush.msra.mxu0 %v3443
    %4501 = vmatpush.msra.mxu0 %v3442
    %4502 = vmatpush.msra.mxu0 %v3441
    %4503 = vmatpush.msra.mxu0 %v3440
    %4504 = vmatmul.f32.gmra.mxu0 %v4371
    %v4505 = vpop.f32.mrf.mxu0
    %v4506 = vadd.f32 0.0, %v4505
    %4507 = vdwg.mxu0
    %v4509 = vrot.slane %v4506, 6
    %4510 = vrot.lane.b32.xlu0 %v4509, 96
    %v4511 = vpop.permute.xlu0 %4510
    %v4513 = vadd.f32 %v3423, %v4511
    %v4514 = vxor.u32 %v4513, 2147483648
    %v4515 = vmul.f32 %v4514, 1.442695
    %v4516 = vpow.pop %v4515
    %v4517 = vadd.f32 %v4516, 1.0
    %v4518 = vrcp.pop %v4517
    %v4519 = vmul.f32 %v4517, %v4518
    %v4520 = vsub.f32 1.0, %v4519
    %v4521 = vmul.f32 %v4518, %v4520
    %v4522 = vadd.f32 %v4518, %v4521
    %vm4523 = vweird.f32 %v4517
    %vm4524 = vweird.f32 %v4518
    %vm4525 = vmor %vm4523, %vm4524
    %v4526 = vsel %vm4525, %v4518, %v4522
    %v4527 = vand.u32 2147483647, %v4517
    %vm4528 = vcmp.eq.f32.partialorder %v4527, 8.507059e+37
    %v4529 = vand.u32 %v4517, 2147483648
    %v4530 = vor.u32 1.1754944e-38, %v4529
    %v4531 = vsel %vm4528, %v4530, %v4526
    %v4532 = vmul.f32 1.0, %v4531
    %v4534 = vrot.slane %v4359, 6
    %v4536 = vmul.f32 %v4460, %v4534
    %4538 = vrot.lane.b32.xlu0 %v4487, 64
    %v4539 = vpop.permute.xlu0 %4538
    %v4541 = vmul.f32 %v4415, %v4539
    %4543 = vrot.lane.b32.xlu0 %v4541, 32
    %v4544 = vpop.permute.xlu0 %4543
    %v4546 = vadd.f32 %v4536, %v4544
    %v4547 = vtanh.pop %v4546
    %4549 = vrot.lane.b32.xlu0 %v4547, 64
    %v4550 = vpop.permute.xlu0 %4549
    %v4552 = vmul.f32 %v4532, %v4550
    %4554 = vrot.lane.b32.xlu0 %v4552, 32
    %v4555 = vpop.permute.xlu0 %4554
    %4557 = vst.msk [vmem:[#allocation16 + $0x8] sm:$0xc] %vm699, %v4555
    %v4558 = vrot.slane %v4552, 2
    %4559 = vrot.lane.b32.xlu0 %v4558, 32
    %v4560 = vpop.permute.xlu0 %4559
    %v4561 = vsel %vm332, %v4560, 0
    %4563 = vmatpush.msra.mxu0 0.0
    %4564 = vmatpush.msra.mxu0 0.0
    %4565 = vmatpush.msra.mxu0 0.0
    %4566 = vmatpush.msra.mxu0 0.0
    %4567 = vmatpush.msra.mxu0 0.0
    %4568 = vmatpush.msra.mxu0 0.0
    %4569 = vmatpush.msra.mxu0 0.0
    %4570 = vmatpush.msra.mxu0 0.0
    %4571 = vmatpush.msra.mxu0 0.0
    %4572 = vmatpush.msra.mxu0 0.0
    %4573 = vmatpush.msra.mxu0 0.0
    %4574 = vmatpush.msra.mxu0 0.0
    %4575 = vmatpush.msra.mxu0 %v3428
    %4576 = vmatpush.msra.mxu0 %v3427
    %4577 = vmatpush.msra.mxu0 %v3426
    %4578 = vmatpush.msra.mxu0 %v3425
    %4579 = vmatmul.f32.gmra.mxu0 %v4561
    %v4580 = vpop.f32.mrf.mxu0
    %v4581 = vadd.f32 0.0, %v4580
    %4582 = vdwg.mxu0
    %v4584 = vrot.slane %v4581, 4
    %v4586 = vadd.f32 %v3423, %v4584
    %v4587 = vxor.u32 %v4586, 2147483648
    %v4588 = vmul.f32 %v4587, 1.442695
    %v4589 = vpow.pop %v4588
    %v4590 = vadd.f32 %v4589, 1.0
    %v4591 = vrcp.pop %v4590
    %v4592 = vmul.f32 %v4590, %v4591
    %v4593 = vsub.f32 1.0, %v4592
    %v4594 = vmul.f32 %v4591, %v4593
    %v4595 = vadd.f32 %v4591, %v4594
    %vm4596 = vweird.f32 %v4590
    %vm4597 = vweird.f32 %v4591
    %vm4598 = vmor %vm4596, %vm4597
    %v4599 = vsel %vm4598, %v4591, %v4595
    %v4600 = vand.u32 2147483647, %v4590
    %vm4601 = vcmp.eq.f32.partialorder %v4600, 8.507059e+37
    %v4602 = vand.u32 %v4590, 2147483648
    %v4603 = vor.u32 1.1754944e-38, %v4602
    %v4604 = vsel %vm4601, %v4603, %v4599
    %v4605 = vmul.f32 1.0, %v4604
    %4606 = vmatpush.msra.mxu0 0.0
    %4607 = vmatpush.msra.mxu0 0.0
    %4608 = vmatpush.msra.mxu0 0.0
    %4609 = vmatpush.msra.mxu0 0.0
    %4610 = vmatpush.msra.mxu0 0.0
    %4611 = vmatpush.msra.mxu0 0.0
    %4612 = vmatpush.msra.mxu0 0.0
    %4613 = vmatpush.msra.mxu0 0.0
    %4614 = vmatpush.msra.mxu0 0.0
    %4615 = vmatpush.msra.mxu0 0.0
    %4616 = vmatpush.msra.mxu0 0.0
    %4617 = vmatpush.msra.mxu0 0.0
    %4618 = vmatpush.msra.mxu0 %v3433
    %4619 = vmatpush.msra.mxu0 %v3432
    %4620 = vmatpush.msra.mxu0 %v3431
    %4621 = vmatpush.msra.mxu0 %v3430
    %4622 = vmatmul.f32.gmra.mxu0 %v4561
    %v4623 = vpop.f32.mrf.mxu0
    %v4624 = vadd.f32 0.0, %v4623
    %4625 = vdwg.mxu0
    %v4627 = vrot.slane %v4624, 4
    %4628 = vrot.lane.b32.xlu0 %v4627, 32
    %v4629 = vpop.permute.xlu0 %4628
    %v4631 = vadd.f32 %v3423, %v4629
    %v4632 = vxor.u32 %v4631, 2147483648
    %v4633 = vmul.f32 %v4632, 1.442695
    %v4634 = vpow.pop %v4633
    %v4635 = vadd.f32 %v4634, 1.0
    %v4636 = vrcp.pop %v4635
    %v4637 = vmul.f32 %v4635, %v4636
    %v4638 = vsub.f32 1.0, %v4637
    %v4639 = vmul.f32 %v4636, %v4638
    %v4640 = vadd.f32 %v4636, %v4639
    %vm4641 = vweird.f32 %v4635
    %vm4642 = vweird.f32 %v4636
    %vm4643 = vmor %vm4641, %vm4642
    %v4644 = vsel %vm4643, %v4636, %v4640
    %v4645 = vand.u32 2147483647, %v4635
    %vm4646 = vcmp.eq.f32.partialorder %v4645, 8.507059e+37
    %v4647 = vand.u32 %v4635, 2147483648
    %v4648 = vor.u32 1.1754944e-38, %v4647
    %v4649 = vsel %vm4646, %v4648, %v4644
    %v4650 = vmul.f32 1.0, %v4649
    %4651 = vmatpush.msra.mxu0 0.0
    %4652 = vmatpush.msra.mxu0 0.0
    %4653 = vmatpush.msra.mxu0 0.0
    %4654 = vmatpush.msra.mxu0 0.0
    %4655 = vmatpush.msra.mxu0 0.0
    %4656 = vmatpush.msra.mxu0 0.0
    %4657 = vmatpush.msra.mxu0 0.0
    %4658 = vmatpush.msra.mxu0 0.0
    %4659 = vmatpush.msra.mxu0 0.0
    %4660 = vmatpush.msra.mxu0 0.0
    %4661 = vmatpush.msra.mxu0 0.0
    %4662 = vmatpush.msra.mxu0 0.0
    %4663 = vmatpush.msra.mxu0 %v3438
    %4664 = vmatpush.msra.mxu0 %v3437
    %4665 = vmatpush.msra.mxu0 %v3436
    %4666 = vmatpush.msra.mxu0 %v3435
    %4667 = vmatmul.f32.gmra.mxu0 %v4561
    %v4668 = vpop.f32.mrf.mxu0
    %v4669 = vadd.f32 0.0, %v4668
    %4670 = vdwg.mxu0
    %v4672 = vrot.slane %v4669, 4
    %4673 = vrot.lane.b32.xlu0 %v4672, 64
    %v4674 = vpop.permute.xlu0 %4673
    %v4676 = vadd.f32 %v3423, %v4674
    %v4677 = vtanh.pop %v4676
    %4678 = vmatpush.msra.mxu0 0.0
    %4679 = vmatpush.msra.mxu0 0.0
    %4680 = vmatpush.msra.mxu0 0.0
    %4681 = vmatpush.msra.mxu0 0.0
    %4682 = vmatpush.msra.mxu0 0.0
    %4683 = vmatpush.msra.mxu0 0.0
    %4684 = vmatpush.msra.mxu0 0.0
    %4685 = vmatpush.msra.mxu0 0.0
    %4686 = vmatpush.msra.mxu0 0.0
    %4687 = vmatpush.msra.mxu0 0.0
    %4688 = vmatpush.msra.mxu0 0.0
    %4689 = vmatpush.msra.mxu0 0.0
    %4690 = vmatpush.msra.mxu0 %v3443
    %4691 = vmatpush.msra.mxu0 %v3442
    %4692 = vmatpush.msra.mxu0 %v3441
    %4693 = vmatpush.msra.mxu0 %v3440
    %4694 = vmatmul.f32.gmra.mxu0 %v4561
    %v4695 = vpop.f32.mrf.mxu0
    %v4696 = vadd.f32 0.0, %v4695
    %4697 = vdwg.mxu0
    %v4699 = vrot.slane %v4696, 4
    %4700 = vrot.lane.b32.xlu0 %v4699, 96
    %v4701 = vpop.permute.xlu0 %4700
    %v4703 = vadd.f32 %v3423, %v4701
    %v4704 = vxor.u32 %v4703, 2147483648
    %v4705 = vmul.f32 %v4704, 1.442695
    %v4706 = vpow.pop %v4705
    %v4707 = vadd.f32 %v4706, 1.0
    %v4708 = vrcp.pop %v4707
    %v4709 = vmul.f32 %v4707, %v4708
    %v4710 = vsub.f32 1.0, %v4709
    %v4711 = vmul.f32 %v4708, %v4710
    %v4712 = vadd.f32 %v4708, %v4711
    %vm4713 = vweird.f32 %v4707
    %vm4714 = vweird.f32 %v4708
    %vm4715 = vmor %vm4713, %vm4714
    %v4716 = vsel %vm4715, %v4708, %v4712
    %v4717 = vand.u32 2147483647, %v4707
    %vm4718 = vcmp.eq.f32.partialorder %v4717, 8.507059e+37
    %v4719 = vand.u32 %v4707, 2147483648
    %v4720 = vor.u32 1.1754944e-38, %v4719
    %v4721 = vsel %vm4718, %v4720, %v4716
    %v4722 = vmul.f32 1.0, %v4721
    %v4724 = vrot.slane %v4546, 6
    %v4726 = vmul.f32 %v4650, %v4724
    %4728 = vrot.lane.b32.xlu0 %v4677, 64
    %v4729 = vpop.permute.xlu0 %4728
    %v4731 = vmul.f32 %v4605, %v4729
    %4733 = vrot.lane.b32.xlu0 %v4731, 32
    %v4734 = vpop.permute.xlu0 %4733
    %v4736 = vadd.f32 %v4726, %v4734
    %v4737 = vtanh.pop %v4736
    %4739 = vrot.lane.b32.xlu0 %v4737, 64
    %v4740 = vpop.permute.xlu0 %4739
    %v4742 = vmul.f32 %v4722, %v4740
    %4744 = vrot.lane.b32.xlu0 %v4742, 32
    %v4745 = vpop.permute.xlu0 %4744
    %4747 = vst.msk [vmem:[#allocation16 + $0x8] sm:$0x30] %vm890, %v4745
    %v4748 = vrot.slane %v4742, 4
    %4749 = vrot.lane.b32.xlu0 %v4748, 32
    %v4750 = vpop.permute.xlu0 %4749
    %v4751 = vsel %vm332, %v4750, 0
    %4753 = vmatpush.msra.mxu0 0.0
    %4754 = vmatpush.msra.mxu0 0.0
    %4755 = vmatpush.msra.mxu0 0.0
    %4756 = vmatpush.msra.mxu0 0.0
    %4757 = vmatpush.msra.mxu0 0.0
    %4758 = vmatpush.msra.mxu0 0.0
    %4759 = vmatpush.msra.mxu0 0.0
    %4760 = vmatpush.msra.mxu0 0.0
    %4761 = vmatpush.msra.mxu0 0.0
    %4762 = vmatpush.msra.mxu0 0.0
    %4763 = vmatpush.msra.mxu0 0.0
    %4764 = vmatpush.msra.mxu0 0.0
    %4765 = vmatpush.msra.mxu0 %v3428
    %4766 = vmatpush.msra.mxu0 %v3427
    %4767 = vmatpush.msra.mxu0 %v3426
    %4768 = vmatpush.msra.mxu0 %v3425
    %4769 = vmatmul.f32.gmra.mxu0 %v4751
    %v4770 = vpop.f32.mrf.mxu0
    %v4771 = vadd.f32 0.0, %v4770
    %4772 = vdwg.mxu0
    %v4774 = vrot.slane %v4771, 2
    %v4776 = vadd.f32 %v3423, %v4774
    %v4777 = vxor.u32 %v4776, 2147483648
    %v4778 = vmul.f32 %v4777, 1.442695
    %v4779 = vpow.pop %v4778
    %v4780 = vadd.f32 %v4779, 1.0
    %v4781 = vrcp.pop %v4780
    %v4782 = vmul.f32 %v4780, %v4781
    %v4783 = vsub.f32 1.0, %v4782
    %v4784 = vmul.f32 %v4781, %v4783
    %v4785 = vadd.f32 %v4781, %v4784
    %vm4786 = vweird.f32 %v4780
    %vm4787 = vweird.f32 %v4781
    %vm4788 = vmor %vm4786, %vm4787
    %v4789 = vsel %vm4788, %v4781, %v4785
    %v4790 = vand.u32 2147483647, %v4780
    %vm4791 = vcmp.eq.f32.partialorder %v4790, 8.507059e+37
    %v4792 = vand.u32 %v4780, 2147483648
    %v4793 = vor.u32 1.1754944e-38, %v4792
    %v4794 = vsel %vm4791, %v4793, %v4789
    %v4795 = vmul.f32 1.0, %v4794
    %4796 = vmatpush.msra.mxu0 0.0
    %4797 = vmatpush.msra.mxu0 0.0
    %4798 = vmatpush.msra.mxu0 0.0
    %4799 = vmatpush.msra.mxu0 0.0
    %4800 = vmatpush.msra.mxu0 0.0
    %4801 = vmatpush.msra.mxu0 0.0
    %4802 = vmatpush.msra.mxu0 0.0
    %4803 = vmatpush.msra.mxu0 0.0
    %4804 = vmatpush.msra.mxu0 0.0
    %4805 = vmatpush.msra.mxu0 0.0
    %4806 = vmatpush.msra.mxu0 0.0
    %4807 = vmatpush.msra.mxu0 0.0
    %4808 = vmatpush.msra.mxu0 %v3433
    %4809 = vmatpush.msra.mxu0 %v3432
    %4810 = vmatpush.msra.mxu0 %v3431
    %4811 = vmatpush.msra.mxu0 %v3430
    %4812 = vmatmul.f32.gmra.mxu0 %v4751
    %v4813 = vpop.f32.mrf.mxu0
    %v4814 = vadd.f32 0.0, %v4813
    %4815 = vdwg.mxu0
    %v4817 = vrot.slane %v4814, 2
    %4818 = vrot.lane.b32.xlu0 %v4817, 32
    %v4819 = vpop.permute.xlu0 %4818
    %v4821 = vadd.f32 %v3423, %v4819
    %v4822 = vxor.u32 %v4821, 2147483648
    %v4823 = vmul.f32 %v4822, 1.442695
    %v4824 = vpow.pop %v4823
    %v4825 = vadd.f32 %v4824, 1.0
    %v4826 = vrcp.pop %v4825
    %v4827 = vmul.f32 %v4825, %v4826
    %v4828 = vsub.f32 1.0, %v4827
    %v4829 = vmul.f32 %v4826, %v4828
    %v4830 = vadd.f32 %v4826, %v4829
    %vm4831 = vweird.f32 %v4825
    %vm4832 = vweird.f32 %v4826
    %vm4833 = vmor %vm4831, %vm4832
    %v4834 = vsel %vm4833, %v4826, %v4830
    %v4835 = vand.u32 2147483647, %v4825
    %vm4836 = vcmp.eq.f32.partialorder %v4835, 8.507059e+37
    %v4837 = vand.u32 %v4825, 2147483648
    %v4838 = vor.u32 1.1754944e-38, %v4837
    %v4839 = vsel %vm4836, %v4838, %v4834
    %v4840 = vmul.f32 1.0, %v4839
    %4841 = vmatpush.msra.mxu0 0.0
    %4842 = vmatpush.msra.mxu0 0.0
    %4843 = vmatpush.msra.mxu0 0.0
    %4844 = vmatpush.msra.mxu0 0.0
    %4845 = vmatpush.msra.mxu0 0.0
    %4846 = vmatpush.msra.mxu0 0.0
    %4847 = vmatpush.msra.mxu0 0.0
    %4848 = vmatpush.msra.mxu0 0.0
    %4849 = vmatpush.msra.mxu0 0.0
    %4850 = vmatpush.msra.mxu0 0.0
    %4851 = vmatpush.msra.mxu0 0.0
    %4852 = vmatpush.msra.mxu0 0.0
    %4853 = vmatpush.msra.mxu0 %v3438
    %4854 = vmatpush.msra.mxu0 %v3437
    %4855 = vmatpush.msra.mxu0 %v3436
    %4856 = vmatpush.msra.mxu0 %v3435
    %4857 = vmatmul.f32.gmra.mxu0 %v4751
    %v4858 = vpop.f32.mrf.mxu0
    %v4859 = vadd.f32 0.0, %v4858
    %4860 = vdwg.mxu0
    %v4862 = vrot.slane %v4859, 2
    %4863 = vrot.lane.b32.xlu0 %v4862, 64
    %v4864 = vpop.permute.xlu0 %4863
    %v4866 = vadd.f32 %v3423, %v4864
    %v4867 = vtanh.pop %v4866
    %4868 = vmatpush.msra.mxu0 0.0
    %4869 = vmatpush.msra.mxu0 0.0
    %4870 = vmatpush.msra.mxu0 0.0
    %4871 = vmatpush.msra.mxu0 0.0
    %4872 = vmatpush.msra.mxu0 0.0
    %4873 = vmatpush.msra.mxu0 0.0
    %4874 = vmatpush.msra.mxu0 0.0
    %4875 = vmatpush.msra.mxu0 0.0
    %4876 = vmatpush.msra.mxu0 0.0
    %4877 = vmatpush.msra.mxu0 0.0
    %4878 = vmatpush.msra.mxu0 0.0
    %4879 = vmatpush.msra.mxu0 0.0
    %4880 = vmatpush.msra.mxu0 %v3443
    %4881 = vmatpush.msra.mxu0 %v3442
    %4882 = vmatpush.msra.mxu0 %v3441
    %4883 = vmatpush.msra.mxu0 %v3440
    %4884 = vmatmul.f32.gmra.mxu0 %v4751
    %v4885 = vpop.f32.mrf.mxu0
    %v4886 = vadd.f32 0.0, %v4885
    %4887 = vdwg.mxu0
    %v4889 = vrot.slane %v4886, 2
    %4890 = vrot.lane.b32.xlu0 %v4889, 96
    %v4891 = vpop.permute.xlu0 %4890
    %v4893 = vadd.f32 %v3423, %v4891
    %v4894 = vxor.u32 %v4893, 2147483648
    %v4895 = vmul.f32 %v4894, 1.442695
    %v4896 = vpow.pop %v4895
    %v4897 = vadd.f32 %v4896, 1.0
    %v4898 = vrcp.pop %v4897
    %v4899 = vmul.f32 %v4897, %v4898
    %v4900 = vsub.f32 1.0, %v4899
    %v4901 = vmul.f32 %v4898, %v4900
    %v4902 = vadd.f32 %v4898, %v4901
    %vm4903 = vweird.f32 %v4897
    %vm4904 = vweird.f32 %v4898
    %vm4905 = vmor %vm4903, %vm4904
    %v4906 = vsel %vm4905, %v4898, %v4902
    %v4907 = vand.u32 2147483647, %v4897
    %vm4908 = vcmp.eq.f32.partialorder %v4907, 8.507059e+37
    %v4909 = vand.u32 %v4897, 2147483648
    %v4910 = vor.u32 1.1754944e-38, %v4909
    %v4911 = vsel %vm4908, %v4910, %v4906
    %v4912 = vmul.f32 1.0, %v4911
    %v4914 = vrot.slane %v4736, 6
    %v4916 = vmul.f32 %v4840, %v4914
    %4918 = vrot.lane.b32.xlu0 %v4867, 64
    %v4919 = vpop.permute.xlu0 %4918
    %v4921 = vmul.f32 %v4795, %v4919
    %4923 = vrot.lane.b32.xlu0 %v4921, 32
    %v4924 = vpop.permute.xlu0 %4923
    %v4926 = vadd.f32 %v4916, %v4924
    %v4927 = vtanh.pop %v4926
    %4929 = vrot.lane.b32.xlu0 %v4927, 64
    %v4930 = vpop.permute.xlu0 %4929
    %v4932 = vmul.f32 %v4912, %v4930
    %4934 = vrot.lane.b32.xlu0 %v4932, 32
    %v4935 = vpop.permute.xlu0 %4934
    %4937 = vst.msk [vmem:[#allocation16 + $0x8] sm:$0xc0] %vm1081, %v4935
    // Predicated region
    $region70: #{tpu_custom_call.1} parent=1 // pred_check
      _
    $region71: #{tpu_custom_call.1} parent=1 // pred_check_branch
      %4939 = sbr.rel (0) target = $region73
    $region72: #{tpu_custom_call.1} parent=1 // pred_region
      %4941 = vsyncadd [#allocation6], 0
      %s4942 = sshll.u32 [#allocation16], 4
      %s4943 = int_to_ptr.vmem [resolvable:$true] %s4942
      %s4944 = sshll.u32 %s10, 4
      %s4945 = int_to_ptr.hbm [resolvable:$true] %s4944
      %4950 = dma.vmem_to_hbm [thread:$0]  %s4943, 256, %s4945, [#allocation6], 128, 128, 8
    $region73: #{tpu_custom_call.1} parent=1 // pred_fallthru
      _
    // Predicated region
    $region74: #{tpu_custom_call.1} parent=1 // pred_check
      _
    $region75: #{tpu_custom_call.1} parent=1 // pred_check_branch
      %4952 = sbr.rel (0) target = $region77
    $region76: #{tpu_custom_call.1} parent=1 // pred_region
      %4954 = dma.done [#allocation6], 256
    $region77: #{tpu_custom_call.1} parent=1 // pred_fallthru
      _
    %4955 = vsyncpa [#allocation5], 1
    %4956 = vsyncpa [#allocation8], 1
    %4957 = vsyncpa [#allocation11], 1
    %4958 = vsyncpa [#allocation14], 1
    %4959 = vsyncpa [#allocation6], 1

</llo_original>
